<compile_context>
chip_gen: v7x
topology: tpu7x:2x2x1
jax: 0.10.0
libtpu: 0.0.40
codegen_flags: <defaults>
</compile_context>

<pallas_src>
import functools

import numpy as np
import jax
import jax.numpy as jnp
from jax import lax
from jax.experimental import pallas as pl
from jax.experimental.pallas import tpu as pltpu

# ----- model hyper-parameters (small demo sizes, consistent with the module) -----
N, C_IN, T, V = 2, 4, 8, 16          # batch, in_channels, frames, joints
C_OUT = 16
COFF = 4
INTER = C_OUT // COFF                # 4
NUM_SUBSET = 3
INTER_T = INTER * T                  # 32
K_TCN = 9
PAD_TCN = (K_TCN - 1) // 2           # 4
KER_JPT = V - 1 if V % 2 == 0 else V # 15
PAD_JPT = (KER_JPT - 1) // 2         # 7
K_TA = 9
PAD_TA = 4
BN_EPS = 1e-5
TV = T * V                           # 128

# ---------------------------------------------------------------------------
# Packed-constant slab layout (module-level, fully static).  Slab P is
# (P_ROWS, 128) f32; every block starts at an 8-aligned row and lane 0, so all
# in-kernel reads are aligned prefix windows.  Slab Q is (32, C_OUT*V) f32.
# ---------------------------------------------------------------------------
def _r8(n):
    return (n + 7) // 8 * 8

CPK_ROWS = 80            # 3 x (conv_a|pad|conv_b|pad) + down + res
CPK_DOWN = 48
CPK_RES = 64
GRP_W = V + 2 * T        # prow | sumv | foldT lanes
MISC_W = 44

P_MASK = 0                                  # (TV, TV)   same-frame mask
P_PRT = P_MASK + TV                         # (V, TV)
P_REPT = P_PRT + _r8(V)                     # (T, TV)
P_BTA = P_REPT + _r8(T)                     # (T, C_OUT*T)    temporal-attn band
P_SELTA = P_BTA + _r8(T)                    # (C_OUT, C_OUT*T) block select
P_WTA = P_SELTA + _r8(C_OUT)                # (C_OUT, 8*C_OUT) TCN taps 0..7
P_CPK = P_WTA + _r8(C_OUT)                  # (80, C_IN+2)    stacked 1x1 [W|s|h]
P_PA = P_CPK + _r8(CPK_ROWS)                # (3V, V)
P_GRP = P_PA + _r8(NUM_SUBSET * V)          # (TV, 32) prow|sumv|foldT
P_FOLDV = P_GRP + _r8(TV)                   # (C_OUT*V, V)
P_MISC = P_FOLDV + _r8(C_OUT * V)           # (C_OUT, 44) misc lane-packed block
P_W1 = P_MISC + _r8(C_OUT)                  # (C_OUT//2, C_OUT+1)  fc1 | b1
P_ROWS = P_W1 + _r8(C_OUT // 2)


def _sigmoid(x):
    return 1.0 / (1.0 + jnp.exp(-x))


def _mm(a, b):
    return jnp.dot(a, b, preferred_element_type=jnp.float32)


# ---------------------------------------------------------------------------
# The single fused Pallas kernel (nb samples per grid step)
# ---------------------------------------------------------------------------
def _aagcn_fused_kernel(x_ref, p_ref, q_ref, o_ref, *, nb):
    x = x_ref[...]                                            # (C_IN, nb*TV)

    # -------- stacked 1x1 convs (conv_a/b x3, down+BN, res+BN) on the full slab --------
    cpk = p_ref[P_CPK:P_CPK + CPK_ROWS, 0:C_IN + 2]           # [W | scale | shift]
    big = (_mm(cpk[:, 0:C_IN], x) * cpk[:, C_IN:C_IN + 1]
           + cpk[:, C_IN + 1:C_IN + 2])                       # (80, nb*TV)

    # -------- shared constants (static aligned prefix-window reads) --------
    mask = p_ref[P_MASK:P_MASK + TV, :]                       # (TV, TV)
    prt = p_ref[P_PRT:P_PRT + V, :]                           # (V, TV)
    rept = p_ref[P_REPT:P_REPT + T, :]                        # (T, TV)
    bta = p_ref[P_BTA:P_BTA + T, :]                           # (T, C_OUT*T)
    selta = p_ref[P_SELTA:P_SELTA + C_OUT, :]                 # (C_OUT, C_OUT*T)
    wt_a = p_ref[P_WTA:P_WTA + C_OUT, :]                      # (C_OUT, 8*C_OUT)
    pa = p_ref[P_PA:P_PA + NUM_SUBSET * V, 0:V]               # (3V, V)
    grp = p_ref[P_GRP:P_GRP + TV, 0:GRP_W]
    prow = grp[:, 0:V]                                        # (TV, V)
    sumv = grp[:, V:V + T]                                    # (TV, T)   mean over V
    foldt = grp[:, V + T:V + 2 * T]                           # (TV, T)
    foldv = p_ref[P_FOLDV:P_FOLDV + C_OUT * V, 0:V]           # (C_OUT*V, V)
    misc = p_ref[P_MISC:P_MISC + C_OUT, 0:MISC_W]
    gsc, gsh = misc[:, 0:1], misc[:, 1:2]                     # gcn BN (+bd bias folded)
    tsc, tsh = misc[:, 2:3], misc[:, 3:4]                     # tcn BN (+bias folded)
    w2, b2 = misc[:, 4:12], misc[:, 12:13]
    alpha = misc[0:1, 13:14]
    b_sa = misc[0:1, 14:15]
    b_ta = misc[0:1, 15:16]
    wt_b = misc[:, 16:32]                                     # TCN tap 8
    wd_cat = misc[:, 32:32 + NUM_SUBSET * C_IN]               # conv_d weights, concat
    w1b = p_ref[P_W1:P_W1 + C_OUT // 2, 0:C_OUT + 1]
    w1, b1 = w1b[:, 0:C_OUT], w1b[:, C_OUT:C_OUT + 1]
    bsa = q_ref[0:V, :]                                       # (V, C_OUT*V) spatial band
    selsa = q_ref[V:V + C_OUT, :]                             # (C_OUT, C_OUT*V)

    for s in range(nb):
        lo = s * TV
        xs = x[:, lo:lo + TV]                                 # (C_IN, TV)
        bigs = big[:, lo:lo + TV]
        down = bigs[CPK_DOWN:CPK_DOWN + C_OUT]
        res = bigs[CPK_RES:CPK_RES + C_OUT]

        # -------- adaptive graph convolution (3 subsets) --------
        y = jnp.zeros((C_OUT, TV), jnp.float32)
        for i in range(NUM_SUBSET):
            qa = bigs[16 * i:16 * i + 8]                      # conv_a_i rows (+0-pad)
            qb = bigs[16 * i + 8:16 * i + 16]                 # conv_b_i rows (+0-pad)
            # m[u,w] = sum_c qa[c,u] * qb[c,w]  (contract the channel/sublane axis)
            m = lax.dot_general(qa, qb, (((0,), (0,)), ((), ())),
                                preferred_element_type=jnp.float32)   # (TV, TV)
            g = _mm(prt, m * mask)                            # (V, TV) lane-dense
            a1 = jnp.tanh(_mm(g, prow) * (1.0 / INTER_T))     # (V, V)
            aeff = pa[V * i:V * (i + 1)] + alpha * a1         # PA_i + alpha * A1_i
            blk = _mm(prow, _mm(aeff, prt)) * mask            # kron(I_T, aeff)
            z = _mm(xs, blk)                                  # x @ A_i   (C_IN, TV)
            y = y + _mm(wd_cat[:, C_IN * i:C_IN * (i + 1)], z)   # conv_d_i
        # conv_d biases + BatchNorm + down branch + ReLU  (unit_gcn epilogue)
        y = jnp.maximum(y * gsc + gsh + down, 0.0)

        # -------- spatial (joint) attention: banded conv as 2 stacked matmuls --------
        se = _mm(y, prow) * (1.0 / T)                         # (C_OUT, V) mean over T
        qsa = _mm(se, bsa)                                    # (C_OUT, C_OUT*V)
        sa_l = jnp.sum(_mm(qsa * selsa, foldv), axis=0, keepdims=True)
        sa = _sigmoid(sa_l + b_sa)                            # (1, V)
        y = y * (1.0 + _mm(sa, prt))

        # -------- temporal (frame) attention --------
        te = _mm(y, sumv)                                     # (C_OUT, T) mean over V
        qta = _mm(te, bta)                                    # (C_OUT, C_OUT*T)
        ta_l = jnp.sum(_mm(qta * selta, foldt), axis=0, keepdims=True)
        ta = _sigmoid(ta_l + b_ta)                            # (1, T)
        y = y * (1.0 + _mm(ta, rept))

        # -------- channel attention (SE MLP) --------
        ce = jnp.mean(y, axis=1, keepdims=True)               # (C_OUT, 1)
        hfc = jnp.maximum(_mm(w1, ce) + b1, 0.0)
        ca = _sigmoid(_mm(w2, hfc) + b2)
        y = y * (1.0 + ca)

        # -------- 9x1 temporal conv: one stacked-K matmul (+ leftover tap) --------
        zpad = jnp.zeros((C_OUT, PAD_TCN * V), jnp.float32)
        ypad = jnp.concatenate([zpad, y, zpad], axis=1)       # (C_OUT, (T+8)*V)
        taps = [ypad[:, k * V:k * V + TV] for k in range(K_TCN)]
        rhs = jnp.concatenate(taps[:K_TCN - 1], axis=0)       # (8*C_OUT, TV)
        tcn = (_mm(wt_a, rhs) + _mm(wt_b, taps[K_TCN - 1])) * tsc + tsh

        # -------- residual (1x1 conv + BN) + final ReLU --------
        o_ref[:, lo:lo + TV] = jnp.maximum(tcn + res, 0.0).astype(o_ref.dtype)


# ---------------------------------------------------------------------------
# Wrapper
# ---------------------------------------------------------------------------
def aagcn_forward(x, p_slab, q_slab, samples_per_step=1):
    n = x.shape[0]
    nb = samples_per_step
    assert n % nb == 0
    # lane layout: sample s occupies lanes [s*TV, (s+1)*TV), frame-major within.
    xp = jnp.transpose(x.reshape(n, C_IN, TV), (1, 0, 2)).reshape(C_IN, n * TV)
    kernel = functools.partial(_aagcn_fused_kernel, nb=nb)
    out = pl.pallas_call(
        kernel,
        grid=(n // nb,),
        in_specs=[
            pl.BlockSpec((C_IN, nb * TV), lambda g: (0, g)),
            pl.BlockSpec((P_ROWS, 128), lambda g: (0, 0)),
            pl.BlockSpec((2 * C_OUT, C_OUT * V), lambda g: (0, 0)),
        ],
        out_specs=pl.BlockSpec((C_OUT, nb * TV), lambda g: (0, g)),
        out_shape=jax.ShapeDtypeStruct((C_OUT, n * TV), jnp.float32),
        compiler_params=pltpu.CompilerParams(dimension_semantics=("parallel",)),
    )(xp, p_slab, q_slab)
    return jnp.transpose(out.reshape(C_OUT, n, T, V), (1, 0, 2, 3))


# ---------------------------------------------------------------------------
# Parameters (deterministic init; shapes match the PyTorch module's __init__)
# ---------------------------------------------------------------------------
def _bn_params(key, c):
    k1, k2, k3, k4 = jax.random.split(key, 4)
    gamma = 1.0 + 0.1 * jax.random.normal(k1, (c,), jnp.float32)
    beta = 0.1 * jax.random.normal(k2, (c,), jnp.float32)
    mean = 0.1 * jax.random.normal(k3, (c,), jnp.float32)
    var = 1.0 + 0.1 * jnp.abs(jax.random.normal(k4, (c,), jnp.float32))
    return gamma, beta, mean, var


def _bn_fold(bn):
    gamma, beta, mean, var = (np.asarray(a, np.float32) for a in bn)
    s = gamma / np.sqrt(var + BN_EPS)
    return s, beta - mean * s


def init_params(key):
    ks = jax.random.split(key, 32)

    def nrm(k, shape, s=0.2):
        return jax.random.normal(k, shape, jnp.float32) * s

    p = {}
    p['A'] = jax.random.uniform(ks[0], (NUM_SUBSET, V, V), jnp.float32) * 0.2
    # torch inits alpha to 0; use a nonzero value so the adaptive branch is exercised
    p['alpha'] = jnp.full((1, 1), 0.3, jnp.float32)
    p['wa'] = nrm(ks[1], (NUM_SUBSET, INTER, C_IN)); p['ba'] = nrm(ks[2], (NUM_SUBSET, INTER), 0.05)
    p['wb'] = nrm(ks[3], (NUM_SUBSET, INTER, C_IN)); p['bb'] = nrm(ks[4], (NUM_SUBSET, INTER), 0.05)
    p['wd'] = nrm(ks[5], (NUM_SUBSET, C_OUT, C_IN)); p['bd'] = nrm(ks[6], (NUM_SUBSET, C_OUT), 0.05)
    p['w_down'] = nrm(ks[7], (C_OUT, C_IN)); p['b_down'] = nrm(ks[8], (C_OUT,), 0.05)
    p['bn_down'] = _bn_params(ks[9], C_OUT)
    p['bn_gcn'] = _bn_params(ks[10], C_OUT)
    p['w_sa'] = nrm(ks[11], (1, C_OUT, KER_JPT)); p['b_sa'] = nrm(ks[12], (1,), 0.05)
    p['w_ta'] = nrm(ks[13], (1, C_OUT, K_TA));    p['b_ta'] = nrm(ks[14], (1,), 0.05)
    p['w_fc1'] = nrm(ks[15], (C_OUT // 2, C_OUT)); p['b_fc1'] = nrm(ks[16], (C_OUT // 2,), 0.05)
    p['w_fc2'] = nrm(ks[17], (C_OUT, C_OUT // 2)); p['b_fc2'] = nrm(ks[18], (C_OUT,), 0.05)
    p['w_tcn'] = nrm(ks[19], (C_OUT, C_OUT, K_TCN)); p['b_tcn'] = nrm(ks[20], (C_OUT,), 0.05)
    p['bn_tcn'] = _bn_params(ks[21], C_OUT)
    p['w_res'] = nrm(ks[22], (C_OUT, C_IN)); p['b_res'] = nrm(ks[23], (C_OUT,), 0.05)
    p['bn_res'] = _bn_params(ks[24], C_OUT)
    return p


def prepare(p):
    """Pack all derived constants into two lane-dense slabs (host-side)."""
    P = np.zeros((P_ROWS, 128), np.float32)
    Q = np.zeros((2 * C_OUT, C_OUT * V), np.float32)

    eyeV = np.eye(V, dtype=np.float32)
    eyeT = np.eye(T, dtype=np.float32)
    prow = np.tile(eyeV, (T, 1))                                        # (TV, V)
    P[P_MASK:P_MASK + TV, :TV] = np.kron(eyeT, np.ones((V, V), np.float32))
    P[P_PRT:P_PRT + V, :TV] = prow.T
    P[P_REPT:P_REPT + T, :TV] = np.kron(eyeT, np.ones((1, V), np.float32))
    P[P_GRP:P_GRP + TV, 0:V] = prow
    P[P_GRP:P_GRP + TV, V:V + T] = np.kron(eyeT, np.ones((V, 1), np.float32)) / V
    P[P_GRP:P_GRP + TV, V + T:V + 2 * T] = np.tile(eyeT, (C_OUT, 1))
    P[P_FOLDV:P_FOLDV + C_OUT * V, 0:V] = np.tile(eyeV, (C_OUT, 1))

    # ---- stacked 1x1 convs: [W | scale | shift] per row ----
    cpk = np.zeros((CPK_ROWS, C_IN + 2), np.float32)
    cpk[:, C_IN] = 1.0
    wa, ba = np.asarray(p['wa']), np.asarray(p['ba'])
    wb, bb = np.asarray(p['wb']), np.asarray(p['bb'])
    for i in range(NUM_SUBSET):
        cpk[16 * i:16 * i + INTER, :C_IN] = wa[i]
        cpk[16 * i:16 * i + INTER, C_IN + 1] = ba[i]
        cpk[16 * i + 8:16 * i + 8 + INTER, :C_IN] = wb[i]
        cpk[16 * i + 8:16 * i + 8 + INTER, C_IN + 1] = bb[i]
    s, h = _bn_fold(p['bn_down'])
    cpk[CPK_DOWN:CPK_DOWN + C_OUT, :C_IN] = np.asarray(p['w_down'])
    cpk[CPK_DOWN:CPK_DOWN + C_OUT, C_IN] = s
    cpk[CPK_DOWN:CPK_DOWN + C_OUT, C_IN + 1] = np.asarray(p['b_down']) * s + h
    s, h = _bn_fold(p['bn_res'])
    cpk[CPK_RES:CPK_RES + C_OUT, :C_IN] = np.asarray(p['w_res'])
    cpk[CPK_RES:CPK_RES + C_OUT, C_IN] = s
    cpk[CPK_RES:CPK_RES + C_OUT, C_IN + 1] = np.asarray(p['b_res']) * s + h
    P[P_CPK:P_CPK + CPK_ROWS, :C_IN + 2] = cpk

    # ---- adaptive-graph constants ----
    P[P_PA:P_PA + NUM_SUBSET * V, :V] = np.asarray(p['A']).reshape(NUM_SUBSET * V, V)
    wd = np.asarray(p['wd'])
    for i in range(NUM_SUBSET):
        P[P_MISC:P_MISC + C_OUT, 32 + i * C_IN:32 + (i + 1) * C_IN] = wd[i]
    gs, gh = _bn_fold(p['bn_gcn'])
    bd_sum = np.asarray(p['bd']).sum(axis=0)
    P[P_MISC:P_MISC + C_OUT, 0] = gs
    P[P_MISC:P_MISC + C_OUT, 1] = bd_sum * gs + gh
    ts, th = _bn_fold(p['bn_tcn'])
    P[P_MISC:P_MISC + C_OUT, 2] = ts
    P[P_MISC:P_MISC + C_OUT, 3] = np.asarray(p['b_tcn']) * ts + th
    P[P_MISC:P_MISC + C_OUT, 4:12] = np.asarray(p['w_fc2'])
    P[P_MISC:P_MISC + C_OUT, 12] = np.asarray(p['b_fc2'])
    P[P_MISC, 13] = float(np.asarray(p['alpha']).reshape(()))
    P[P_MISC, 14] = float(np.asarray(p['b_sa']).reshape(()))
    P[P_MISC, 15] = float(np.asarray(p['b_ta']).reshape(()))
    w_tcn = np.asarray(p['w_tcn'])
    P[P_MISC:P_MISC + C_OUT, 16:32] = w_tcn[:, :, K_TCN - 1]
    P[P_W1:P_W1 + C_OUT // 2, 0:C_OUT] = np.asarray(p['w_fc1'])
    P[P_W1:P_W1 + C_OUT // 2, C_OUT] = np.asarray(p['b_fc1'])

    # ---- TCN stacked weights, taps 0..7 ----
    for k in range(K_TCN - 1):
        P[P_WTA:P_WTA + C_OUT, k * C_OUT:(k + 1) * C_OUT] = w_tcn[:, :, k]

    # ---- temporal attention: band blocks + block-select (all <=128 lanes) ----
    w_ta = np.asarray(p['w_ta'])[0]                                     # (C_OUT, K_TA)
    for c in range(C_OUT):
        P[P_SELTA + c, c * T:(c + 1) * T] = 1.0
        for tsrc in range(T):
            for tdst in range(T):
                k = tsrc - tdst + PAD_TA
                if 0 <= k < K_TA:
                    P[P_BTA + tsrc, c * T + tdst] = w_ta[c, k]

    # ---- spatial attention: band blocks + block-select (256-lane slab) ----
    w_sa = np.asarray(p['w_sa'])[0]                                     # (C_OUT, KER_JPT)
    for c in range(C_OUT):
        Q[V + c, c * V:(c + 1) * V] = 1.0
        for vsrc in range(V):
            for vdst in range(V):
                k = vsrc - vdst + PAD_JPT
                if 0 <= k < KER_JPT:
                    Q[vsrc, c * V + vdst] = w_sa[c, k]

    return jnp.asarray(P), jnp.asarray(Q)


# ---------------------------------------------------------------------------
# Pure-JAX reference (eval-mode BatchNorm), used to validate the fused kernel
# ---------------------------------------------------------------------------
def reference_forward(x, p):
    hp = lax.Precision.HIGHEST

    def conv1x1(x4, w, b):
        return jnp.einsum('oc,nctv->notv', w, x4, precision=hp) + b[None, :, None, None]

    def bn(x4, bnp):
        gamma, beta, mean, var = bnp
        s = gamma / jnp.sqrt(var + BN_EPS)
        return x4 * s[None, :, None, None] + (beta - mean * s)[None, :, None, None]

    # unit_gcn (adaptive + attention)
    y = jnp.zeros((N, C_OUT, T, V), jnp.float32)
    for i in range(NUM_SUBSET):
        qa = conv1x1(x, p['wa'][i], p['ba'][i])
        qb = conv1x1(x, p['wb'][i], p['bb'][i])
        a1 = jnp.tanh(jnp.einsum('nctv,nctw->nvw', qa, qb, precision=hp) / (INTER * T))
        ae = p['A'][i][None] + p['alpha'][0, 0] * a1
        z = jnp.einsum('nctv,nvw->nctw', x, ae, precision=hp)
        y = y + conv1x1(z, p['wd'][i], p['bd'][i])
    y = bn(y, p['bn_gcn'])
    y = y + bn(conv1x1(x, p['w_down'], p['b_down']), p['bn_down'])
    y = jnp.maximum(y, 0.0)
    # spatial attention
    se = y.mean(axis=2)
    sep = jnp.pad(se, ((0, 0), (0, 0), (PAD_JPT, PAD_JPT)))
    sa = jnp.zeros((N, V), jnp.float32)
    for k in range(KER_JPT):
        sa = sa + jnp.einsum('c,ncv->nv', p['w_sa'][0, :, k], sep[:, :, k:k + V], precision=hp)
    sa = 1.0 / (1.0 + jnp.exp(-(sa + p['b_sa'][0])))
    y = y * sa[:, None, None, :] + y
    # temporal attention
    te = y.mean(axis=3)
    tep = jnp.pad(te, ((0, 0), (0, 0), (PAD_TA, PAD_TA)))
    ta = jnp.zeros((N, T), jnp.float32)
    for k in range(K_TA):
        ta = ta + jnp.einsum('c,nct->nt', p['w_ta'][0, :, k], tep[:, :, k:k + T], precision=hp)
    ta = 1.0 / (1.0 + jnp.exp(-(ta + p['b_ta'][0])))
    y = y * ta[:, None, :, None] + y
    # channel attention
    ce = y.mean(axis=(2, 3))
    hfc = jnp.maximum(jnp.einsum('nc,hc->nh', ce, p['w_fc1'], precision=hp) + p['b_fc1'], 0.0)
    ca = 1.0 / (1.0 + jnp.exp(-(jnp.einsum('nh,ch->nc', hfc, p['w_fc2'], precision=hp) + p['b_fc2'])))
    y = y * ca[:, :, None, None] + y
    # unit_tcn + residual + relu
    ypad = jnp.pad(y, ((0, 0), (0, 0), (PAD_TCN, PAD_TCN), (0, 0)))
    tc = jnp.zeros((N, C_OUT, T, V), jnp.float32)
    for k in range(K_TCN):
        tc = tc + jnp.einsum('oc,nctv->notv', p['w_tcn'][:, :, k], ypad[:, :, k:k + T, :],
                             precision=hp)
    tc = bn(tc + p['b_tcn'][None, :, None, None], p['bn_tcn'])
    res = bn(conv1x1(x, p['w_res'], p['b_res']), p['bn_res'])
    return jnp.maximum(tc + res, 0.0)


if __name__ == "__main__":
    key = jax.random.PRNGKey(0)
    kp, kx = jax.random.split(key)
    params = init_params(kp)
    p_slab, q_slab = prepare(params)
    x = jax.random.normal(kx, (N, C_IN, T, V), jnp.float32)

    # samples_per_step=1 keeps grid=(2,) so each v7x TensorCore gets a step;
    # larger batches can raise samples_per_step to widen the stacked 1x1 matmuls.
    out = jax.block_until_ready(aagcn_forward(x, p_slab, q_slab, samples_per_step=1))
    ref = jax.block_until_ready(reference_forward(x, params))

    assert out.shape == (N, C_OUT, T, V), out.shape
    assert bool(jnp.all(jnp.isfinite(out)))
    assert bool(jnp.all(out >= 0.0))  # final ReLU
    # Tolerance justification: the kernel uses default MXU precision (bf16 pass
    # splitting for f32) while the reference uses HIGHEST; observed error is
    # ~1e-4, the 5e-2 bound only guards against pass-splitting differences
    # across TPU generations.
    rel_err = float(jnp.max(jnp.abs(out - ref)) / (jnp.max(jnp.abs(ref)) + 1e-6))
    assert rel_err < 5e-2, f"kernel/reference mismatch: rel-max err {rel_err}"
    print("KERNEL_OK")
</pallas_src>

<mosaic_0001>
module attributes {stable_mosaic.version = 11 : i64} {
  func.func @_aagcn_fused_kernel(%arg0: i32, %arg1: memref<4x128xf32, #tpu.memory_space<vmem>>, %arg2: memref<728x128xf32, #tpu.memory_space<vmem>>, %arg3: memref<32x256xf32, #tpu.memory_space<vmem>>, %arg4: memref<16x128xf32, #tpu.memory_space<vmem>>) attributes {dimension_semantics = [#tpu.dimension_semantics<parallel>], iteration_bounds = array<i64: 2>, scalar_prefetch = 0 : i64, scratch_operands = 0 : i64, tpu.core_type = #tpu.core_type<tc>, window_params = [{transform_indices = @transform_0, window_bounds = array<i64: 4, 128>}, {pipeline_mode = #tpu.pipeline_mode<synchronous>, transform_indices = @transform_1, window_bounds = array<i64: 728, 128>}, {pipeline_mode = #tpu.pipeline_mode<synchronous>, transform_indices = @transform_2, window_bounds = array<i64: 32, 256>}, {transform_indices = @transform_3, window_bounds = array<i64: 16, 128>}]} {
    %c0 = arith.constant 0 : index
    %c0_0 = arith.constant 0 : index
    %0 = vector.load %arg1[%c0, %c0_0] : memref<4x128xf32, #tpu.memory_space<vmem>>, vector<4x128xf32>
    %c192 = arith.constant 192 : index
    %c0_1 = arith.constant 0 : index
    %1 = vector.load %arg2[%c192, %c0_1] : memref<728x128xf32, #tpu.memory_space<vmem>>, vector<80x6xf32>
    %2 = vector.extract_strided_slice %1 {offsets = [0, 0], sizes = [80, 4], strides = [1, 1]} : vector<80x6xf32> to vector<80x4xf32>
    %cst = arith.constant dense<0.000000e+00> : vector<80x128xf32>
    %3 = tpu.matmul %2, %0, %cst {dimension_numbers = #tpu.dot_dimension_numbers<[1], [0], [0], [1], [0, 0, 1, 1], [], []>} : vector<80x4xf32>, vector<4x128xf32>, vector<80x128xf32> -> vector<80x128xf32>
    %4 = vector.extract_strided_slice %1 {offsets = [0, 4], sizes = [80, 1], strides = [1, 1]} : vector<80x6xf32> to vector<80x1xf32>
    %5 = vector.broadcast %4 : vector<80x1xf32> to vector<80x128xf32>
    %6 = arith.mulf %3, %5 : vector<80x128xf32>
    %7 = vector.extract_strided_slice %1 {offsets = [0, 5], sizes = [80, 1], strides = [1, 1]} : vector<80x6xf32> to vector<80x1xf32>
    %8 = vector.broadcast %7 : vector<80x1xf32> to vector<80x128xf32>
    %9 = arith.addf %6, %8 : vector<80x128xf32>
    %c0_2 = arith.constant 0 : index
    %c0_3 = arith.constant 0 : index
    %10 = vector.load %arg2[%c0_2, %c0_3] : memref<728x128xf32, #tpu.memory_space<vmem>>, vector<128x128xf32>
    %c128 = arith.constant 128 : index
    %c0_4 = arith.constant 0 : index
    %11 = vector.load %arg2[%c128, %c0_4] : memref<728x128xf32, #tpu.memory_space<vmem>>, vector<16x128xf32>
    %c144 = arith.constant 144 : index
    %c0_5 = arith.constant 0 : index
    %12 = vector.load %arg2[%c144, %c0_5] : memref<728x128xf32, #tpu.memory_space<vmem>>, vector<8x128xf32>
    %c152 = arith.constant 152 : index
    %c0_6 = arith.constant 0 : index
    %13 = vector.load %arg2[%c152, %c0_6] : memref<728x128xf32, #tpu.memory_space<vmem>>, vector<8x128xf32>
    %c160 = arith.constant 160 : index
    %c0_7 = arith.constant 0 : index
    %14 = vector.load %arg2[%c160, %c0_7] : memref<728x128xf32, #tpu.memory_space<vmem>>, vector<16x128xf32>
    %c176 = arith.constant 176 : index
    %c0_8 = arith.constant 0 : index
    %15 = vector.load %arg2[%c176, %c0_8] : memref<728x128xf32, #tpu.memory_space<vmem>>, vector<16x128xf32>
    %c272 = arith.constant 272 : index
    %c0_9 = arith.constant 0 : index
    %16 = vector.load %arg2[%c272, %c0_9] : memref<728x128xf32, #tpu.memory_space<vmem>>, vector<48x16xf32>
    %c320 = arith.constant 320 : index
    %c0_10 = arith.constant 0 : index
    %17 = vector.load %arg2[%c320, %c0_10] : memref<728x128xf32, #tpu.memory_space<vmem>>, vector<128x32xf32>
    %18 = vector.extract_strided_slice %17 {offsets = [0, 0], sizes = [128, 16], strides = [1, 1]} : vector<128x32xf32> to vector<128x16xf32>
    %19 = vector.extract_strided_slice %17 {offsets = [0, 16], sizes = [128, 8], strides = [1, 1]} : vector<128x32xf32> to vector<128x8xf32>
    %20 = vector.extract_strided_slice %17 {offsets = [0, 24], sizes = [128, 8], strides = [1, 1]} : vector<128x32xf32> to vector<128x8xf32>
    %c448 = arith.constant 448 : index
    %c0_11 = arith.constant 0 : index
    %21 = vector.load %arg2[%c448, %c0_11] : memref<728x128xf32, #tpu.memory_space<vmem>>, vector<256x16xf32>
    %c704 = arith.constant 704 : index
    %c0_12 = arith.constant 0 : index
    %22 = vector.load %arg2[%c704, %c0_12] : memref<728x128xf32, #tpu.memory_space<vmem>>, vector<16x44xf32>
    %23 = vector.extract_strided_slice %22 {offsets = [0, 0], sizes = [16, 1], strides = [1, 1]} : vector<16x44xf32> to vector<16x1xf32>
    %24 = vector.extract_strided_slice %22 {offsets = [0, 1], sizes = [16, 1], strides = [1, 1]} : vector<16x44xf32> to vector<16x1xf32>
    %25 = vector.extract_strided_slice %22 {offsets = [0, 2], sizes = [16, 1], strides = [1, 1]} : vector<16x44xf32> to vector<16x1xf32>
    %26 = vector.extract_strided_slice %22 {offsets = [0, 3], sizes = [16, 1], strides = [1, 1]} : vector<16x44xf32> to vector<16x1xf32>
    %27 = vector.extract_strided_slice %22 {offsets = [0, 4], sizes = [16, 8], strides = [1, 1]} : vector<16x44xf32> to vector<16x8xf32>
    %28 = vector.extract_strided_slice %22 {offsets = [0, 12], sizes = [16, 1], strides = [1, 1]} : vector<16x44xf32> to vector<16x1xf32>
    %29 = vector.extract_strided_slice %22 {offsets = [0, 13], sizes = [1, 1], strides = [1, 1]} : vector<16x44xf32> to vector<1x1xf32>
    %30 = vector.extract_strided_slice %22 {offsets = [0, 14], sizes = [1, 1], strides = [1, 1]} : vector<16x44xf32> to vector<1x1xf32>
    %31 = vector.extract_strided_slice %22 {offsets = [0, 15], sizes = [1, 1], strides = [1, 1]} : vector<16x44xf32> to vector<1x1xf32>
    %32 = vector.extract_strided_slice %22 {offsets = [0, 16], sizes = [16, 16], strides = [1, 1]} : vector<16x44xf32> to vector<16x16xf32>
    %33 = vector.extract_strided_slice %22 {offsets = [0, 32], sizes = [16, 12], strides = [1, 1]} : vector<16x44xf32> to vector<16x12xf32>
    %c720 = arith.constant 720 : index
    %c0_13 = arith.constant 0 : index
    %34 = vector.load %arg2[%c720, %c0_13] : memref<728x128xf32, #tpu.memory_space<vmem>>, vector<8x17xf32>
    %35 = vector.extract_strided_slice %34 {offsets = [0, 0], sizes = [8, 16], strides = [1, 1]} : vector<8x17xf32> to vector<8x16xf32>
    %36 = vector.extract_strided_slice %34 {offsets = [0, 16], sizes = [8, 1], strides = [1, 1]} : vector<8x17xf32> to vector<8x1xf32>
    %c0_14 = arith.constant 0 : index
    %c0_15 = arith.constant 0 : index
    %37 = vector.load %arg3[%c0_14, %c0_15] : memref<32x256xf32, #tpu.memory_space<vmem>>, vector<16x256xf32>
    %c16 = arith.constant 16 : index
    %c0_16 = arith.constant 0 : index
    %38 = vector.load %arg3[%c16, %c0_16] : memref<32x256xf32, #tpu.memory_space<vmem>>, vector<16x256xf32>
    %39 = vector.extract_strided_slice %9 {offsets = [48, 0], sizes = [16, 128], strides = [1, 1]} : vector<80x128xf32> to vector<16x128xf32>
    %40 = vector.extract_strided_slice %9 {offsets = [64, 0], sizes = [16, 128], strides = [1, 1]} : vector<80x128xf32> to vector<16x128xf32>
    %cst_17 = arith.constant 0.000000e+00 : f32
    %41 = vector.broadcast %cst_17 : f32 to vector<16x128xf32>
    %42 = vector.extract_strided_slice %9 {offsets = [0, 0], sizes = [8, 128], strides = [1, 1]} : vector<80x128xf32> to vector<8x128xf32>
    %43 = vector.extract_strided_slice %9 {offsets = [8, 0], sizes = [8, 128], strides = [1, 1]} : vector<80x128xf32> to vector<8x128xf32>
    %cst_18 = arith.constant dense<0.000000e+00> : vector<128x128xf32>
    %44 = tpu.matmul %42, %43, %cst_18 {dimension_numbers = #tpu.dot_dimension_numbers<[0], [0], [1], [1], [0, 1, 1, 1], [], []>} : vector<8x128xf32>, vector<8x128xf32>, vector<128x128xf32> -> vector<128x128xf32>
    %45 = arith.mulf %44, %10 : vector<128x128xf32>
    %cst_19 = arith.constant dense<0.000000e+00> : vector<16x128xf32>
    %46 = tpu.matmul %11, %45, %cst_19 {dimension_numbers = #tpu.dot_dimension_numbers<[1], [0], [0], [1], [0, 0, 1, 1], [], []>} : vector<16x128xf32>, vector<128x128xf32>, vector<16x128xf32> -> vector<16x128xf32>
    %cst_20 = arith.constant dense<0.000000e+00> : vector<16x16xf32>
    %47 = tpu.matmul %46, %18, %cst_20 {dimension_numbers = #tpu.dot_dimension_numbers<[1], [0], [0], [1], [0, 0, 1, 1], [], []>} : vector<16x128xf32>, vector<128x16xf32>, vector<16x16xf32> -> vector<16x16xf32>
    %cst_21 = arith.constant 3.125000e-02 : f32
    %48 = vector.broadcast %cst_21 : f32 to vector<16x16xf32>
    %49 = arith.mulf %47, %48 : vector<16x16xf32>
    %50 = math.tanh %49 : vector<16x16xf32>
    %51 = vector.extract_strided_slice %16 {offsets = [0, 0], sizes = [16, 16], strides = [1, 1]} : vector<48x16xf32> to vector<16x16xf32>
    %52 = vector.broadcast %29 : vector<1x1xf32> to vector<16x16xf32>
    %53 = arith.mulf %52, %50 : vector<16x16xf32>
    %54 = arith.addf %51, %53 : vector<16x16xf32>
    %cst_22 = arith.constant dense<0.000000e+00> : vector<16x128xf32>
    %55 = tpu.matmul %54, %11, %cst_22 {dimension_numbers = #tpu.dot_dimension_numbers<[1], [0], [0], [1], [0, 0, 1, 1], [], []>} : vector<16x16xf32>, vector<16x128xf32>, vector<16x128xf32> -> vector<16x128xf32>
    %cst_23 = arith.constant dense<0.000000e+00> : vector<128x128xf32>
    %56 = tpu.matmul %18, %55, %cst_23 {dimension_numbers = #tpu.dot_dimension_numbers<[1], [0], [0], [1], [0, 0, 1, 1], [], []>} : vector<128x16xf32>, vector<16x128xf32>, vector<128x128xf32> -> vector<128x128xf32>
    %57 = arith.mulf %56, %10 : vector<128x128xf32>
    %cst_24 = arith.constant dense<0.000000e+00> : vector<4x128xf32>
    %58 = tpu.matmul %0, %57, %cst_24 {dimension_numbers = #tpu.dot_dimension_numbers<[1], [0], [0], [1], [0, 0, 1, 1], [], []>} : vector<4x128xf32>, vector<128x128xf32>, vector<4x128xf32> -> vector<4x128xf32>
    %59 = vector.extract_strided_slice %33 {offsets = [0, 0], sizes = [16, 4], strides = [1, 1]} : vector<16x12xf32> to vector<16x4xf32>
    %cst_25 = arith.constant dense<0.000000e+00> : vector<16x128xf32>
    %60 = tpu.matmul %59, %58, %cst_25 {dimension_numbers = #tpu.dot_dimension_numbers<[1], [0], [0], [1], [0, 0, 1, 1], [], []>} : vector<16x4xf32>, vector<4x128xf32>, vector<16x128xf32> -> vector<16x128xf32>
    %61 = arith.addf %41, %60 : vector<16x128xf32>
    %62 = vector.extract_strided_slice %9 {offsets = [16, 0], sizes = [8, 128], strides = [1, 1]} : vector<80x128xf32> to vector<8x128xf32>
    %63 = vector.extract_strided_slice %9 {offsets = [24, 0], sizes = [8, 128], strides = [1, 1]} : vector<80x128xf32> to vector<8x128xf32>
    %cst_26 = arith.constant dense<0.000000e+00> : vector<128x128xf32>
    %64 = tpu.matmul %62, %63, %cst_26 {dimension_numbers = #tpu.dot_dimension_numbers<[0], [0], [1], [1], [0, 1, 1, 1], [], []>} : vector<8x128xf32>, vector<8x128xf32>, vector<128x128xf32> -> vector<128x128xf32>
    %65 = arith.mulf %64, %10 : vector<128x128xf32>
    %cst_27 = arith.constant dense<0.000000e+00> : vector<16x128xf32>
    %66 = tpu.matmul %11, %65, %cst_27 {dimension_numbers = #tpu.dot_dimension_numbers<[1], [0], [0], [1], [0, 0, 1, 1], [], []>} : vector<16x128xf32>, vector<128x128xf32>, vector<16x128xf32> -> vector<16x128xf32>
    %cst_28 = arith.constant dense<0.000000e+00> : vector<16x16xf32>
    %67 = tpu.matmul %66, %18, %cst_28 {dimension_numbers = #tpu.dot_dimension_numbers<[1], [0], [0], [1], [0, 0, 1, 1], [], []>} : vector<16x128xf32>, vector<128x16xf32>, vector<16x16xf32> -> vector<16x16xf32>
    %cst_29 = arith.constant 3.125000e-02 : f32
    %68 = vector.broadcast %cst_29 : f32 to vector<16x16xf32>
    %69 = arith.mulf %67, %68 : vector<16x16xf32>
    %70 = math.tanh %69 : vector<16x16xf32>
    %71 = vector.extract_strided_slice %16 {offsets = [16, 0], sizes = [16, 16], strides = [1, 1]} : vector<48x16xf32> to vector<16x16xf32>
    %72 = vector.broadcast %29 : vector<1x1xf32> to vector<16x16xf32>
    %73 = arith.mulf %72, %70 : vector<16x16xf32>
    %74 = arith.addf %71, %73 : vector<16x16xf32>
    %cst_30 = arith.constant dense<0.000000e+00> : vector<16x128xf32>
    %75 = tpu.matmul %74, %11, %cst_30 {dimension_numbers = #tpu.dot_dimension_numbers<[1], [0], [0], [1], [0, 0, 1, 1], [], []>} : vector<16x16xf32>, vector<16x128xf32>, vector<16x128xf32> -> vector<16x128xf32>
    %cst_31 = arith.constant dense<0.000000e+00> : vector<128x128xf32>
    %76 = tpu.matmul %18, %75, %cst_31 {dimension_numbers = #tpu.dot_dimension_numbers<[1], [0], [0], [1], [0, 0, 1, 1], [], []>} : vector<128x16xf32>, vector<16x128xf32>, vector<128x128xf32> -> vector<128x128xf32>
    %77 = arith.mulf %76, %10 : vector<128x128xf32>
    %cst_32 = arith.constant dense<0.000000e+00> : vector<4x128xf32>
    %78 = tpu.matmul %0, %77, %cst_32 {dimension_numbers = #tpu.dot_dimension_numbers<[1], [0], [0], [1], [0, 0, 1, 1], [], []>} : vector<4x128xf32>, vector<128x128xf32>, vector<4x128xf32> -> vector<4x128xf32>
    %79 = vector.extract_strided_slice %33 {offsets = [0, 4], sizes = [16, 4], strides = [1, 1]} : vector<16x12xf32> to vector<16x4xf32>
    %cst_33 = arith.constant dense<0.000000e+00> : vector<16x128xf32>
    %80 = tpu.matmul %79, %78, %cst_33 {dimension_numbers = #tpu.dot_dimension_numbers<[1], [0], [0], [1], [0, 0, 1, 1], [], []>} : vector<16x4xf32>, vector<4x128xf32>, vector<16x128xf32> -> vector<16x128xf32>
    %81 = arith.addf %61, %80 : vector<16x128xf32>
    %82 = vector.extract_strided_slice %9 {offsets = [32, 0], sizes = [8, 128], strides = [1, 1]} : vector<80x128xf32> to vector<8x128xf32>
    %83 = vector.extract_strided_slice %9 {offsets = [40, 0], sizes = [8, 128], strides = [1, 1]} : vector<80x128xf32> to vector<8x128xf32>
    %cst_34 = arith.constant dense<0.000000e+00> : vector<128x128xf32>
    %84 = tpu.matmul %82, %83, %cst_34 {dimension_numbers = #tpu.dot_dimension_numbers<[0], [0], [1], [1], [0, 1, 1, 1], [], []>} : vector<8x128xf32>, vector<8x128xf32>, vector<128x128xf32> -> vector<128x128xf32>
    %85 = arith.mulf %84, %10 : vector<128x128xf32>
    %cst_35 = arith.constant dense<0.000000e+00> : vector<16x128xf32>
    %86 = tpu.matmul %11, %85, %cst_35 {dimension_numbers = #tpu.dot_dimension_numbers<[1], [0], [0], [1], [0, 0, 1, 1], [], []>} : vector<16x128xf32>, vector<128x128xf32>, vector<16x128xf32> -> vector<16x128xf32>
    %cst_36 = arith.constant dense<0.000000e+00> : vector<16x16xf32>
    %87 = tpu.matmul %86, %18, %cst_36 {dimension_numbers = #tpu.dot_dimension_numbers<[1], [0], [0], [1], [0, 0, 1, 1], [], []>} : vector<16x128xf32>, vector<128x16xf32>, vector<16x16xf32> -> vector<16x16xf32>
    %cst_37 = arith.constant 3.125000e-02 : f32
    %88 = vector.broadcast %cst_37 : f32 to vector<16x16xf32>
    %89 = arith.mulf %87, %88 : vector<16x16xf32>
    %90 = math.tanh %89 : vector<16x16xf32>
    %91 = vector.extract_strided_slice %16 {offsets = [32, 0], sizes = [16, 16], strides = [1, 1]} : vector<48x16xf32> to vector<16x16xf32>
    %92 = vector.broadcast %29 : vector<1x1xf32> to vector<16x16xf32>
    %93 = arith.mulf %92, %90 : vector<16x16xf32>
    %94 = arith.addf %91, %93 : vector<16x16xf32>
    %cst_38 = arith.constant dense<0.000000e+00> : vector<16x128xf32>
    %95 = tpu.matmul %94, %11, %cst_38 {dimension_numbers = #tpu.dot_dimension_numbers<[1], [0], [0], [1], [0, 0, 1, 1], [], []>} : vector<16x16xf32>, vector<16x128xf32>, vector<16x128xf32> -> vector<16x128xf32>
    %cst_39 = arith.constant dense<0.000000e+00> : vector<128x128xf32>
    %96 = tpu.matmul %18, %95, %cst_39 {dimension_numbers = #tpu.dot_dimension_numbers<[1], [0], [0], [1], [0, 0, 1, 1], [], []>} : vector<128x16xf32>, vector<16x128xf32>, vector<128x128xf32> -> vector<128x128xf32>
    %97 = arith.mulf %96, %10 : vector<128x128xf32>
    %cst_40 = arith.constant dense<0.000000e+00> : vector<4x128xf32>
    %98 = tpu.matmul %0, %97, %cst_40 {dimension_numbers = #tpu.dot_dimension_numbers<[1], [0], [0], [1], [0, 0, 1, 1], [], []>} : vector<4x128xf32>, vector<128x128xf32>, vector<4x128xf32> -> vector<4x128xf32>
    %99 = vector.extract_strided_slice %33 {offsets = [0, 8], sizes = [16, 4], strides = [1, 1]} : vector<16x12xf32> to vector<16x4xf32>
    %cst_41 = arith.constant dense<0.000000e+00> : vector<16x128xf32>
    %100 = tpu.matmul %99, %98, %cst_41 {dimension_numbers = #tpu.dot_dimension_numbers<[1], [0], [0], [1], [0, 0, 1, 1], [], []>} : vector<16x4xf32>, vector<4x128xf32>, vector<16x128xf32> -> vector<16x128xf32>
    %101 = arith.addf %81, %100 : vector<16x128xf32>
    %102 = vector.broadcast %23 : vector<16x1xf32> to vector<16x128xf32>
    %103 = arith.mulf %101, %102 : vector<16x128xf32>
    %104 = vector.broadcast %24 : vector<16x1xf32> to vector<16x128xf32>
    %105 = arith.addf %103, %104 : vector<16x128xf32>
    %106 = arith.addf %105, %39 : vector<16x128xf32>
    %cst_42 = arith.constant 0.000000e+00 : f32
    %107 = vector.broadcast %cst_42 : f32 to vector<16x128xf32>
    %108 = arith.maximumf %106, %107 : vector<16x128xf32>
    %cst_43 = arith.constant dense<0.000000e+00> : vector<16x16xf32>
    %109 = tpu.matmul %108, %18, %cst_43 {dimension_numbers = #tpu.dot_dimension_numbers<[1], [0], [0], [1], [0, 0, 1, 1], [], []>} : vector<16x128xf32>, vector<128x16xf32>, vector<16x16xf32> -> vector<16x16xf32>
    %cst_44 = arith.constant 1.250000e-01 : f32
    %110 = vector.broadcast %cst_44 : f32 to vector<16x16xf32>
    %111 = arith.mulf %109, %110 : vector<16x16xf32>
    %cst_45 = arith.constant dense<0.000000e+00> : vector<16x256xf32>
    %112 = tpu.matmul %111, %37, %cst_45 {dimension_numbers = #tpu.dot_dimension_numbers<[1], [0], [0], [1], [0, 0, 1, 1], [], []>} : vector<16x16xf32>, vector<16x256xf32>, vector<16x256xf32> -> vector<16x256xf32>
    %113 = arith.mulf %112, %38 : vector<16x256xf32>
    %cst_46 = arith.constant dense<0.000000e+00> : vector<16x16xf32>
    %114 = tpu.matmul %113, %21, %cst_46 {dimension_numbers = #tpu.dot_dimension_numbers<[1], [0], [0], [1], [0, 0, 1, 1], [], []>} : vector<16x256xf32>, vector<256x16xf32>, vector<16x16xf32> -> vector<16x16xf32>
    %cst_47 = arith.constant dense<0.000000e+00> : vector<16xf32>
    %115 = vector.multi_reduction <add>, %114, %cst_47 [0] : vector<16x16xf32> to vector<16xf32>
    %116 = vector.shape_cast %115 : vector<16xf32> to vector<1x16xf32>
    %117 = vector.broadcast %30 : vector<1x1xf32> to vector<1x16xf32>
    %118 = arith.addf %116, %117 : vector<1x16xf32>
    %cst_48 = arith.constant 0.000000e+00 : f32
    %119 = vector.broadcast %cst_48 : f32 to vector<1x16xf32>
    %120 = arith.subf %119, %118 : vector<1x16xf32>
    %121 = math.exp %120 : vector<1x16xf32>
    %cst_49 = arith.constant 1.000000e+00 : f32
    %122 = vector.broadcast %cst_49 : f32 to vector<1x16xf32>
    %123 = arith.addf %122, %121 : vector<1x16xf32>
    %cst_50 = arith.constant 1.000000e+00 : f32
    %124 = vector.broadcast %cst_50 : f32 to vector<1x16xf32>
    %125 = arith.divf %124, %123 : vector<1x16xf32>
    %cst_51 = arith.constant dense<0.000000e+00> : vector<1x128xf32>
    %126 = tpu.matmul %125, %11, %cst_51 {dimension_numbers = #tpu.dot_dimension_numbers<[1], [0], [0], [1], [0, 0, 1, 1], [], []>} : vector<1x16xf32>, vector<16x128xf32>, vector<1x128xf32> -> vector<1x128xf32>
    %cst_52 = arith.constant 1.000000e+00 : f32
    %127 = vector.broadcast %cst_52 : f32 to vector<1x128xf32>
    %128 = arith.addf %127, %126 : vector<1x128xf32>
    %129 = vector.broadcast %128 : vector<1x128xf32> to vector<16x128xf32>
    %130 = arith.mulf %108, %129 : vector<16x128xf32>
    %cst_53 = arith.constant dense<0.000000e+00> : vector<16x8xf32>
    %131 = tpu.matmul %130, %19, %cst_53 {dimension_numbers = #tpu.dot_dimension_numbers<[1], [0], [0], [1], [0, 0, 1, 1], [], []>} : vector<16x128xf32>, vector<128x8xf32>, vector<16x8xf32> -> vector<16x8xf32>
    %cst_54 = arith.constant dense<0.000000e+00> : vector<16x128xf32>
    %132 = tpu.matmul %131, %13, %cst_54 {dimension_numbers = #tpu.dot_dimension_numbers<[1], [0], [0], [1], [0, 0, 1, 1], [], []>} : vector<16x8xf32>, vector<8x128xf32>, vector<16x128xf32> -> vector<16x128xf32>
    %133 = arith.mulf %132, %14 : vector<16x128xf32>
    %cst_55 = arith.constant dense<0.000000e+00> : vector<16x8xf32>
    %134 = tpu.matmul %133, %20, %cst_55 {dimension_numbers = #tpu.dot_dimension_numbers<[1], [0], [0], [1], [0, 0, 1, 1], [], []>} : vector<16x128xf32>, vector<128x8xf32>, vector<16x8xf32> -> vector<16x8xf32>
    %cst_56 = arith.constant dense<0.000000e+00> : vector<8xf32>
    %135 = vector.multi_reduction <add>, %134, %cst_56 [0] : vector<16x8xf32> to vector<8xf32>
    %136 = vector.shape_cast %135 : vector<8xf32> to vector<1x8xf32>
    %137 = vector.broadcast %31 : vector<1x1xf32> to vector<1x8xf32>
    %138 = arith.addf %136, %137 : vector<1x8xf32>
    %cst_57 = arith.constant 0.000000e+00 : f32
    %139 = vector.broadcast %cst_57 : f32 to vector<1x8xf32>
    %140 = arith.subf %139, %138 : vector<1x8xf32>
    %141 = math.exp %140 : vector<1x8xf32>
    %cst_58 = arith.constant 1.000000e+00 : f32
    %142 = vector.broadcast %cst_58 : f32 to vector<1x8xf32>
    %143 = arith.addf %142, %141 : vector<1x8xf32>
    %cst_59 = arith.constant 1.000000e+00 : f32
    %144 = vector.broadcast %cst_59 : f32 to vector<1x8xf32>
    %145 = arith.divf %144, %143 : vector<1x8xf32>
    %cst_60 = arith.constant dense<0.000000e+00> : vector<1x128xf32>
    %146 = tpu.matmul %145, %12, %cst_60 {dimension_numbers = #tpu.dot_dimension_numbers<[1], [0], [0], [1], [0, 0, 1, 1], [], []>} : vector<1x8xf32>, vector<8x128xf32>, vector<1x128xf32> -> vector<1x128xf32>
    %cst_61 = arith.constant 1.000000e+00 : f32
    %147 = vector.broadcast %cst_61 : f32 to vector<1x128xf32>
    %148 = arith.addf %147, %146 : vector<1x128xf32>
    %149 = vector.broadcast %148 : vector<1x128xf32> to vector<16x128xf32>
    %150 = arith.mulf %130, %149 : vector<16x128xf32>
    %cst_62 = arith.constant dense<0.000000e+00> : vector<16xf32>
    %151 = vector.multi_reduction <add>, %150, %cst_62 [1] : vector<16x128xf32> to vector<16xf32>
    %152 = vector.shape_cast %151 : vector<16xf32> to vector<16x1xf32>
    %cst_63 = arith.constant 1.280000e+02 : f32
    %153 = vector.broadcast %cst_63 : f32 to vector<16x1xf32>
    %154 = arith.divf %152, %153 : vector<16x1xf32>
    %cst_64 = arith.constant dense<0.000000e+00> : vector<8x1xf32>
    %155 = tpu.matmul %35, %154, %cst_64 {dimension_numbers = #tpu.dot_dimension_numbers<[1], [0], [0], [1], [0, 0, 1, 1], [], []>} : vector<8x16xf32>, vector<16x1xf32>, vector<8x1xf32> -> vector<8x1xf32>
    %156 = arith.addf %155, %36 : vector<8x1xf32>
    %cst_65 = arith.constant 0.000000e+00 : f32
    %157 = vector.broadcast %cst_65 : f32 to vector<8x1xf32>
    %158 = arith.maximumf %156, %157 : vector<8x1xf32>
    %cst_66 = arith.constant dense<0.000000e+00> : vector<16x1xf32>
    %159 = tpu.matmul %27, %158, %cst_66 {dimension_numbers = #tpu.dot_dimension_numbers<[1], [0], [0], [1], [0, 0, 1, 1], [], []>} : vector<16x8xf32>, vector<8x1xf32>, vector<16x1xf32> -> vector<16x1xf32>
    %160 = arith.addf %159, %28 : vector<16x1xf32>
    %cst_67 = arith.constant 0.000000e+00 : f32
    %161 = vector.broadcast %cst_67 : f32 to vector<16x1xf32>
    %162 = arith.subf %161, %160 : vector<16x1xf32>
    %163 = math.exp %162 : vector<16x1xf32>
    %cst_68 = arith.constant 1.000000e+00 : f32
    %164 = vector.broadcast %cst_68 : f32 to vector<16x1xf32>
    %165 = arith.addf %164, %163 : vector<16x1xf32>
    %cst_69 = arith.constant 1.000000e+00 : f32
    %166 = vector.broadcast %cst_69 : f32 to vector<16x1xf32>
    %167 = arith.divf %166, %165 : vector<16x1xf32>
    %cst_70 = arith.constant 1.000000e+00 : f32
    %168 = vector.broadcast %cst_70 : f32 to vector<16x1xf32>
    %169 = arith.addf %168, %167 : vector<16x1xf32>
    %170 = vector.broadcast %169 : vector<16x1xf32> to vector<16x128xf32>
    %171 = arith.mulf %150, %170 : vector<16x128xf32>
    %cst_71 = arith.constant 0.000000e+00 : f32
    %172 = vector.broadcast %cst_71 : f32 to vector<16x64xf32>
    %173 = tpu.concatenate %172, %171, %172 in 1 : vector<16x64xf32>, vector<16x128xf32>, vector<16x64xf32> -> vector<16x256xf32>
    %174 = vector.extract_strided_slice %173 {offsets = [0, 0], sizes = [16, 128], strides = [1, 1]} : vector<16x256xf32> to vector<16x128xf32>
    %175 = vector.extract_strided_slice %173 {offsets = [0, 16], sizes = [16, 128], strides = [1, 1]} : vector<16x256xf32> to vector<16x128xf32>
    %176 = vector.extract_strided_slice %173 {offsets = [0, 32], sizes = [16, 128], strides = [1, 1]} : vector<16x256xf32> to vector<16x128xf32>
    %177 = vector.extract_strided_slice %173 {offsets = [0, 48], sizes = [16, 128], strides = [1, 1]} : vector<16x256xf32> to vector<16x128xf32>
    %178 = vector.extract_strided_slice %173 {offsets = [0, 64], sizes = [16, 128], strides = [1, 1]} : vector<16x256xf32> to vector<16x128xf32>
    %179 = vector.extract_strided_slice %173 {offsets = [0, 80], sizes = [16, 128], strides = [1, 1]} : vector<16x256xf32> to vector<16x128xf32>
    %180 = vector.extract_strided_slice %173 {offsets = [0, 96], sizes = [16, 128], strides = [1, 1]} : vector<16x256xf32> to vector<16x128xf32>
    %181 = vector.extract_strided_slice %173 {offsets = [0, 112], sizes = [16, 128], strides = [1, 1]} : vector<16x256xf32> to vector<16x128xf32>
    %182 = vector.extract_strided_slice %173 {offsets = [0, 128], sizes = [16, 128], strides = [1, 1]} : vector<16x256xf32> to vector<16x128xf32>
    %183 = tpu.concatenate %174, %175, %176, %177, %178, %179, %180, %181 in 0 : vector<16x128xf32>, vector<16x128xf32>, vector<16x128xf32>, vector<16x128xf32>, vector<16x128xf32>, vector<16x128xf32>, vector<16x128xf32>, vector<16x128xf32> -> vector<128x128xf32>
    %cst_72 = arith.constant dense<0.000000e+00> : vector<16x128xf32>
    %184 = tpu.matmul %15, %183, %cst_72 {dimension_numbers = #tpu.dot_dimension_numbers<[1], [0], [0], [1], [0, 0, 1, 1], [], []>} : vector<16x128xf32>, vector<128x128xf32>, vector<16x128xf32> -> vector<16x128xf32>
    %cst_73 = arith.constant dense<0.000000e+00> : vector<16x128xf32>
    %185 = tpu.matmul %32, %182, %cst_73 {dimension_numbers = #tpu.dot_dimension_numbers<[1], [0], [0], [1], [0, 0, 1, 1], [], []>} : vector<16x16xf32>, vector<16x128xf32>, vector<16x128xf32> -> vector<16x128xf32>
    %186 = arith.addf %184, %185 : vector<16x128xf32>
    %187 = vector.broadcast %25 : vector<16x1xf32> to vector<16x128xf32>
    %188 = arith.mulf %186, %187 : vector<16x128xf32>
    %189 = vector.broadcast %26 : vector<16x1xf32> to vector<16x128xf32>
    %190 = arith.addf %188, %189 : vector<16x128xf32>
    %191 = arith.addf %190, %40 : vector<16x128xf32>
    %cst_74 = arith.constant 0.000000e+00 : f32
    %192 = vector.broadcast %cst_74 : f32 to vector<16x128xf32>
    %193 = arith.maximumf %191, %192 : vector<16x128xf32>
    %c0_75 = arith.constant 0 : index
    %c0_76 = arith.constant 0 : index
    %194 = vector.load %arg4[%c0_75, %c0_76] : memref<16x128xf32, #tpu.memory_space<vmem>>, vector<16x128xf32>
    tpu.vector_store %arg4[%c0_75, %c0_76], %193 {strides = array<i32>} : memref<16x128xf32, #tpu.memory_space<vmem>>, vector<16x128xf32>,
    return
  }
  func.func @transform_0(%arg0: i32) -> (i32, i32) {
    %c0_i32 = arith.constant 0 : i32
    %c0_i32_0 = arith.constant 0 : i32
    return %c0_i32, %arg0 : i32, i32
  }
  func.func @transform_1(%arg0: i32) -> (i32, i32) {
    %c0_i32 = arith.constant 0 : i32
    %c0_i32_0 = arith.constant 0 : i32
    %c0_i32_1 = arith.constant 0 : i32
    return %c0_i32, %c0_i32_0 : i32, i32
  }
  func.func @transform_2(%arg0: i32) -> (i32, i32) {
    %c0_i32 = arith.constant 0 : i32
    %c0_i32_0 = arith.constant 0 : i32
    %c0_i32_1 = arith.constant 0 : i32
    return %c0_i32, %c0_i32_0 : i32, i32
  }
  func.func @transform_3(%arg0: i32) -> (i32, i32) {
    %c0_i32 = arith.constant 0 : i32
    %c0_i32_0 = arith.constant 0 : i32
    return %c0_i32, %arg0 : i32, i32
  }
}

</mosaic_0001>

<llo_original>
// kernel: tpu_custom_call.1
$region0: #{tpu_custom_call.1}
  #allocation0 [shape = 'u32[]', space=smem, size = 0x4, offset = 0x4, fixed_abs, tag = 'smem constant byte address 0x4 - core index']
  #allocation1 [shape = 'u32[144,128]{1,0:T(1,128)}', space=vmem, size = 0x12000, scoped, tag = 'internal scratch']
  %s0 = inlined_call_operand.hbm [shape: f32[4,256], index: 0, kind: input, shape index: {}]
  %s1 = inlined_call_operand.hbm [shape: f32[728,128], index: 1, kind: input, shape index: {}]
  %s2 = inlined_call_operand.hbm [shape: f32[32,256], index: 2, kind: input, shape index: {}]
  %s3 = inlined_call_operand.hbm [shape: f32[16,256], index: 3, kind: output, shape index: {}]
  %s4 = sld [smem:[#allocation0]]
  $region57: #{tpu_custom_call.1} parent=0
    _
  %s6 = ssub.s32 1, %s4
  %s7 = scalar_select 0, %s6, %s4
  $region1: #{tpu_custom_call.1} parent=0
    #allocation2 [shape = 'u8[4096]{0}', space=vmem, size = 0x1000, scoped, tag = 'input window, operand 0']
    #allocation3 [shape = 's32[2]{0}', space=sflag, size = 0x8, scoped, tag = 'scoped memory for tpu_custom_call.1']
    #allocation4 [shape = 's32[2]{0}', space=sflag, size = 0x8, scoped, tag = 'scoped memory for tpu_custom_call.1']
    #allocation5 [shape = 'u8[372736]{0}', space=vmem, size = 0x5b000, scoped, tag = 'input window, operand 1, single buffered']
    #allocation6 [shape = 's32[1]{0}', space=sflag, size = 0x4, scoped, tag = 'scoped memory for tpu_custom_call.1']
    #allocation7 [shape = 'u8[32768]{0}', space=vmem, size = 0x8000, scoped, tag = 'input window, operand 2, single buffered']
    #allocation8 [shape = 'u8[16384]{0}', space=vmem, size = 0x4000, scoped, tag = 'output window, operand 0']
    %8 = vsyncpa [#allocation3], 0
    %s9 = scalar_lea.sflag [#allocation3], 1
    %10 = vsyncpa %s9, 0
    %11 = vsyncpa [#allocation6], 0
    %12 = vsyncpa [#allocation4], 0
    %s13 = scalar_lea.sflag [#allocation4], 1
    %14 = vsyncpa %s13, 0
    loop: start=0, step=1, limit=4
    $region2: #{tpu_custom_call.1} parent=1 // loop_pre_header
      _
    $region3: #{tpu_custom_call.1} parent=1 // loop_header
      %s16 = sphi 0, %s20
      %p17 = scmp.ge.s32.totalorder %s16, 4
      %s26 = sphi 0, %s28
      %s29 = sphi 0, %s26
      %s30 = sphi 0, %s29
      %s46 = sphi 0, %s30
      %s50 = sphi 0, %s50
      %s52 = sphi 0, %s50
      %s53 = sphi 0, %s52
      %s67 = sphi 0, %s53
      %s71 = sphi 0, %s71
      %s73 = sphi 0, %s71
      %s74 = sphi 0, %s73
      %s88 = sphi 0, %s74
      %s94 = sphi 0, %s96
      %s97 = sphi 0, %s94
      %s98 = sphi 0, %s97
      %s114 = sphi 0, %s98
    $region4: #{tpu_custom_call.1} parent=1 // loop_header_branch
      %19 = sbr.rel (%p17) target = $region8
    $region5: #{tpu_custom_call.1} parent=1 // loop_body
      %s21 = ssub.s32 %s16, 1
      %s22 = ssub.s32 %s16, 2
      %s23 = sadd.s32 %s16, 1
      %s24 = ssub.s32 %s16, %s23
      %p25 = scmp.eq.s32.totalorder %s24, 0
      %s27 = sadd.s32 %s26, 1
      %s28 = scalar_select %p25, %s26, %s27
      %p31 = pneg %p25
      %p32 = scmp.eq.s32.totalorder %s16, 1
      %p33 = por %p31, %p32
      %p34 = scmp.ne.s32.totalorder %s26, %s29
      %p35 = scmp.eq.s32.totalorder %s16, 0
      %p36 = por %p34, %p35
      %p37 = scmp.ne.s32.totalorder %s26, %s29
      %p38 = scmp.eq.s32.totalorder %s21, 1
      %p39 = por %p37, %p38
      %p40 = scmp.ne.s32.totalorder %s29, %s30
      %p41 = scmp.eq.s32.totalorder %s21, 0
      %p42 = por %p40, %p41
      %p43 = scmp.ne.s32.totalorder %s29, %s30
      %p44 = scmp.eq.s32.totalorder %s22, 1
      %p45 = por %p43, %p44
      %p47 = scmp.ne.s32.totalorder %s30, %s46
      %p48 = scmp.eq.s32.totalorder %s22, 0
      %p49 = por %p47, %p48
      %s51 = sadd.s32 %s50, 1
      %p54 = scmp.eq.s32.totalorder %s16, 1
      %p55 = scmp.ne.s32.totalorder %s50, %s52
      %p56 = scmp.eq.s32.totalorder %s16, 0
      %p57 = por %p55, %p56
      %p58 = scmp.ne.s32.totalorder %s50, %s52
      %p59 = scmp.eq.s32.totalorder %s21, 1
      %p60 = por %p58, %p59
      %p61 = scmp.ne.s32.totalorder %s52, %s53
      %p62 = scmp.eq.s32.totalorder %s21, 0
      %p63 = por %p61, %p62
      %p64 = scmp.ne.s32.totalorder %s52, %s53
      %p65 = scmp.eq.s32.totalorder %s22, 1
      %p66 = por %p64, %p65
      %p68 = scmp.ne.s32.totalorder %s53, %s67
      %p69 = scmp.eq.s32.totalorder %s22, 0
      %p70 = por %p68, %p69
      %s72 = sadd.s32 %s71, 1
      %p75 = scmp.eq.s32.totalorder %s16, 1
      %p76 = scmp.ne.s32.totalorder %s71, %s73
      %p77 = scmp.eq.s32.totalorder %s16, 0
      %p78 = por %p76, %p77
      %p79 = scmp.ne.s32.totalorder %s71, %s73
      %p80 = scmp.eq.s32.totalorder %s21, 1
      %p81 = por %p79, %p80
      %p82 = scmp.ne.s32.totalorder %s73, %s74
      %p83 = scmp.eq.s32.totalorder %s21, 0
      %p84 = por %p82, %p83
      %p85 = scmp.ne.s32.totalorder %s73, %s74
      %p86 = scmp.eq.s32.totalorder %s22, 1
      %p87 = por %p85, %p86
      %p89 = scmp.ne.s32.totalorder %s74, %s88
      %p90 = scmp.eq.s32.totalorder %s22, 0
      %p91 = por %p89, %p90
      %s92 = ssub.s32 %s16, %s23
      %p93 = scmp.eq.s32.totalorder %s92, 0
      %s95 = sadd.s32 %s94, 1
      %s96 = scalar_select %p93, %s94, %s95
      %p99 = pneg %p93
      %p100 = scmp.eq.s32.totalorder %s16, 1
      %p101 = por %p99, %p100
      %p102 = scmp.ne.s32.totalorder %s94, %s97
      %p103 = scmp.eq.s32.totalorder %s16, 0
      %p104 = por %p102, %p103
      %p105 = scmp.ne.s32.totalorder %s94, %s97
      %p106 = scmp.eq.s32.totalorder %s21, 1
      %p107 = por %p105, %p106
      %p108 = scmp.ne.s32.totalorder %s97, %s98
      %p109 = scmp.eq.s32.totalorder %s21, 0
      %p110 = por %p108, %p109
      %p111 = scmp.ne.s32.totalorder %s97, %s98
      %p112 = scmp.eq.s32.totalorder %s22, 1
      %p113 = por %p111, %p112
      %p115 = scmp.ne.s32.totalorder %s98, %s114
      %p116 = scmp.eq.s32.totalorder %s22, 0
      %p117 = por %p115, %p116
      %p118 = scmp.le.s32.totalorder 1, %s16
      %p119 = scmp.lt.s32.totalorder %s16, 3
      %p120 = pnand %p118, %p119
      %p121 = pneg %p120
      // Predicated region
      $region9: #{tpu_custom_call.1} parent=5 // pred_check
        _
      $region10: #{tpu_custom_call.1} parent=5 // pred_check_branch
        %123 = sbr.rel (%p120) target = $region12
      $region11: #{tpu_custom_call.1} parent=5 // pred_region
        %s124 = ssub.s32 %s16, 1
        // Predicated region
        $region13: #{tpu_custom_call.1} parent=11 // pred_check
          %p125 = pneg %p63
        $region14: #{tpu_custom_call.1} parent=11 // pred_check_branch
          %127 = sbr.rel (%p125) target = $region16
        $region15: #{tpu_custom_call.1} parent=11 // pred_region
          %s129 = ssub.s32 11648, 11648
          %130 = vsyncadd [#allocation6], %s129
          %s131 = sshll.u32 [#allocation5], 4
          %s132 = int_to_ptr.vmem [resolvable:$true] %s131
          %137 = dma.hbm_to_vmem [thread:$0]  %s1, 11648, %s132, [#allocation6], 128, 128, 8
        $region16: #{tpu_custom_call.1} parent=11 // pred_fallthru
          _
        // Predicated region
        $region17: #{tpu_custom_call.1} parent=11 // pred_check
          %p138 = pneg %p84
        $region18: #{tpu_custom_call.1} parent=11 // pred_check_branch
          %140 = sbr.rel (%p138) target = $region20
        $region19: #{tpu_custom_call.1} parent=11 // pred_region
          %s142 = ssub.s32 1024, 1024
          %143 = vsyncadd [#allocation6], %s142
          %s144 = sshll.u32 [#allocation7], 4
          %s145 = int_to_ptr.vmem [resolvable:$true] %s144
          %150 = dma.hbm_to_vmem [thread:$0]  %s2, 1024, %s145, [#allocation6], 256, 256, 16
        $region20: #{tpu_custom_call.1} parent=11 // pred_fallthru
          _
      $region12: #{tpu_custom_call.1} parent=5 // pred_fallthru
        _
      %p151 = scmp.lt.s32.totalorder %s16, 2
      // Predicated region
      $region21: #{tpu_custom_call.1} parent=5 // pred_check
        %p152 = pneg %p151
      $region22: #{tpu_custom_call.1} parent=5 // pred_check_branch
        %154 = sbr.rel (%p152) target = $region24
      $region23: #{tpu_custom_call.1} parent=5 // pred_region
        // Predicated region
        $region25: #{tpu_custom_call.1} parent=23 // pred_check
          %p155 = pneg %p36
        $region26: #{tpu_custom_call.1} parent=23 // pred_check_branch
          %157 = sbr.rel (%p155) target = $region28
        $region27: #{tpu_custom_call.1} parent=23 // pred_region
          %s158 = sand.u32 %s26, 1
          %s159 = scalar_lea.sflag [#allocation3], %s158
          %s160 = sand.u32 %s26, 1
          %s161 = smul.addr %s160, 4
          %s162 = scalar_lea.vmem [#allocation2], %s161
          %s164 = ssub.s32 64, 64
          %165 = vsyncadd %s159, %s164
          %s166 = smul.addr %s16, 64
          %s167 = scalar_lea.hbm %s0, %s166
          %s169 = sshll.u32 %s162, 4
          %s170 = int_to_ptr.vmem [resolvable:$true] %s169
          %172 = dma.hbm_to_vmem [thread:$0]  %s167, 64, %s170, %s159
        $region28: #{tpu_custom_call.1} parent=23 // pred_fallthru
          _
      $region24: #{tpu_custom_call.1} parent=5 // pred_fallthru
        _
      %p173 = scmp.le.s32.totalorder 1, %s16
      %p174 = scmp.lt.s32.totalorder %s16, 3
      %p175 = pnand %p173, %p174
      %p176 = pneg %p175
      // Predicated region
      $region29: #{tpu_custom_call.1} parent=5 // pred_check
        _
      $region30: #{tpu_custom_call.1} parent=5 // pred_check_branch
        %178 = sbr.rel (%p175) target = $region32
      $region31: #{tpu_custom_call.1} parent=5 // pred_region
        %s179 = ssub.s32 %s16, 1
        %s180 = sand.u32 %s29, 1
        %s181 = scalar_lea.sflag [#allocation3], %s180
        %s182 = sand.u32 %s29, 1
        %s183 = smul.addr %s182, 4
        %s184 = scalar_lea.vmem [#allocation2], %s183
        // Predicated region
        $region33: #{tpu_custom_call.1} parent=31 // pred_check
          %p185 = pneg %p42
        $region34: #{tpu_custom_call.1} parent=31 // pred_check_branch
          %187 = sbr.rel (%p185) target = $region36
        $region35: #{tpu_custom_call.1} parent=31 // pred_region
          %188 = dma.done %s181, 64
        $region36: #{tpu_custom_call.1} parent=31 // pred_fallthru
          _
        // Predicated region
        $region37: #{tpu_custom_call.1} parent=31 // pred_check
          %p189 = pneg %p63
        $region38: #{tpu_custom_call.1} parent=31 // pred_check_branch
          %191 = sbr.rel (%p189) target = $region40
        $region39: #{tpu_custom_call.1} parent=31 // pred_region
          %192 = dma.done [#allocation6], 11648
        $region40: #{tpu_custom_call.1} parent=31 // pred_fallthru
          _
        // Predicated region
        $region41: #{tpu_custom_call.1} parent=31 // pred_check
          %p193 = pneg %p84
        $region42: #{tpu_custom_call.1} parent=31 // pred_check_branch
          %195 = sbr.rel (%p193) target = $region44
        $region43: #{tpu_custom_call.1} parent=31 // pred_region
          %196 = dma.done [#allocation6], 1024
        $region44: #{tpu_custom_call.1} parent=31 // pred_fallthru
          _
        %s197 = sand.u32 %s29, 1
        %s198 = scalar_lea.sflag [#allocation3], %s197
        %s199 = sand.u32 %s29, 1
        %s200 = smul.addr %s199, 4
        %s201 = scalar_lea.vmem [#allocation2], %s200
        %p202 = pneg %p42
        %p203 = pneg %p39
        %p204 = pneg %p63
        %p205 = pneg %p60
        %p206 = pneg %p84
        %p207 = pneg %p81
        %p208 = pneg %p110
        %p209 = pneg %p107
        %s210 = sand.u32 %s97, 1
        %s211 = scalar_lea.sflag [#allocation4], %s210
        %s212 = sand.u32 %s97, 1
        %s213 = smul.addr %s212, 16
        %s214 = scalar_lea.vmem [#allocation8], %s213
        %v215 = vld [vmem:[%s184] sm:$0xf]
        %v216 = vld [vmem:[#allocation5 + $0xc0] sm:$0xff]
        %v217 = vld [vmem:[#allocation5 + $0xc8] sm:$0xff]
        %v218 = vld [vmem:[#allocation5 + $0xd0] sm:$0xff]
        %v219 = vld [vmem:[#allocation5 + $0xd8] sm:$0xff]
        %v220 = vld [vmem:[#allocation5 + $0xe0] sm:$0xff]
        %v221 = vld [vmem:[#allocation5 + $0xe8] sm:$0xff]
        %v222 = vld [vmem:[#allocation5 + $0xf0] sm:$0xff]
        %v223 = vld [vmem:[#allocation5 + $0xf8] sm:$0xff]
        %v224 = vld [vmem:[#allocation5 + $0x100] sm:$0xff]
        %v225 = vld [vmem:[#allocation5 + $0x108] sm:$0xff]
        %vm226 = vcmask 31744
        %v228 = vsel %vm226, %v216, 0
        %v231 = vsel %vm226, %v217, 0
        %v234 = vsel %vm226, %v218, 0
        %v237 = vsel %vm226, %v219, 0
        %v240 = vsel %vm226, %v220, 0
        %v243 = vsel %vm226, %v221, 0
        %v246 = vsel %vm226, %v222, 0
        %v249 = vsel %vm226, %v223, 0
        %v252 = vsel %vm226, %v224, 0
        %v255 = vsel %vm226, %v225, 0
        %vm257 = vcmask 1043456
        %v259 = vsel %vm257, %v215, 0
        %261 = vmatprep.subr.mxu0 0.0
        %262 = vmatpush1.msra.mxu0 %v259
        %263 = vmatprep.subr.mxu0 0.0
        %264 = vmatpush1.msra.mxu0 0.0
        %265 = vmatprep.subr.mxu0 0.0
        %266 = vmatpush1.msra.mxu0 0.0
        %267 = vmatprep.subr.mxu0 0.0
        %268 = vmatpush1.msra.mxu0 0.0
        %269 = vmatprep.subr.mxu0 0.0
        %270 = vmatpush1.msra.mxu0 0.0
        %271 = vmatprep.subr.mxu0 0.0
        %272 = vmatpush1.msra.mxu0 0.0
        %273 = vmatprep.subr.mxu0 0.0
        %274 = vmatpush1.msra.mxu0 0.0
        %275 = vmatprep.subr.mxu0 0.0
        %276 = vmatpush1.msra.mxu0 0.0
        %277 = vmatprep.subr.mxu0 0.0
        %278 = vmatpush1.msra.mxu0 0.0
        %279 = vmatprep.subr.mxu0 0.0
        %280 = vmatpush1.msra.mxu0 0.0
        %281 = vmatprep.subr.mxu0 0.0
        %282 = vmatpush1.msra.mxu0 0.0
        %283 = vmatprep.subr.mxu0 0.0
        %284 = vmatpush1.msra.mxu0 0.0
        %285 = vmatprep.subr.mxu0 0.0
        %286 = vmatpush1.msra.mxu0 0.0
        %287 = vmatprep.subr.mxu0 0.0
        %288 = vmatpush1.msra.mxu0 0.0
        %289 = vmatprep.subr.mxu0 0.0
        %290 = vmatpush1.msra.mxu0 0.0
        %291 = vmatprep.subr.mxu0 0.0
        %292 = vmatpush1.msra.mxu0 0.0
        %293 = vmatprep.subr.mxu0 0.0
        %294 = vmatpush1.msra.mxu0 0.0
        %295 = vmatprep.subr.mxu0 0.0
        %296 = vmatpush1.msra.mxu0 0.0
        %297 = vmatprep.subr.mxu0 0.0
        %298 = vmatpush1.msra.mxu0 0.0
        %299 = vmatprep.subr.mxu0 0.0
        %300 = vmatpush1.msra.mxu0 0.0
        %301 = vmatprep.subr.mxu0 0.0
        %302 = vmatpush1.msra.mxu0 0.0
        %303 = vmatprep.subr.mxu0 0.0
        %304 = vmatpush1.msra.mxu0 0.0
        %305 = vmatprep.subr.mxu0 0.0
        %306 = vmatpush1.msra.mxu0 0.0
        %307 = vmatprep.subr.mxu0 0.0
        %308 = vmatpush1.msra.mxu0 0.0
        %309 = vmatprep.subr.mxu0 0.0
        %310 = vmatpush1.msra.mxu0 0.0
        %311 = vmatprep.subr.mxu0 0.0
        %312 = vmatpush1.msra.mxu0 0.0
        %313 = vmatprep.subr.mxu0 0.0
        %314 = vmatpush1.msra.mxu0 0.0
        %315 = vmatprep.subr.mxu0 0.0
        %316 = vmatpush1.msra.mxu0 0.0
        %317 = vmatprep.subr.mxu0 0.0
        %318 = vmatpush1.msra.mxu0 0.0
        %319 = vmatprep.subr.mxu0 0.0
        %320 = vmatpush1.msra.mxu0 0.0
        %321 = vmatprep.subr.mxu0 0.0
        %322 = vmatpush1.msra.mxu0 0.0
        %323 = vmatprep.subr.mxu0 0.0
        %324 = vmatpush1.msra.mxu0 0.0
        %325 = vmatprep.mubr.f32.mxu0 0.0
        %326 = vmatmul.mubr.f32.gmra.mrb[0].mxu0 %v228
        %v327 = vpop.f32.mrb[0].mxu0
        %v328 = vadd.f32 0.0, %v327
        %v329 = vpop.f32.mrb[0].mxu0
        %330 = vmatprep.mubr.f32.mxu0 0.0
        %331 = vmatmul.mubr.f32.gmra.mrb[0].mxu0 %v231
        %v332 = vpop.f32.mrb[0].mxu0
        %v333 = vadd.f32 0.0, %v332
        %v334 = vpop.f32.mrb[0].mxu0
        %335 = vmatprep.mubr.f32.mxu0 0.0
        %336 = vmatmul.mubr.f32.gmra.mrb[0].mxu0 %v234
        %v337 = vpop.f32.mrb[0].mxu0
        %v338 = vadd.f32 0.0, %v337
        %v339 = vpop.f32.mrb[0].mxu0
        %340 = vmatprep.mubr.f32.mxu0 0.0
        %341 = vmatmul.mubr.f32.gmra.mrb[0].mxu0 %v237
        %v342 = vpop.f32.mrb[0].mxu0
        %v343 = vadd.f32 0.0, %v342
        %v344 = vpop.f32.mrb[0].mxu0
        %345 = vmatprep.mubr.f32.mxu0 0.0
        %346 = vmatmul.mubr.f32.gmra.mrb[0].mxu0 %v240
        %v347 = vpop.f32.mrb[0].mxu0
        %v348 = vadd.f32 0.0, %v347
        %v349 = vpop.f32.mrb[0].mxu0
        %350 = vmatprep.mubr.f32.mxu0 0.0
        %351 = vmatmul.mubr.f32.gmra.mrb[0].mxu0 %v243
        %v352 = vpop.f32.mrb[0].mxu0
        %v353 = vadd.f32 0.0, %v352
        %v354 = vpop.f32.mrb[0].mxu0
        %355 = vmatprep.mubr.f32.mxu0 0.0
        %356 = vmatmul.mubr.f32.gmra.mrb[0].mxu0 %v246
        %v357 = vpop.f32.mrb[0].mxu0
        %v358 = vadd.f32 0.0, %v357
        %v359 = vpop.f32.mrb[0].mxu0
        %360 = vmatprep.mubr.f32.mxu0 0.0
        %361 = vmatmul.mubr.f32.gmra.mrb[0].mxu0 %v249
        %v362 = vpop.f32.mrb[0].mxu0
        %v363 = vadd.f32 0.0, %v362
        %v364 = vpop.f32.mrb[0].mxu0
        %365 = vmatprep.mubr.f32.mxu0 0.0
        %366 = vmatmul.mubr.f32.gmra.mrb[0].mxu0 %v252
        %v367 = vpop.f32.mrb[0].mxu0
        %v368 = vadd.f32 0.0, %v367
        %v369 = vpop.f32.mrb[0].mxu0
        %370 = vmatprep.mubr.f32.mxu0 0.0
        %371 = vmatmul.mubr.f32.gmra.mrb[0].mxu0 %v255
        %v372 = vpop.f32.mrb[0].mxu0
        %v373 = vadd.f32 0.0, %v372
        %v374 = vpop.f32.mrb[0].mxu0
        %375 = vdwg.mxu0
        %376 = vset.pattern.permute.xlu0 4
        %377 = vperm.xlu0 %376, %v216
        %v378 = vpop.permute.xlu0 %377
        %380 = vset.pattern.permute.xlu0 4
        %381 = vperm.xlu0 %380, %v217
        %v382 = vpop.permute.xlu0 %381
        %384 = vset.pattern.permute.xlu0 4
        %385 = vperm.xlu0 %384, %v218
        %v386 = vpop.permute.xlu0 %385
        %388 = vset.pattern.permute.xlu0 4
        %389 = vperm.xlu0 %388, %v219
        %v390 = vpop.permute.xlu0 %389
        %392 = vset.pattern.permute.xlu0 4
        %393 = vperm.xlu0 %392, %v220
        %v394 = vpop.permute.xlu0 %393
        %396 = vset.pattern.permute.xlu0 4
        %397 = vperm.xlu0 %396, %v221
        %v398 = vpop.permute.xlu0 %397
        %400 = vset.pattern.permute.xlu0 4
        %401 = vperm.xlu0 %400, %v222
        %v402 = vpop.permute.xlu0 %401
        %404 = vset.pattern.permute.xlu0 4
        %405 = vperm.xlu0 %404, %v223
        %v406 = vpop.permute.xlu0 %405
        %408 = vset.pattern.permute.xlu0 4
        %409 = vperm.xlu0 %408, %v224
        %v410 = vpop.permute.xlu0 %409
        %412 = vset.pattern.permute.xlu0 4
        %413 = vperm.xlu0 %412, %v225
        %v414 = vpop.permute.xlu0 %413
        %v416 = vmul.f32 %v328, %v378
        %v417 = vmul.f32 %v333, %v382
        %v418 = vmul.f32 %v338, %v386
        %v419 = vmul.f32 %v343, %v390
        %v420 = vmul.f32 %v348, %v394
        %v421 = vmul.f32 %v353, %v398
        %v422 = vmul.f32 %v358, %v402
        %v423 = vmul.f32 %v363, %v406
        %v424 = vmul.f32 %v368, %v410
        %v425 = vmul.f32 %v373, %v414
        %426 = vset.pattern.permute.xlu0 5
        %427 = vperm.xlu0 %426, %v216
        %v428 = vpop.permute.xlu0 %427
        %430 = vset.pattern.permute.xlu0 5
        %431 = vperm.xlu0 %430, %v217
        %v432 = vpop.permute.xlu0 %431
        %434 = vset.pattern.permute.xlu0 5
        %435 = vperm.xlu0 %434, %v218
        %v436 = vpop.permute.xlu0 %435
        %438 = vset.pattern.permute.xlu0 5
        %439 = vperm.xlu0 %438, %v219
        %v440 = vpop.permute.xlu0 %439
        %442 = vset.pattern.permute.xlu0 5
        %443 = vperm.xlu0 %442, %v220
        %v444 = vpop.permute.xlu0 %443
        %446 = vset.pattern.permute.xlu0 5
        %447 = vperm.xlu0 %446, %v221
        %v448 = vpop.permute.xlu0 %447
        %450 = vset.pattern.permute.xlu0 5
        %451 = vperm.xlu0 %450, %v222
        %v452 = vpop.permute.xlu0 %451
        %454 = vset.pattern.permute.xlu0 5
        %455 = vperm.xlu0 %454, %v223
        %v456 = vpop.permute.xlu0 %455
        %458 = vset.pattern.permute.xlu0 5
        %459 = vperm.xlu0 %458, %v224
        %v460 = vpop.permute.xlu0 %459
        %462 = vset.pattern.permute.xlu0 5
        %463 = vperm.xlu0 %462, %v225
        %v464 = vpop.permute.xlu0 %463
        %v466 = vadd.f32 %v416, %v428
        %v467 = vadd.f32 %v417, %v432
        %v468 = vadd.f32 %v418, %v436
        %v469 = vadd.f32 %v419, %v440
        %v470 = vadd.f32 %v420, %v444
        %v471 = vadd.f32 %v421, %v448
        %v472 = vadd.f32 %v422, %v452
        %v473 = vadd.f32 %v423, %v456
        %v474 = vadd.f32 %v424, %v460
        %v475 = vadd.f32 %v425, %v464
        %v476 = vld [vmem:[#allocation5] sm:$0xff]
        %v477 = vld [vmem:[#allocation5 + $0x8] sm:$0xff]
        %v478 = vld [vmem:[#allocation5 + $0x10] sm:$0xff]
        %v479 = vld [vmem:[#allocation5 + $0x18] sm:$0xff]
        %v480 = vld [vmem:[#allocation5 + $0x20] sm:$0xff]
        %v481 = vld [vmem:[#allocation5 + $0x28] sm:$0xff]
        %v482 = vld [vmem:[#allocation5 + $0x30] sm:$0xff]
        %v483 = vld [vmem:[#allocation5 + $0x38] sm:$0xff]
        %v484 = vld [vmem:[#allocation5 + $0x40] sm:$0xff]
        %v485 = vld [vmem:[#allocation5 + $0x48] sm:$0xff]
        %v486 = vld [vmem:[#allocation5 + $0x50] sm:$0xff]
        %v487 = vld [vmem:[#allocation5 + $0x58] sm:$0xff]
        %v488 = vld [vmem:[#allocation5 + $0x60] sm:$0xff]
        %v489 = vld [vmem:[#allocation5 + $0x68] sm:$0xff]
        %v490 = vld [vmem:[#allocation5 + $0x70] sm:$0xff]
        %v491 = vld [vmem:[#allocation5 + $0x78] sm:$0xff]
        %v492 = vld [vmem:[#allocation5 + $0x80] sm:$0xff]
        %v493 = vld [vmem:[#allocation5 + $0x88] sm:$0xff]
        %v494 = vld [vmem:[#allocation5 + $0x90] sm:$0xff]
        %v495 = vld [vmem:[#allocation5 + $0x98] sm:$0xff]
        %v496 = vld [vmem:[#allocation5 + $0xa0] sm:$0xff]
        %v497 = vld [vmem:[#allocation5 + $0xa8] sm:$0xff]
        %v498 = vld [vmem:[#allocation5 + $0xb0] sm:$0xff]
        %v499 = vld [vmem:[#allocation5 + $0xb8] sm:$0xff]
        %v500 = vld [vmem:[#allocation5 + $0x110] sm:$0xff]
        %v501 = vld [vmem:[#allocation5 + $0x118] sm:$0xff]
        %v502 = vld [vmem:[#allocation5 + $0x120] sm:$0xff]
        %v503 = vld [vmem:[#allocation5 + $0x128] sm:$0xff]
        %v504 = vld [vmem:[#allocation5 + $0x130] sm:$0xff]
        %v505 = vld [vmem:[#allocation5 + $0x138] sm:$0xff]
        %v506 = vld [vmem:[#allocation5 + $0x140] sm:$0xff]
        %v507 = vld [vmem:[#allocation5 + $0x148] sm:$0xff]
        %v508 = vld [vmem:[#allocation5 + $0x150] sm:$0xff]
        %v509 = vld [vmem:[#allocation5 + $0x158] sm:$0xff]
        %v510 = vld [vmem:[#allocation5 + $0x160] sm:$0xff]
        %v511 = vld [vmem:[#allocation5 + $0x168] sm:$0xff]
        %v512 = vld [vmem:[#allocation5 + $0x170] sm:$0xff]
        %v513 = vld [vmem:[#allocation5 + $0x178] sm:$0xff]
        %v514 = vld [vmem:[#allocation5 + $0x180] sm:$0xff]
        %v515 = vld [vmem:[#allocation5 + $0x188] sm:$0xff]
        %v516 = vld [vmem:[#allocation5 + $0x190] sm:$0xff]
        %v517 = vld [vmem:[#allocation5 + $0x198] sm:$0xff]
        %v518 = vld [vmem:[#allocation5 + $0x1a0] sm:$0xff]
        %v519 = vld [vmem:[#allocation5 + $0x1a8] sm:$0xff]
        %v520 = vld [vmem:[#allocation5 + $0x1b0] sm:$0xff]
        %v521 = vld [vmem:[#allocation5 + $0x1b8] sm:$0xff]
        %v522 = vld [vmem:[#allocation5 + $0x1c0] sm:$0xff]
        %v523 = vld [vmem:[#allocation5 + $0x1c8] sm:$0xff]
        %v524 = vld [vmem:[#allocation5 + $0x1d0] sm:$0xff]
        %v525 = vld [vmem:[#allocation5 + $0x1d8] sm:$0xff]
        %v526 = vld [vmem:[#allocation5 + $0x1e0] sm:$0xff]
        %v527 = vld [vmem:[#allocation5 + $0x1e8] sm:$0xff]
        %v528 = vld [vmem:[#allocation5 + $0x1f0] sm:$0xff]
        %v529 = vld [vmem:[#allocation5 + $0x1f8] sm:$0xff]
        %v530 = vld [vmem:[#allocation5 + $0x200] sm:$0xff]
        %v531 = vld [vmem:[#allocation5 + $0x208] sm:$0xff]
        %v532 = vld [vmem:[#allocation5 + $0x210] sm:$0xff]
        %v533 = vld [vmem:[#allocation5 + $0x218] sm:$0xff]
        %v534 = vld [vmem:[#allocation5 + $0x220] sm:$0xff]
        %v535 = vld [vmem:[#allocation5 + $0x228] sm:$0xff]
        %v536 = vld [vmem:[#allocation5 + $0x230] sm:$0xff]
        %v537 = vld [vmem:[#allocation5 + $0x238] sm:$0xff]
        %v538 = vld [vmem:[#allocation5 + $0x240] sm:$0xff]
        %v539 = vld [vmem:[#allocation5 + $0x248] sm:$0xff]
        %v540 = vld [vmem:[#allocation5 + $0x250] sm:$0xff]
        %v541 = vld [vmem:[#allocation5 + $0x258] sm:$0xff]
        %v542 = vld [vmem:[#allocation5 + $0x260] sm:$0xff]
        %v543 = vld [vmem:[#allocation5 + $0x268] sm:$0xff]
        %v544 = vld [vmem:[#allocation5 + $0x270] sm:$0xff]
        %v545 = vld [vmem:[#allocation5 + $0x278] sm:$0xff]
        %v546 = vld [vmem:[#allocation5 + $0x280] sm:$0xff]
        %v547 = vld [vmem:[#allocation5 + $0x288] sm:$0xff]
        %v548 = vld [vmem:[#allocation5 + $0x290] sm:$0xff]
        %v549 = vld [vmem:[#allocation5 + $0x298] sm:$0xff]
        %v550 = vld [vmem:[#allocation5 + $0x2a0] sm:$0xff]
        %v551 = vld [vmem:[#allocation5 + $0x2a8] sm:$0xff]
        %v552 = vld [vmem:[#allocation5 + $0x2b0] sm:$0xff]
        %v553 = vld [vmem:[#allocation5 + $0x2b8] sm:$0xff]
        %v554 = vld [vmem:[#allocation5 + $0x2c0] sm:$0xff]
        %v555 = vld [vmem:[#allocation5 + $0x2c8] sm:$0xff]
        %v556 = vld [vmem:[#allocation5 + $0x2d0] sm:$0xff]
        %v557 = vld [vmem:[#allocation7] sm:$0xff]
        %v558 = vld [vmem:[#allocation7 + $0x8] sm:$0xff]
        %v559 = vld [vmem:[#allocation7 + $0x10] sm:$0xff]
        %v560 = vld [vmem:[#allocation7 + $0x18] sm:$0xff]
        %v561 = vld [vmem:[#allocation7 + $0x20] sm:$0xff]
        %v562 = vld [vmem:[#allocation7 + $0x28] sm:$0xff]
        %v563 = vld [vmem:[#allocation7 + $0x30] sm:$0xff]
        %v564 = vld [vmem:[#allocation7 + $0x38] sm:$0xff]
        %565 = vxpose.xlu0.b32.start [1/16] %v466, 128
        %566 = vxpose.xlu0.b32.cont [2/16] 0.0, 128
        %567 = vxpose.xlu0.b32.cont [3/16] 0.0, 128
        %568 = vxpose.xlu0.b32.cont [4/16] 0.0, 128
        %569 = vxpose.xlu0.b32.cont [5/16] 0.0, 128
        %570 = vxpose.xlu0.b32.cont [6/16] 0.0, 128
        %571 = vxpose.xlu0.b32.cont [7/16] 0.0, 128
        %572 = vxpose.xlu0.b32.cont [8/16] 0.0, 128
        %573 = vxpose.xlu0.b32.cont [9/16] 0.0, 128
        %574 = vxpose.xlu0.b32.cont [10/16] 0.0, 128
        %575 = vxpose.xlu0.b32.cont [11/16] 0.0, 128
        %576 = vxpose.xlu0.b32.cont [12/16] 0.0, 128
        %577 = vxpose.xlu0.b32.cont [13/16] 0.0, 128
        %578 = vxpose.xlu0.b32.cont [14/16] 0.0, 128
        %579 = vxpose.xlu0.b32.cont [15/16] 0.0, 128
        %580 = vxpose.xlu0.b32.end [16/16] 0.0, 128
        %v581 = vpop.trf.xlu0
        %v582 = vpop.trf.xlu0
        %v583 = vpop.trf.xlu0
        %v584 = vpop.trf.xlu0
        %v585 = vpop.trf.xlu0
        %v586 = vpop.trf.xlu0
        %v587 = vpop.trf.xlu0
        %v588 = vpop.trf.xlu0
        %v589 = vpop.trf.xlu0
        %v590 = vpop.trf.xlu0
        %v591 = vpop.trf.xlu0
        %v592 = vpop.trf.xlu0
        %v593 = vpop.trf.xlu0
        %v594 = vpop.trf.xlu0
        %v595 = vpop.trf.xlu0
        %v596 = vpop.trf.xlu0
        %vm597 = vcmask 64512
        %v599 = vsel %vm597, %v581, 0
        %v602 = vsel %vm597, %v582, 0
        %v605 = vsel %vm597, %v583, 0
        %v608 = vsel %vm597, %v584, 0
        %v611 = vsel %vm597, %v585, 0
        %v614 = vsel %vm597, %v586, 0
        %v617 = vsel %vm597, %v587, 0
        %v620 = vsel %vm597, %v588, 0
        %v623 = vsel %vm597, %v589, 0
        %v626 = vsel %vm597, %v590, 0
        %v629 = vsel %vm597, %v591, 0
        %v632 = vsel %vm597, %v592, 0
        %v635 = vsel %vm597, %v593, 0
        %v638 = vsel %vm597, %v594, 0
        %v641 = vsel %vm597, %v595, 0
        %v644 = vsel %vm597, %v596, 0
        %646 = vmatprep.subr.mxu0 0.0
        %647 = vmatpush1.msra.mxu0 %v467
        %648 = vmatprep.subr.mxu0 0.0
        %649 = vmatpush1.msra.mxu0 0.0
        %650 = vmatprep.subr.mxu0 0.0
        %651 = vmatpush1.msra.mxu0 0.0
        %652 = vmatprep.subr.mxu0 0.0
        %653 = vmatpush1.msra.mxu0 0.0
        %654 = vmatprep.subr.mxu0 0.0
        %655 = vmatpush1.msra.mxu0 0.0
        %656 = vmatprep.subr.mxu0 0.0
        %657 = vmatpush1.msra.mxu0 0.0
        %658 = vmatprep.subr.mxu0 0.0
        %659 = vmatpush1.msra.mxu0 0.0
        %660 = vmatprep.subr.mxu0 0.0
        %661 = vmatpush1.msra.mxu0 0.0
        %662 = vmatprep.subr.mxu0 0.0
        %663 = vmatpush1.msra.mxu0 0.0
        %664 = vmatprep.subr.mxu0 0.0
        %665 = vmatpush1.msra.mxu0 0.0
        %666 = vmatprep.subr.mxu0 0.0
        %667 = vmatpush1.msra.mxu0 0.0
        %668 = vmatprep.subr.mxu0 0.0
        %669 = vmatpush1.msra.mxu0 0.0
        %670 = vmatprep.subr.mxu0 0.0
        %671 = vmatpush1.msra.mxu0 0.0
        %672 = vmatprep.subr.mxu0 0.0
        %673 = vmatpush1.msra.mxu0 0.0
        %674 = vmatprep.subr.mxu0 0.0
        %675 = vmatpush1.msra.mxu0 0.0
        %676 = vmatprep.subr.mxu0 0.0
        %677 = vmatpush1.msra.mxu0 0.0
        %678 = vmatprep.subr.mxu0 0.0
        %679 = vmatpush1.msra.mxu0 0.0
        %680 = vmatprep.subr.mxu0 0.0
        %681 = vmatpush1.msra.mxu0 0.0
        %682 = vmatprep.subr.mxu0 0.0
        %683 = vmatpush1.msra.mxu0 0.0
        %684 = vmatprep.subr.mxu0 0.0
        %685 = vmatpush1.msra.mxu0 0.0
        %686 = vmatprep.subr.mxu0 0.0
        %687 = vmatpush1.msra.mxu0 0.0
        %688 = vmatprep.subr.mxu0 0.0
        %689 = vmatpush1.msra.mxu0 0.0
        %690 = vmatprep.subr.mxu0 0.0
        %691 = vmatpush1.msra.mxu0 0.0
        %692 = vmatprep.subr.mxu0 0.0
        %693 = vmatpush1.msra.mxu0 0.0
        %694 = vmatprep.subr.mxu0 0.0
        %695 = vmatpush1.msra.mxu0 0.0
        %696 = vmatprep.subr.mxu0 0.0
        %697 = vmatpush1.msra.mxu0 0.0
        %698 = vmatprep.subr.mxu0 0.0
        %699 = vmatpush1.msra.mxu0 0.0
        %700 = vmatprep.subr.mxu0 0.0
        %701 = vmatpush1.msra.mxu0 0.0
        %702 = vmatprep.subr.mxu0 0.0
        %703 = vmatpush1.msra.mxu0 0.0
        %704 = vmatprep.subr.mxu0 0.0
        %705 = vmatpush1.msra.mxu0 0.0
        %706 = vmatprep.subr.mxu0 0.0
        %707 = vmatpush1.msra.mxu0 0.0
        %708 = vmatprep.subr.mxu0 0.0
        %709 = vmatpush1.msra.mxu0 0.0
        %710 = vmatprep.mubr.f32.mxu0 0.0
        %711 = vmatmul.mubr.f32.gmra.mrb[0].mxu0 %v599
        %v712 = vpop.f32.mrb[0].mxu0
        %v713 = vadd.f32 0.0, %v712
        %v714 = vpop.f32.mrb[0].mxu0
        %715 = vmatprep.mubr.f32.mxu0 0.0
        %716 = vmatmul.mubr.f32.gmra.mrb[0].mxu0 %v602
        %v717 = vpop.f32.mrb[0].mxu0
        %v718 = vadd.f32 0.0, %v717
        %v719 = vpop.f32.mrb[0].mxu0
        %720 = vmatprep.mubr.f32.mxu0 0.0
        %721 = vmatmul.mubr.f32.gmra.mrb[0].mxu0 %v605
        %v722 = vpop.f32.mrb[0].mxu0
        %v723 = vadd.f32 0.0, %v722
        %v724 = vpop.f32.mrb[0].mxu0
        %725 = vmatprep.mubr.f32.mxu0 0.0
        %726 = vmatmul.mubr.f32.gmra.mrb[0].mxu0 %v608
        %v727 = vpop.f32.mrb[0].mxu0
        %v728 = vadd.f32 0.0, %v727
        %v729 = vpop.f32.mrb[0].mxu0
        %730 = vmatprep.mubr.f32.mxu0 0.0
        %731 = vmatmul.mubr.f32.gmra.mrb[0].mxu0 %v611
        %v732 = vpop.f32.mrb[0].mxu0
        %v733 = vadd.f32 0.0, %v732
        %v734 = vpop.f32.mrb[0].mxu0
        %735 = vmatprep.mubr.f32.mxu0 0.0
        %736 = vmatmul.mubr.f32.gmra.mrb[0].mxu0 %v614
        %v737 = vpop.f32.mrb[0].mxu0
        %v738 = vadd.f32 0.0, %v737
        %v739 = vpop.f32.mrb[0].mxu0
        %740 = vmatprep.mubr.f32.mxu0 0.0
        %741 = vmatmul.mubr.f32.gmra.mrb[0].mxu0 %v617
        %v742 = vpop.f32.mrb[0].mxu0
        %v743 = vadd.f32 0.0, %v742
        %v744 = vpop.f32.mrb[0].mxu0
        %745 = vmatprep.mubr.f32.mxu0 0.0
        %746 = vmatmul.mubr.f32.gmra.mrb[0].mxu0 %v620
        %v747 = vpop.f32.mrb[0].mxu0
        %v748 = vadd.f32 0.0, %v747
        %v749 = vpop.f32.mrb[0].mxu0
        %750 = vmatprep.mubr.f32.mxu0 0.0
        %751 = vmatmul.mubr.f32.gmra.mrb[0].mxu0 %v623
        %v752 = vpop.f32.mrb[0].mxu0
        %v753 = vadd.f32 0.0, %v752
        %v754 = vpop.f32.mrb[0].mxu0
        %755 = vmatprep.mubr.f32.mxu0 0.0
        %756 = vmatmul.mubr.f32.gmra.mrb[0].mxu0 %v626
        %v757 = vpop.f32.mrb[0].mxu0
        %v758 = vadd.f32 0.0, %v757
        %v759 = vpop.f32.mrb[0].mxu0
        %760 = vmatprep.mubr.f32.mxu0 0.0
        %761 = vmatmul.mubr.f32.gmra.mrb[0].mxu0 %v629
        %v762 = vpop.f32.mrb[0].mxu0
        %v763 = vadd.f32 0.0, %v762
        %v764 = vpop.f32.mrb[0].mxu0
        %765 = vmatprep.mubr.f32.mxu0 0.0
        %766 = vmatmul.mubr.f32.gmra.mrb[0].mxu0 %v632
        %v767 = vpop.f32.mrb[0].mxu0
        %v768 = vadd.f32 0.0, %v767
        %v769 = vpop.f32.mrb[0].mxu0
        %770 = vmatprep.mubr.f32.mxu0 0.0
        %771 = vmatmul.mubr.f32.gmra.mrb[0].mxu0 %v635
        %v772 = vpop.f32.mrb[0].mxu0
        %v773 = vadd.f32 0.0, %v772
        %v774 = vpop.f32.mrb[0].mxu0
        %775 = vmatprep.mubr.f32.mxu0 0.0
        %776 = vmatmul.mubr.f32.gmra.mrb[0].mxu0 %v638
        %v777 = vpop.f32.mrb[0].mxu0
        %v778 = vadd.f32 0.0, %v777
        %v779 = vpop.f32.mrb[0].mxu0
        %780 = vmatprep.mubr.f32.mxu0 0.0
        %781 = vmatmul.mubr.f32.gmra.mrb[0].mxu0 %v641
        %v782 = vpop.f32.mrb[0].mxu0
        %v783 = vadd.f32 0.0, %v782
        %v784 = vpop.f32.mrb[0].mxu0
        %785 = vmatprep.mubr.f32.mxu0 0.0
        %786 = vmatmul.mubr.f32.gmra.mrb[0].mxu0 %v644
        %v787 = vpop.f32.mrb[0].mxu0
        %v788 = vadd.f32 0.0, %v787
        %v789 = vpop.f32.mrb[0].mxu0
        %790 = vdwg.mxu0
        %v791 = vmul.f32 %v713, %v476
        %v792 = vmul.f32 %v718, %v477
        %v793 = vmul.f32 %v723, %v478
        %v794 = vmul.f32 %v728, %v479
        %v795 = vmul.f32 %v733, %v480
        %v796 = vmul.f32 %v738, %v481
        %v797 = vmul.f32 %v743, %v482
        %v798 = vmul.f32 %v748, %v483
        %v799 = vmul.f32 %v753, %v484
        %v800 = vmul.f32 %v758, %v485
        %v801 = vmul.f32 %v763, %v486
        %v802 = vmul.f32 %v768, %v487
        %v803 = vmul.f32 %v773, %v488
        %v804 = vmul.f32 %v778, %v489
        %v805 = vmul.f32 %v783, %v490
        %v806 = vmul.f32 %v788, %v491
        %807 = vmatprep.subr.mxu0 0.0
        %808 = vmatpush1.msra.mxu0 %v791
        %809 = vmatprep.subr.mxu0 0.0
        %810 = vmatpush1.msra.mxu0 %v792
        %811 = vmatprep.subr.mxu0 0.0
        %812 = vmatpush1.msra.mxu0 %v793
        %813 = vmatprep.subr.mxu0 0.0
        %814 = vmatpush1.msra.mxu0 %v794
        %815 = vmatprep.subr.mxu0 0.0
        %816 = vmatpush1.msra.mxu0 %v795
        %817 = vmatprep.subr.mxu0 0.0
        %818 = vmatpush1.msra.mxu0 %v796
        %819 = vmatprep.subr.mxu0 0.0
        %820 = vmatpush1.msra.mxu0 %v797
        %821 = vmatprep.subr.mxu0 0.0
        %822 = vmatpush1.msra.mxu0 %v798
        %823 = vmatprep.subr.mxu0 0.0
        %824 = vmatpush1.msra.mxu0 %v799
        %825 = vmatprep.subr.mxu0 0.0
        %826 = vmatpush1.msra.mxu0 %v800
        %827 = vmatprep.subr.mxu0 0.0
        %828 = vmatpush1.msra.mxu0 %v801
        %829 = vmatprep.subr.mxu0 0.0
        %830 = vmatpush1.msra.mxu0 %v802
        %831 = vmatprep.subr.mxu0 0.0
        %832 = vmatpush1.msra.mxu0 %v803
        %833 = vmatprep.subr.mxu0 0.0
        %834 = vmatpush1.msra.mxu0 %v804
        %835 = vmatprep.subr.mxu0 0.0
        %836 = vmatpush1.msra.mxu0 %v805
        %837 = vmatprep.subr.mxu0 0.0
        %838 = vmatpush1.msra.mxu0 %v806
        %839 = vmatprep.subr.mxu0 0.0
        %840 = vmatpush1.msra.mxu0 0.0
        %841 = vmatprep.subr.mxu0 0.0
        %842 = vmatpush1.msra.mxu0 0.0
        %843 = vmatprep.subr.mxu0 0.0
        %844 = vmatpush1.msra.mxu0 0.0
        %845 = vmatprep.subr.mxu0 0.0
        %846 = vmatpush1.msra.mxu0 0.0
        %847 = vmatprep.subr.mxu0 0.0
        %848 = vmatpush1.msra.mxu0 0.0
        %849 = vmatprep.subr.mxu0 0.0
        %850 = vmatpush1.msra.mxu0 0.0
        %851 = vmatprep.subr.mxu0 0.0
        %852 = vmatpush1.msra.mxu0 0.0
        %853 = vmatprep.subr.mxu0 0.0
        %854 = vmatpush1.msra.mxu0 0.0
        %855 = vmatprep.subr.mxu0 0.0
        %856 = vmatpush1.msra.mxu0 0.0
        %857 = vmatprep.subr.mxu0 0.0
        %858 = vmatpush1.msra.mxu0 0.0
        %859 = vmatprep.subr.mxu0 0.0
        %860 = vmatpush1.msra.mxu0 0.0
        %861 = vmatprep.subr.mxu0 0.0
        %862 = vmatpush1.msra.mxu0 0.0
        %863 = vmatprep.subr.mxu0 0.0
        %864 = vmatpush1.msra.mxu0 0.0
        %865 = vmatprep.subr.mxu0 0.0
        %866 = vmatpush1.msra.mxu0 0.0
        %867 = vmatprep.subr.mxu0 0.0
        %868 = vmatpush1.msra.mxu0 0.0
        %869 = vmatprep.subr.mxu0 0.0
        %870 = vmatpush1.msra.mxu0 0.0
        %871 = vmatprep.mubr.f32.mxu0 0.0
        %872 = vmatmul.mubr.f32.gmra.mrb[0].mxu0 %v492
        %v873 = vpop.f32.mrb[0].mxu0
        %v874 = vadd.f32 0.0, %v873
        %v875 = vpop.f32.mrb[0].mxu0
        %876 = vmatprep.mubr.f32.mxu0 0.0
        %877 = vmatmul.mubr.f32.gmra.mrb[0].mxu0 %v493
        %v878 = vpop.f32.mrb[0].mxu0
        %v879 = vadd.f32 0.0, %v878
        %v880 = vpop.f32.mrb[0].mxu0
        %881 = vdwg.mxu0
        %882 = vmatprep.subr.mxu0 0.0
        %883 = vmatpush1.msra.mxu0 %v506
        %884 = vmatprep.subr.mxu0 0.0
        %885 = vmatpush1.msra.mxu0 %v507
        %886 = vmatprep.subr.mxu0 0.0
        %887 = vmatpush1.msra.mxu0 %v508
        %888 = vmatprep.subr.mxu0 0.0
        %889 = vmatpush1.msra.mxu0 %v509
        %890 = vmatprep.subr.mxu0 0.0
        %891 = vmatpush1.msra.mxu0 %v510
        %892 = vmatprep.subr.mxu0 0.0
        %893 = vmatpush1.msra.mxu0 %v511
        %894 = vmatprep.subr.mxu0 0.0
        %895 = vmatpush1.msra.mxu0 %v512
        %896 = vmatprep.subr.mxu0 0.0
        %897 = vmatpush1.msra.mxu0 %v513
        %898 = vmatprep.subr.mxu0 0.0
        %899 = vmatpush1.msra.mxu0 %v514
        %900 = vmatprep.subr.mxu0 0.0
        %901 = vmatpush1.msra.mxu0 %v515
        %902 = vmatprep.subr.mxu0 0.0
        %903 = vmatpush1.msra.mxu0 %v516
        %904 = vmatprep.subr.mxu0 0.0
        %905 = vmatpush1.msra.mxu0 %v517
        %906 = vmatprep.subr.mxu0 0.0
        %907 = vmatpush1.msra.mxu0 %v518
        %908 = vmatprep.subr.mxu0 0.0
        %909 = vmatpush1.msra.mxu0 %v519
        %910 = vmatprep.subr.mxu0 0.0
        %911 = vmatpush1.msra.mxu0 %v520
        %912 = vmatprep.subr.mxu0 0.0
        %913 = vmatpush1.msra.mxu0 %v521
        %914 = vmatprep.subr.mxu0 0.0
        %915 = vmatpush1.msra.mxu0 0.0
        %916 = vmatprep.subr.mxu0 0.0
        %917 = vmatpush1.msra.mxu0 0.0
        %918 = vmatprep.subr.mxu0 0.0
        %919 = vmatpush1.msra.mxu0 0.0
        %920 = vmatprep.subr.mxu0 0.0
        %921 = vmatpush1.msra.mxu0 0.0
        %922 = vmatprep.subr.mxu0 0.0
        %923 = vmatpush1.msra.mxu0 0.0
        %924 = vmatprep.subr.mxu0 0.0
        %925 = vmatpush1.msra.mxu0 0.0
        %926 = vmatprep.subr.mxu0 0.0
        %927 = vmatpush1.msra.mxu0 0.0
        %928 = vmatprep.subr.mxu0 0.0
        %929 = vmatpush1.msra.mxu0 0.0
        %930 = vmatprep.subr.mxu0 0.0
        %931 = vmatpush1.msra.mxu0 0.0
        %932 = vmatprep.subr.mxu0 0.0
        %933 = vmatpush1.msra.mxu0 0.0
        %934 = vmatprep.subr.mxu0 0.0
        %935 = vmatpush1.msra.mxu0 0.0
        %936 = vmatprep.subr.mxu0 0.0
        %937 = vmatpush1.msra.mxu0 0.0
        %938 = vmatprep.subr.mxu0 0.0
        %939 = vmatpush1.msra.mxu0 0.0
        %940 = vmatprep.subr.mxu0 0.0
        %941 = vmatpush1.msra.mxu0 0.0
        %942 = vmatprep.subr.mxu0 0.0
        %943 = vmatpush1.msra.mxu0 0.0
        %944 = vmatprep.subr.mxu0 0.0
        %945 = vmatpush1.msra.mxu0 0.0
        %946 = vmatprep.mubr.f32.mxu0 0.0
        %947 = vmatmul.mubr.f32.gmra.mrb[0].mxu0 %v874
        %v948 = vpop.f32.mrb[0].mxu0
        %v949 = vadd.f32 0.0, %v948
        %v950 = vpop.f32.mrb[0].mxu0
        %951 = vmatprep.mubr.f32.mxu0 0.0
        %952 = vmatmul.mubr.f32.gmra.mrb[0].mxu0 %v879
        %v953 = vpop.f32.mrb[0].mxu0
        %v954 = vadd.f32 0.0, %v953
        %v955 = vpop.f32.mrb[0].mxu0
        %956 = vdwg.mxu0
        %v957 = vmul.f32 %v949, 0.03125
        %v958 = vmul.f32 %v954, 0.03125
        %v959 = vtanh.pop %v957
        %v960 = vtanh.pop %v958
        %962 = vrot.lane.b32.xlu0 %v554, 115
        %v963 = vpop.permute.xlu0 %962
        %s964 = vtos %v963
        %v965 = vstv %s964
        %v967 = vmul.f32 %v965, %v959
        %v968 = vmul.f32 %v965, %v960
        %v969 = vadd.f32 %v500, %v967
        %v970 = vadd.f32 %v501, %v968
        %vm971 = vcmask 130048
        %v973 = vsel %vm971, %v969, 0
        %v976 = vsel %vm971, %v970, 0
        %978 = vmatprep.subr.mxu0 0.0
        %979 = vmatpush1.msra.mxu0 %v492
        %980 = vmatprep.subr.mxu0 0.0
        %981 = vmatpush1.msra.mxu0 %v493
        %982 = vmatprep.subr.mxu0 0.0
        %983 = vmatpush1.msra.mxu0 0.0
        %984 = vmatprep.subr.mxu0 0.0
        %985 = vmatpush1.msra.mxu0 0.0
        %986 = vmatprep.subr.mxu0 0.0
        %987 = vmatpush1.msra.mxu0 0.0
        %988 = vmatprep.subr.mxu0 0.0
        %989 = vmatpush1.msra.mxu0 0.0
        %990 = vmatprep.subr.mxu0 0.0
        %991 = vmatpush1.msra.mxu0 0.0
        %992 = vmatprep.subr.mxu0 0.0
        %993 = vmatpush1.msra.mxu0 0.0
        %994 = vmatprep.subr.mxu0 0.0
        %995 = vmatpush1.msra.mxu0 0.0
        %996 = vmatprep.subr.mxu0 0.0
        %997 = vmatpush1.msra.mxu0 0.0
        %998 = vmatprep.subr.mxu0 0.0
        %999 = vmatpush1.msra.mxu0 0.0
        %1000 = vmatprep.subr.mxu0 0.0
        %1001 = vmatpush1.msra.mxu0 0.0
        %1002 = vmatprep.subr.mxu0 0.0
        %1003 = vmatpush1.msra.mxu0 0.0
        %1004 = vmatprep.subr.mxu0 0.0
        %1005 = vmatpush1.msra.mxu0 0.0
        %1006 = vmatprep.subr.mxu0 0.0
        %1007 = vmatpush1.msra.mxu0 0.0
        %1008 = vmatprep.subr.mxu0 0.0
        %1009 = vmatpush1.msra.mxu0 0.0
        %1010 = vmatprep.subr.mxu0 0.0
        %1011 = vmatpush1.msra.mxu0 0.0
        %1012 = vmatprep.subr.mxu0 0.0
        %1013 = vmatpush1.msra.mxu0 0.0
        %1014 = vmatprep.subr.mxu0 0.0
        %1015 = vmatpush1.msra.mxu0 0.0
        %1016 = vmatprep.subr.mxu0 0.0
        %1017 = vmatpush1.msra.mxu0 0.0
        %1018 = vmatprep.subr.mxu0 0.0
        %1019 = vmatpush1.msra.mxu0 0.0
        %1020 = vmatprep.subr.mxu0 0.0
        %1021 = vmatpush1.msra.mxu0 0.0
        %1022 = vmatprep.subr.mxu0 0.0
        %1023 = vmatpush1.msra.mxu0 0.0
        %1024 = vmatprep.subr.mxu0 0.0
        %1025 = vmatpush1.msra.mxu0 0.0
        %1026 = vmatprep.subr.mxu0 0.0
        %1027 = vmatpush1.msra.mxu0 0.0
        %1028 = vmatprep.subr.mxu0 0.0
        %1029 = vmatpush1.msra.mxu0 0.0
        %1030 = vmatprep.subr.mxu0 0.0
        %1031 = vmatpush1.msra.mxu0 0.0
        %1032 = vmatprep.subr.mxu0 0.0
        %1033 = vmatpush1.msra.mxu0 0.0
        %1034 = vmatprep.subr.mxu0 0.0
        %1035 = vmatpush1.msra.mxu0 0.0
        %1036 = vmatprep.subr.mxu0 0.0
        %1037 = vmatpush1.msra.mxu0 0.0
        %1038 = vmatprep.subr.mxu0 0.0
        %1039 = vmatpush1.msra.mxu0 0.0
        %1040 = vmatprep.subr.mxu0 0.0
        %1041 = vmatpush1.msra.mxu0 0.0
        %1042 = vmatprep.mubr.f32.mxu0 0.0
        %1043 = vmatmul.mubr.f32.gmra.mrb[0].mxu0 %v973
        %v1044 = vpop.f32.mrb[0].mxu0
        %v1045 = vadd.f32 0.0, %v1044
        %v1046 = vpop.f32.mrb[0].mxu0
        %1047 = vmatprep.mubr.f32.mxu0 0.0
        %1048 = vmatmul.mubr.f32.gmra.mrb[0].mxu0 %v976
        %v1049 = vpop.f32.mrb[0].mxu0
        %v1050 = vadd.f32 0.0, %v1049
        %v1051 = vpop.f32.mrb[0].mxu0
        %1052 = vdwg.mxu0
        %v1054 = vsel %vm971, %v506, 0
        %v1057 = vsel %vm971, %v507, 0
        %v1060 = vsel %vm971, %v508, 0
        %v1063 = vsel %vm971, %v509, 0
        %v1066 = vsel %vm971, %v510, 0
        %v1069 = vsel %vm971, %v511, 0
        %v1072 = vsel %vm971, %v512, 0
        %v1075 = vsel %vm971, %v513, 0
        %v1078 = vsel %vm971, %v514, 0
        %v1081 = vsel %vm971, %v515, 0
        %v1084 = vsel %vm971, %v516, 0
        %v1087 = vsel %vm971, %v517, 0
        %v1090 = vsel %vm971, %v518, 0
        %v1093 = vsel %vm971, %v519, 0
        %v1096 = vsel %vm971, %v520, 0
        %v1099 = vsel %vm971, %v521, 0
        %1101 = vmatprep.subr.mxu0 0.0
        %1102 = vmatpush1.msra.mxu0 %v1045
        %1103 = vmatprep.subr.mxu0 0.0
        %1104 = vmatpush1.msra.mxu0 %v1050
        %1105 = vmatprep.subr.mxu0 0.0
        %1106 = vmatpush1.msra.mxu0 0.0
        %1107 = vmatprep.subr.mxu0 0.0
        %1108 = vmatpush1.msra.mxu0 0.0
        %1109 = vmatprep.subr.mxu0 0.0
        %1110 = vmatpush1.msra.mxu0 0.0
        %1111 = vmatprep.subr.mxu0 0.0
        %1112 = vmatpush1.msra.mxu0 0.0
        %1113 = vmatprep.subr.mxu0 0.0
        %1114 = vmatpush1.msra.mxu0 0.0
        %1115 = vmatprep.subr.mxu0 0.0
        %1116 = vmatpush1.msra.mxu0 0.0
        %1117 = vmatprep.subr.mxu0 0.0
        %1118 = vmatpush1.msra.mxu0 0.0
        %1119 = vmatprep.subr.mxu0 0.0
        %1120 = vmatpush1.msra.mxu0 0.0
        %1121 = vmatprep.subr.mxu0 0.0
        %1122 = vmatpush1.msra.mxu0 0.0
        %1123 = vmatprep.subr.mxu0 0.0
        %1124 = vmatpush1.msra.mxu0 0.0
        %1125 = vmatprep.subr.mxu0 0.0
        %1126 = vmatpush1.msra.mxu0 0.0
        %1127 = vmatprep.subr.mxu0 0.0
        %1128 = vmatpush1.msra.mxu0 0.0
        %1129 = vmatprep.subr.mxu0 0.0
        %1130 = vmatpush1.msra.mxu0 0.0
        %1131 = vmatprep.subr.mxu0 0.0
        %1132 = vmatpush1.msra.mxu0 0.0
        %1133 = vmatprep.subr.mxu0 0.0
        %1134 = vmatpush1.msra.mxu0 0.0
        %1135 = vmatprep.subr.mxu0 0.0
        %1136 = vmatpush1.msra.mxu0 0.0
        %1137 = vmatprep.subr.mxu0 0.0
        %1138 = vmatpush1.msra.mxu0 0.0
        %1139 = vmatprep.subr.mxu0 0.0
        %1140 = vmatpush1.msra.mxu0 0.0
        %1141 = vmatprep.subr.mxu0 0.0
        %1142 = vmatpush1.msra.mxu0 0.0
        %1143 = vmatprep.subr.mxu0 0.0
        %1144 = vmatpush1.msra.mxu0 0.0
        %1145 = vmatprep.subr.mxu0 0.0
        %1146 = vmatpush1.msra.mxu0 0.0
        %1147 = vmatprep.subr.mxu0 0.0
        %1148 = vmatpush1.msra.mxu0 0.0
        %1149 = vmatprep.subr.mxu0 0.0
        %1150 = vmatpush1.msra.mxu0 0.0
        %1151 = vmatprep.subr.mxu0 0.0
        %1152 = vmatpush1.msra.mxu0 0.0
        %1153 = vmatprep.subr.mxu0 0.0
        %1154 = vmatpush1.msra.mxu0 0.0
        %1155 = vmatprep.subr.mxu0 0.0
        %1156 = vmatpush1.msra.mxu0 0.0
        %1157 = vmatprep.subr.mxu0 0.0
        %1158 = vmatpush1.msra.mxu0 0.0
        %1159 = vmatprep.subr.mxu0 0.0
        %1160 = vmatpush1.msra.mxu0 0.0
        %1161 = vmatprep.subr.mxu0 0.0
        %1162 = vmatpush1.msra.mxu0 0.0
        %1163 = vmatprep.subr.mxu0 0.0
        %1164 = vmatpush1.msra.mxu0 0.0
        %1165 = vmatprep.mubr.f32.mxu0 0.0
        %1166 = vmatmul.mubr.f32.gmra.mrb[0].mxu0 %v1054
        %v1167 = vpop.f32.mrb[0].mxu0
        %v1168 = vadd.f32 0.0, %v1167
        %v1169 = vpop.f32.mrb[0].mxu0
        %1170 = vmatprep.mubr.f32.mxu0 0.0
        %1171 = vmatmul.mubr.f32.gmra.mrb[0].mxu0 %v1057
        %v1172 = vpop.f32.mrb[0].mxu0
        %v1173 = vadd.f32 0.0, %v1172
        %v1174 = vpop.f32.mrb[0].mxu0
        %1175 = vmatprep.mubr.f32.mxu0 0.0
        %1176 = vmatmul.mubr.f32.gmra.mrb[0].mxu0 %v1060
        %v1177 = vpop.f32.mrb[0].mxu0
        %v1178 = vadd.f32 0.0, %v1177
        %v1179 = vpop.f32.mrb[0].mxu0
        %1180 = vmatprep.mubr.f32.mxu0 0.0
        %1181 = vmatmul.mubr.f32.gmra.mrb[0].mxu0 %v1063
        %v1182 = vpop.f32.mrb[0].mxu0
        %v1183 = vadd.f32 0.0, %v1182
        %v1184 = vpop.f32.mrb[0].mxu0
        %1185 = vmatprep.mubr.f32.mxu0 0.0
        %1186 = vmatmul.mubr.f32.gmra.mrb[0].mxu0 %v1066
        %v1187 = vpop.f32.mrb[0].mxu0
        %v1188 = vadd.f32 0.0, %v1187
        %v1189 = vpop.f32.mrb[0].mxu0
        %1190 = vmatprep.mubr.f32.mxu0 0.0
        %1191 = vmatmul.mubr.f32.gmra.mrb[0].mxu0 %v1069
        %v1192 = vpop.f32.mrb[0].mxu0
        %v1193 = vadd.f32 0.0, %v1192
        %v1194 = vpop.f32.mrb[0].mxu0
        %1195 = vmatprep.mubr.f32.mxu0 0.0
        %1196 = vmatmul.mubr.f32.gmra.mrb[0].mxu0 %v1072
        %v1197 = vpop.f32.mrb[0].mxu0
        %v1198 = vadd.f32 0.0, %v1197
        %v1199 = vpop.f32.mrb[0].mxu0
        %1200 = vmatprep.mubr.f32.mxu0 0.0
        %1201 = vmatmul.mubr.f32.gmra.mrb[0].mxu0 %v1075
        %v1202 = vpop.f32.mrb[0].mxu0
        %v1203 = vadd.f32 0.0, %v1202
        %v1204 = vpop.f32.mrb[0].mxu0
        %1205 = vmatprep.mubr.f32.mxu0 0.0
        %1206 = vmatmul.mubr.f32.gmra.mrb[0].mxu0 %v1078
        %v1207 = vpop.f32.mrb[0].mxu0
        %v1208 = vadd.f32 0.0, %v1207
        %v1209 = vpop.f32.mrb[0].mxu0
        %1210 = vmatprep.mubr.f32.mxu0 0.0
        %1211 = vmatmul.mubr.f32.gmra.mrb[0].mxu0 %v1081
        %v1212 = vpop.f32.mrb[0].mxu0
        %v1213 = vadd.f32 0.0, %v1212
        %v1214 = vpop.f32.mrb[0].mxu0
        %1215 = vmatprep.mubr.f32.mxu0 0.0
        %1216 = vmatmul.mubr.f32.gmra.mrb[0].mxu0 %v1084
        %v1217 = vpop.f32.mrb[0].mxu0
        %v1218 = vadd.f32 0.0, %v1217
        %v1219 = vpop.f32.mrb[0].mxu0
        %1220 = vmatprep.mubr.f32.mxu0 0.0
        %1221 = vmatmul.mubr.f32.gmra.mrb[0].mxu0 %v1087
        %v1222 = vpop.f32.mrb[0].mxu0
        %v1223 = vadd.f32 0.0, %v1222
        %v1224 = vpop.f32.mrb[0].mxu0
        %1225 = vmatprep.mubr.f32.mxu0 0.0
        %1226 = vmatmul.mubr.f32.gmra.mrb[0].mxu0 %v1090
        %v1227 = vpop.f32.mrb[0].mxu0
        %v1228 = vadd.f32 0.0, %v1227
        %v1229 = vpop.f32.mrb[0].mxu0
        %1230 = vmatprep.mubr.f32.mxu0 0.0
        %1231 = vmatmul.mubr.f32.gmra.mrb[0].mxu0 %v1093
        %v1232 = vpop.f32.mrb[0].mxu0
        %v1233 = vadd.f32 0.0, %v1232
        %v1234 = vpop.f32.mrb[0].mxu0
        %1235 = vmatprep.mubr.f32.mxu0 0.0
        %1236 = vmatmul.mubr.f32.gmra.mrb[0].mxu0 %v1096
        %v1237 = vpop.f32.mrb[0].mxu0
        %v1238 = vadd.f32 0.0, %v1237
        %v1239 = vpop.f32.mrb[0].mxu0
        %1240 = vmatprep.mubr.f32.mxu0 0.0
        %1241 = vmatmul.mubr.f32.gmra.mrb[0].mxu0 %v1099
        %v1242 = vpop.f32.mrb[0].mxu0
        %v1243 = vadd.f32 0.0, %v1242
        %v1244 = vpop.f32.mrb[0].mxu0
        %1245 = vdwg.mxu0
        %v1246 = vmul.f32 %v1168, %v476
        %v1247 = vmul.f32 %v1173, %v477
        %v1248 = vmul.f32 %v1178, %v478
        %v1249 = vmul.f32 %v1183, %v479
        %v1250 = vmul.f32 %v1188, %v480
        %v1251 = vmul.f32 %v1193, %v481
        %v1252 = vmul.f32 %v1198, %v482
        %v1253 = vmul.f32 %v1203, %v483
        %v1254 = vmul.f32 %v1208, %v484
        %v1255 = vmul.f32 %v1213, %v485
        %v1256 = vmul.f32 %v1218, %v486
        %v1257 = vmul.f32 %v1223, %v487
        %v1258 = vmul.f32 %v1228, %v488
        %v1259 = vmul.f32 %v1233, %v489
        %v1260 = vmul.f32 %v1238, %v490
        %v1261 = vmul.f32 %v1243, %v491
        %1262 = vmatprep.subr.mxu0 0.0
        %1263 = vmatpush1.msra.mxu0 %v1246
        %1264 = vmatprep.subr.mxu0 0.0
        %1265 = vmatpush1.msra.mxu0 %v1247
        %1266 = vmatprep.subr.mxu0 0.0
        %1267 = vmatpush1.msra.mxu0 %v1248
        %1268 = vmatprep.subr.mxu0 0.0
        %1269 = vmatpush1.msra.mxu0 %v1249
        %1270 = vmatprep.subr.mxu0 0.0
        %1271 = vmatpush1.msra.mxu0 %v1250
        %1272 = vmatprep.subr.mxu0 0.0
        %1273 = vmatpush1.msra.mxu0 %v1251
        %1274 = vmatprep.subr.mxu0 0.0
        %1275 = vmatpush1.msra.mxu0 %v1252
        %1276 = vmatprep.subr.mxu0 0.0
        %1277 = vmatpush1.msra.mxu0 %v1253
        %1278 = vmatprep.subr.mxu0 0.0
        %1279 = vmatpush1.msra.mxu0 %v1254
        %1280 = vmatprep.subr.mxu0 0.0
        %1281 = vmatpush1.msra.mxu0 %v1255
        %1282 = vmatprep.subr.mxu0 0.0
        %1283 = vmatpush1.msra.mxu0 %v1256
        %1284 = vmatprep.subr.mxu0 0.0
        %1285 = vmatpush1.msra.mxu0 %v1257
        %1286 = vmatprep.subr.mxu0 0.0
        %1287 = vmatpush1.msra.mxu0 %v1258
        %1288 = vmatprep.subr.mxu0 0.0
        %1289 = vmatpush1.msra.mxu0 %v1259
        %1290 = vmatprep.subr.mxu0 0.0
        %1291 = vmatpush1.msra.mxu0 %v1260
        %1292 = vmatprep.subr.mxu0 0.0
        %1293 = vmatpush1.msra.mxu0 %v1261
        %1294 = vmatprep.subr.mxu0 0.0
        %1295 = vmatpush1.msra.mxu0 0.0
        %1296 = vmatprep.subr.mxu0 0.0
        %1297 = vmatpush1.msra.mxu0 0.0
        %1298 = vmatprep.subr.mxu0 0.0
        %1299 = vmatpush1.msra.mxu0 0.0
        %1300 = vmatprep.subr.mxu0 0.0
        %1301 = vmatpush1.msra.mxu0 0.0
        %1302 = vmatprep.subr.mxu0 0.0
        %1303 = vmatpush1.msra.mxu0 0.0
        %1304 = vmatprep.subr.mxu0 0.0
        %1305 = vmatpush1.msra.mxu0 0.0
        %1306 = vmatprep.subr.mxu0 0.0
        %1307 = vmatpush1.msra.mxu0 0.0
        %1308 = vmatprep.subr.mxu0 0.0
        %1309 = vmatpush1.msra.mxu0 0.0
        %1310 = vmatprep.subr.mxu0 0.0
        %1311 = vmatpush1.msra.mxu0 0.0
        %1312 = vmatprep.subr.mxu0 0.0
        %1313 = vmatpush1.msra.mxu0 0.0
        %1314 = vmatprep.subr.mxu0 0.0
        %1315 = vmatpush1.msra.mxu0 0.0
        %1316 = vmatprep.subr.mxu0 0.0
        %1317 = vmatpush1.msra.mxu0 0.0
        %1318 = vmatprep.subr.mxu0 0.0
        %1319 = vmatpush1.msra.mxu0 0.0
        %1320 = vmatprep.subr.mxu0 0.0
        %1321 = vmatpush1.msra.mxu0 0.0
        %1322 = vmatprep.subr.mxu0 0.0
        %1323 = vmatpush1.msra.mxu0 0.0
        %1324 = vmatprep.subr.mxu0 0.0
        %1325 = vmatpush1.msra.mxu0 0.0
        %1326 = vmatprep.mubr.f32.mxu0 0.0
        %1327 = vmatmul.mubr.f32.gmra.mrb[0].mxu0 %v215
        %v1328 = vpop.f32.mrb[0].mxu0
        %v1329 = vadd.f32 0.0, %v1328
        %v1330 = vpop.f32.mrb[0].mxu0
        %1331 = vdwg.mxu0
        %1332 = vxpose.xlu0.b32.start [1/16] %v468, 128
        %1333 = vxpose.xlu0.b32.cont [2/16] 0.0, 128
        %1334 = vxpose.xlu0.b32.cont [3/16] 0.0, 128
        %1335 = vxpose.xlu0.b32.cont [4/16] 0.0, 128
        %1336 = vxpose.xlu0.b32.cont [5/16] 0.0, 128
        %1337 = vxpose.xlu0.b32.cont [6/16] 0.0, 128
        %1338 = vxpose.xlu0.b32.cont [7/16] 0.0, 128
        %1339 = vxpose.xlu0.b32.cont [8/16] 0.0, 128
        %1340 = vxpose.xlu0.b32.cont [9/16] 0.0, 128
        %1341 = vxpose.xlu0.b32.cont [10/16] 0.0, 128
        %1342 = vxpose.xlu0.b32.cont [11/16] 0.0, 128
        %1343 = vxpose.xlu0.b32.cont [12/16] 0.0, 128
        %1344 = vxpose.xlu0.b32.cont [13/16] 0.0, 128
        %1345 = vxpose.xlu0.b32.cont [14/16] 0.0, 128
        %1346 = vxpose.xlu0.b32.cont [15/16] 0.0, 128
        %1347 = vxpose.xlu0.b32.end [16/16] 0.0, 128
        %v1348 = vpop.trf.xlu0
        %v1349 = vpop.trf.xlu0
        %v1350 = vpop.trf.xlu0
        %v1351 = vpop.trf.xlu0
        %v1352 = vpop.trf.xlu0
        %v1353 = vpop.trf.xlu0
        %v1354 = vpop.trf.xlu0
        %v1355 = vpop.trf.xlu0
        %v1356 = vpop.trf.xlu0
        %v1357 = vpop.trf.xlu0
        %v1358 = vpop.trf.xlu0
        %v1359 = vpop.trf.xlu0
        %v1360 = vpop.trf.xlu0
        %v1361 = vpop.trf.xlu0
        %v1362 = vpop.trf.xlu0
        %v1363 = vpop.trf.xlu0
        %v1365 = vsel %vm597, %v1348, 0
        %v1368 = vsel %vm597, %v1349, 0
        %v1371 = vsel %vm597, %v1350, 0
        %v1374 = vsel %vm597, %v1351, 0
        %v1377 = vsel %vm597, %v1352, 0
        %v1380 = vsel %vm597, %v1353, 0
        %v1383 = vsel %vm597, %v1354, 0
        %v1386 = vsel %vm597, %v1355, 0
        %v1389 = vsel %vm597, %v1356, 0
        %v1392 = vsel %vm597, %v1357, 0
        %v1395 = vsel %vm597, %v1358, 0
        %v1398 = vsel %vm597, %v1359, 0
        %v1401 = vsel %vm597, %v1360, 0
        %v1404 = vsel %vm597, %v1361, 0
        %v1407 = vsel %vm597, %v1362, 0
        %v1410 = vsel %vm597, %v1363, 0
        %1412 = vmatprep.subr.mxu0 0.0
        %1413 = vmatpush1.msra.mxu0 %v469
        %1414 = vmatprep.subr.mxu0 0.0
        %1415 = vmatpush1.msra.mxu0 0.0
        %1416 = vmatprep.subr.mxu0 0.0
        %1417 = vmatpush1.msra.mxu0 0.0
        %1418 = vmatprep.subr.mxu0 0.0
        %1419 = vmatpush1.msra.mxu0 0.0
        %1420 = vmatprep.subr.mxu0 0.0
        %1421 = vmatpush1.msra.mxu0 0.0
        %1422 = vmatprep.subr.mxu0 0.0
        %1423 = vmatpush1.msra.mxu0 0.0
        %1424 = vmatprep.subr.mxu0 0.0
        %1425 = vmatpush1.msra.mxu0 0.0
        %1426 = vmatprep.subr.mxu0 0.0
        %1427 = vmatpush1.msra.mxu0 0.0
        %1428 = vmatprep.subr.mxu0 0.0
        %1429 = vmatpush1.msra.mxu0 0.0
        %1430 = vmatprep.subr.mxu0 0.0
        %1431 = vmatpush1.msra.mxu0 0.0
        %1432 = vmatprep.subr.mxu0 0.0
        %1433 = vmatpush1.msra.mxu0 0.0
        %1434 = vmatprep.subr.mxu0 0.0
        %1435 = vmatpush1.msra.mxu0 0.0
        %1436 = vmatprep.subr.mxu0 0.0
        %1437 = vmatpush1.msra.mxu0 0.0
        %1438 = vmatprep.subr.mxu0 0.0
        %1439 = vmatpush1.msra.mxu0 0.0
        %1440 = vmatprep.subr.mxu0 0.0
        %1441 = vmatpush1.msra.mxu0 0.0
        %1442 = vmatprep.subr.mxu0 0.0
        %1443 = vmatpush1.msra.mxu0 0.0
        %1444 = vmatprep.subr.mxu0 0.0
        %1445 = vmatpush1.msra.mxu0 0.0
        %1446 = vmatprep.subr.mxu0 0.0
        %1447 = vmatpush1.msra.mxu0 0.0
        %1448 = vmatprep.subr.mxu0 0.0
        %1449 = vmatpush1.msra.mxu0 0.0
        %1450 = vmatprep.subr.mxu0 0.0
        %1451 = vmatpush1.msra.mxu0 0.0
        %1452 = vmatprep.subr.mxu0 0.0
        %1453 = vmatpush1.msra.mxu0 0.0
        %1454 = vmatprep.subr.mxu0 0.0
        %1455 = vmatpush1.msra.mxu0 0.0
        %1456 = vmatprep.subr.mxu0 0.0
        %1457 = vmatpush1.msra.mxu0 0.0
        %1458 = vmatprep.subr.mxu0 0.0
        %1459 = vmatpush1.msra.mxu0 0.0
        %1460 = vmatprep.subr.mxu0 0.0
        %1461 = vmatpush1.msra.mxu0 0.0
        %1462 = vmatprep.subr.mxu0 0.0
        %1463 = vmatpush1.msra.mxu0 0.0
        %1464 = vmatprep.subr.mxu0 0.0
        %1465 = vmatpush1.msra.mxu0 0.0
        %1466 = vmatprep.subr.mxu0 0.0
        %1467 = vmatpush1.msra.mxu0 0.0
        %1468 = vmatprep.subr.mxu0 0.0
        %1469 = vmatpush1.msra.mxu0 0.0
        %1470 = vmatprep.subr.mxu0 0.0
        %1471 = vmatpush1.msra.mxu0 0.0
        %1472 = vmatprep.subr.mxu0 0.0
        %1473 = vmatpush1.msra.mxu0 0.0
        %1474 = vmatprep.subr.mxu0 0.0
        %1475 = vmatpush1.msra.mxu0 0.0
        %1476 = vmatprep.mubr.f32.mxu0 0.0
        %1477 = vmatmul.mubr.f32.gmra.mrb[0].mxu0 %v1365
        %v1478 = vpop.f32.mrb[0].mxu0
        %v1479 = vadd.f32 0.0, %v1478
        %v1480 = vpop.f32.mrb[0].mxu0
        %1481 = vmatprep.mubr.f32.mxu0 0.0
        %1482 = vmatmul.mubr.f32.gmra.mrb[0].mxu0 %v1368
        %v1483 = vpop.f32.mrb[0].mxu0
        %v1484 = vadd.f32 0.0, %v1483
        %v1485 = vpop.f32.mrb[0].mxu0
        %1486 = vmatprep.mubr.f32.mxu0 0.0
        %1487 = vmatmul.mubr.f32.gmra.mrb[0].mxu0 %v1371
        %v1488 = vpop.f32.mrb[0].mxu0
        %v1489 = vadd.f32 0.0, %v1488
        %v1490 = vpop.f32.mrb[0].mxu0
        %1491 = vmatprep.mubr.f32.mxu0 0.0
        %1492 = vmatmul.mubr.f32.gmra.mrb[0].mxu0 %v1374
        %v1493 = vpop.f32.mrb[0].mxu0
        %v1494 = vadd.f32 0.0, %v1493
        %v1495 = vpop.f32.mrb[0].mxu0
        %1496 = vmatprep.mubr.f32.mxu0 0.0
        %1497 = vmatmul.mubr.f32.gmra.mrb[0].mxu0 %v1377
        %v1498 = vpop.f32.mrb[0].mxu0
        %v1499 = vadd.f32 0.0, %v1498
        %v1500 = vpop.f32.mrb[0].mxu0
        %1501 = vmatprep.mubr.f32.mxu0 0.0
        %1502 = vmatmul.mubr.f32.gmra.mrb[0].mxu0 %v1380
        %v1503 = vpop.f32.mrb[0].mxu0
        %v1504 = vadd.f32 0.0, %v1503
        %v1505 = vpop.f32.mrb[0].mxu0
        %1506 = vmatprep.mubr.f32.mxu0 0.0
        %1507 = vmatmul.mubr.f32.gmra.mrb[0].mxu0 %v1383
        %v1508 = vpop.f32.mrb[0].mxu0
        %v1509 = vadd.f32 0.0, %v1508
        %v1510 = vpop.f32.mrb[0].mxu0
        %1511 = vmatprep.mubr.f32.mxu0 0.0
        %1512 = vmatmul.mubr.f32.gmra.mrb[0].mxu0 %v1386
        %v1513 = vpop.f32.mrb[0].mxu0
        %v1514 = vadd.f32 0.0, %v1513
        %v1515 = vpop.f32.mrb[0].mxu0
        %1516 = vmatprep.mubr.f32.mxu0 0.0
        %1517 = vmatmul.mubr.f32.gmra.mrb[0].mxu0 %v1389
        %v1518 = vpop.f32.mrb[0].mxu0
        %v1519 = vadd.f32 0.0, %v1518
        %v1520 = vpop.f32.mrb[0].mxu0
        %1521 = vmatprep.mubr.f32.mxu0 0.0
        %1522 = vmatmul.mubr.f32.gmra.mrb[0].mxu0 %v1392
        %v1523 = vpop.f32.mrb[0].mxu0
        %v1524 = vadd.f32 0.0, %v1523
        %v1525 = vpop.f32.mrb[0].mxu0
        %1526 = vmatprep.mubr.f32.mxu0 0.0
        %1527 = vmatmul.mubr.f32.gmra.mrb[0].mxu0 %v1395
        %v1528 = vpop.f32.mrb[0].mxu0
        %v1529 = vadd.f32 0.0, %v1528
        %v1530 = vpop.f32.mrb[0].mxu0
        %1531 = vmatprep.mubr.f32.mxu0 0.0
        %1532 = vmatmul.mubr.f32.gmra.mrb[0].mxu0 %v1398
        %v1533 = vpop.f32.mrb[0].mxu0
        %v1534 = vadd.f32 0.0, %v1533
        %v1535 = vpop.f32.mrb[0].mxu0
        %1536 = vmatprep.mubr.f32.mxu0 0.0
        %1537 = vmatmul.mubr.f32.gmra.mrb[0].mxu0 %v1401
        %v1538 = vpop.f32.mrb[0].mxu0
        %v1539 = vadd.f32 0.0, %v1538
        %v1540 = vpop.f32.mrb[0].mxu0
        %1541 = vmatprep.mubr.f32.mxu0 0.0
        %1542 = vmatmul.mubr.f32.gmra.mrb[0].mxu0 %v1404
        %v1543 = vpop.f32.mrb[0].mxu0
        %v1544 = vadd.f32 0.0, %v1543
        %v1545 = vpop.f32.mrb[0].mxu0
        %1546 = vmatprep.mubr.f32.mxu0 0.0
        %1547 = vmatmul.mubr.f32.gmra.mrb[0].mxu0 %v1407
        %v1548 = vpop.f32.mrb[0].mxu0
        %v1549 = vadd.f32 0.0, %v1548
        %v1550 = vpop.f32.mrb[0].mxu0
        %1551 = vmatprep.mubr.f32.mxu0 0.0
        %1552 = vmatmul.mubr.f32.gmra.mrb[0].mxu0 %v1410
        %v1553 = vpop.f32.mrb[0].mxu0
        %v1554 = vadd.f32 0.0, %v1553
        %v1555 = vpop.f32.mrb[0].mxu0
        %1556 = vdwg.mxu0
        %v1557 = vmul.f32 %v1479, %v476
        %v1558 = vmul.f32 %v1484, %v477
        %v1559 = vmul.f32 %v1489, %v478
        %v1560 = vmul.f32 %v1494, %v479
        %v1561 = vmul.f32 %v1499, %v480
        %v1562 = vmul.f32 %v1504, %v481
        %v1563 = vmul.f32 %v1509, %v482
        %v1564 = vmul.f32 %v1514, %v483
        %v1565 = vmul.f32 %v1519, %v484
        %v1566 = vmul.f32 %v1524, %v485
        %v1567 = vmul.f32 %v1529, %v486
        %v1568 = vmul.f32 %v1534, %v487
        %v1569 = vmul.f32 %v1539, %v488
        %v1570 = vmul.f32 %v1544, %v489
        %v1571 = vmul.f32 %v1549, %v490
        %v1572 = vmul.f32 %v1554, %v491
        %1573 = vmatprep.subr.mxu0 0.0
        %1574 = vmatpush1.msra.mxu0 %v1557
        %1575 = vmatprep.subr.mxu0 0.0
        %1576 = vmatpush1.msra.mxu0 %v1558
        %1577 = vmatprep.subr.mxu0 0.0
        %1578 = vmatpush1.msra.mxu0 %v1559
        %1579 = vmatprep.subr.mxu0 0.0
        %1580 = vmatpush1.msra.mxu0 %v1560
        %1581 = vmatprep.subr.mxu0 0.0
        %1582 = vmatpush1.msra.mxu0 %v1561
        %1583 = vmatprep.subr.mxu0 0.0
        %1584 = vmatpush1.msra.mxu0 %v1562
        %1585 = vmatprep.subr.mxu0 0.0
        %1586 = vmatpush1.msra.mxu0 %v1563
        %1587 = vmatprep.subr.mxu0 0.0
        %1588 = vmatpush1.msra.mxu0 %v1564
        %1589 = vmatprep.subr.mxu0 0.0
        %1590 = vmatpush1.msra.mxu0 %v1565
        %1591 = vmatprep.subr.mxu0 0.0
        %1592 = vmatpush1.msra.mxu0 %v1566
        %1593 = vmatprep.subr.mxu0 0.0
        %1594 = vmatpush1.msra.mxu0 %v1567
        %1595 = vmatprep.subr.mxu0 0.0
        %1596 = vmatpush1.msra.mxu0 %v1568
        %1597 = vmatprep.subr.mxu0 0.0
        %1598 = vmatpush1.msra.mxu0 %v1569
        %1599 = vmatprep.subr.mxu0 0.0
        %1600 = vmatpush1.msra.mxu0 %v1570
        %1601 = vmatprep.subr.mxu0 0.0
        %1602 = vmatpush1.msra.mxu0 %v1571
        %1603 = vmatprep.subr.mxu0 0.0
        %1604 = vmatpush1.msra.mxu0 %v1572
        %1605 = vmatprep.subr.mxu0 0.0
        %1606 = vmatpush1.msra.mxu0 0.0
        %1607 = vmatprep.subr.mxu0 0.0
        %1608 = vmatpush1.msra.mxu0 0.0
        %1609 = vmatprep.subr.mxu0 0.0
        %1610 = vmatpush1.msra.mxu0 0.0
        %1611 = vmatprep.subr.mxu0 0.0
        %1612 = vmatpush1.msra.mxu0 0.0
        %1613 = vmatprep.subr.mxu0 0.0
        %1614 = vmatpush1.msra.mxu0 0.0
        %1615 = vmatprep.subr.mxu0 0.0
        %1616 = vmatpush1.msra.mxu0 0.0
        %1617 = vmatprep.subr.mxu0 0.0
        %1618 = vmatpush1.msra.mxu0 0.0
        %1619 = vmatprep.subr.mxu0 0.0
        %1620 = vmatpush1.msra.mxu0 0.0
        %1621 = vmatprep.subr.mxu0 0.0
        %1622 = vmatpush1.msra.mxu0 0.0
        %1623 = vmatprep.subr.mxu0 0.0
        %1624 = vmatpush1.msra.mxu0 0.0
        %1625 = vmatprep.subr.mxu0 0.0
        %1626 = vmatpush1.msra.mxu0 0.0
        %1627 = vmatprep.subr.mxu0 0.0
        %1628 = vmatpush1.msra.mxu0 0.0
        %1629 = vmatprep.subr.mxu0 0.0
        %1630 = vmatpush1.msra.mxu0 0.0
        %1631 = vmatprep.subr.mxu0 0.0
        %1632 = vmatpush1.msra.mxu0 0.0
        %1633 = vmatprep.subr.mxu0 0.0
        %1634 = vmatpush1.msra.mxu0 0.0
        %1635 = vmatprep.subr.mxu0 0.0
        %1636 = vmatpush1.msra.mxu0 0.0
        %1637 = vmatprep.mubr.f32.mxu0 0.0
        %1638 = vmatmul.mubr.f32.gmra.mrb[0].mxu0 %v492
        %v1639 = vpop.f32.mrb[0].mxu0
        %v1640 = vadd.f32 0.0, %v1639
        %v1641 = vpop.f32.mrb[0].mxu0
        %1642 = vmatprep.mubr.f32.mxu0 0.0
        %1643 = vmatmul.mubr.f32.gmra.mrb[0].mxu0 %v493
        %v1644 = vpop.f32.mrb[0].mxu0
        %v1645 = vadd.f32 0.0, %v1644
        %v1646 = vpop.f32.mrb[0].mxu0
        %1647 = vdwg.mxu0
        %1648 = vmatprep.subr.mxu0 0.0
        %1649 = vmatpush1.msra.mxu0 %v506
        %1650 = vmatprep.subr.mxu0 0.0
        %1651 = vmatpush1.msra.mxu0 %v507
        %1652 = vmatprep.subr.mxu0 0.0
        %1653 = vmatpush1.msra.mxu0 %v508
        %1654 = vmatprep.subr.mxu0 0.0
        %1655 = vmatpush1.msra.mxu0 %v509
        %1656 = vmatprep.subr.mxu0 0.0
        %1657 = vmatpush1.msra.mxu0 %v510
        %1658 = vmatprep.subr.mxu0 0.0
        %1659 = vmatpush1.msra.mxu0 %v511
        %1660 = vmatprep.subr.mxu0 0.0
        %1661 = vmatpush1.msra.mxu0 %v512
        %1662 = vmatprep.subr.mxu0 0.0
        %1663 = vmatpush1.msra.mxu0 %v513
        %1664 = vmatprep.subr.mxu0 0.0
        %1665 = vmatpush1.msra.mxu0 %v514
        %1666 = vmatprep.subr.mxu0 0.0
        %1667 = vmatpush1.msra.mxu0 %v515
        %1668 = vmatprep.subr.mxu0 0.0
        %1669 = vmatpush1.msra.mxu0 %v516
        %1670 = vmatprep.subr.mxu0 0.0
        %1671 = vmatpush1.msra.mxu0 %v517
        %1672 = vmatprep.subr.mxu0 0.0
        %1673 = vmatpush1.msra.mxu0 %v518
        %1674 = vmatprep.subr.mxu0 0.0
        %1675 = vmatpush1.msra.mxu0 %v519
        %1676 = vmatprep.subr.mxu0 0.0
        %1677 = vmatpush1.msra.mxu0 %v520
        %1678 = vmatprep.subr.mxu0 0.0
        %1679 = vmatpush1.msra.mxu0 %v521
        %1680 = vmatprep.subr.mxu0 0.0
        %1681 = vmatpush1.msra.mxu0 0.0
        %1682 = vmatprep.subr.mxu0 0.0
        %1683 = vmatpush1.msra.mxu0 0.0
        %1684 = vmatprep.subr.mxu0 0.0
        %1685 = vmatpush1.msra.mxu0 0.0
        %1686 = vmatprep.subr.mxu0 0.0
        %1687 = vmatpush1.msra.mxu0 0.0
        %1688 = vmatprep.subr.mxu0 0.0
        %1689 = vmatpush1.msra.mxu0 0.0
        %1690 = vmatprep.subr.mxu0 0.0
        %1691 = vmatpush1.msra.mxu0 0.0
        %1692 = vmatprep.subr.mxu0 0.0
        %1693 = vmatpush1.msra.mxu0 0.0
        %1694 = vmatprep.subr.mxu0 0.0
        %1695 = vmatpush1.msra.mxu0 0.0
        %1696 = vmatprep.subr.mxu0 0.0
        %1697 = vmatpush1.msra.mxu0 0.0
        %1698 = vmatprep.subr.mxu0 0.0
        %1699 = vmatpush1.msra.mxu0 0.0
        %1700 = vmatprep.subr.mxu0 0.0
        %1701 = vmatpush1.msra.mxu0 0.0
        %1702 = vmatprep.subr.mxu0 0.0
        %1703 = vmatpush1.msra.mxu0 0.0
        %1704 = vmatprep.subr.mxu0 0.0
        %1705 = vmatpush1.msra.mxu0 0.0
        %1706 = vmatprep.subr.mxu0 0.0
        %1707 = vmatpush1.msra.mxu0 0.0
        %1708 = vmatprep.subr.mxu0 0.0
        %1709 = vmatpush1.msra.mxu0 0.0
        %1710 = vmatprep.subr.mxu0 0.0
        %1711 = vmatpush1.msra.mxu0 0.0
        %1712 = vmatprep.mubr.f32.mxu0 0.0
        %1713 = vmatmul.mubr.f32.gmra.mrb[0].mxu0 %v1640
        %v1714 = vpop.f32.mrb[0].mxu0
        %v1715 = vadd.f32 0.0, %v1714
        %v1716 = vpop.f32.mrb[0].mxu0
        %1717 = vmatprep.mubr.f32.mxu0 0.0
        %1718 = vmatmul.mubr.f32.gmra.mrb[0].mxu0 %v1645
        %v1719 = vpop.f32.mrb[0].mxu0
        %v1720 = vadd.f32 0.0, %v1719
        %v1721 = vpop.f32.mrb[0].mxu0
        %1722 = vdwg.mxu0
        %v1723 = vmul.f32 %v1715, 0.03125
        %v1724 = vmul.f32 %v1720, 0.03125
        %v1725 = vtanh.pop %v1723
        %v1726 = vtanh.pop %v1724
        %v1727 = vmul.f32 %v965, %v1725
        %v1728 = vmul.f32 %v965, %v1726
        %v1729 = vadd.f32 %v502, %v1727
        %v1730 = vadd.f32 %v503, %v1728
        %v1732 = vsel %vm971, %v1729, 0
        %v1735 = vsel %vm971, %v1730, 0
        %1737 = vmatprep.subr.mxu0 0.0
        %1738 = vmatpush1.msra.mxu0 %v492
        %1739 = vmatprep.subr.mxu0 0.0
        %1740 = vmatpush1.msra.mxu0 %v493
        %1741 = vmatprep.subr.mxu0 0.0
        %1742 = vmatpush1.msra.mxu0 0.0
        %1743 = vmatprep.subr.mxu0 0.0
        %1744 = vmatpush1.msra.mxu0 0.0
        %1745 = vmatprep.subr.mxu0 0.0
        %1746 = vmatpush1.msra.mxu0 0.0
        %1747 = vmatprep.subr.mxu0 0.0
        %1748 = vmatpush1.msra.mxu0 0.0
        %1749 = vmatprep.subr.mxu0 0.0
        %1750 = vmatpush1.msra.mxu0 0.0
        %1751 = vmatprep.subr.mxu0 0.0
        %1752 = vmatpush1.msra.mxu0 0.0
        %1753 = vmatprep.subr.mxu0 0.0
        %1754 = vmatpush1.msra.mxu0 0.0
        %1755 = vmatprep.subr.mxu0 0.0
        %1756 = vmatpush1.msra.mxu0 0.0
        %1757 = vmatprep.subr.mxu0 0.0
        %1758 = vmatpush1.msra.mxu0 0.0
        %1759 = vmatprep.subr.mxu0 0.0
        %1760 = vmatpush1.msra.mxu0 0.0
        %1761 = vmatprep.subr.mxu0 0.0
        %1762 = vmatpush1.msra.mxu0 0.0
        %1763 = vmatprep.subr.mxu0 0.0
        %1764 = vmatpush1.msra.mxu0 0.0
        %1765 = vmatprep.subr.mxu0 0.0
        %1766 = vmatpush1.msra.mxu0 0.0
        %1767 = vmatprep.subr.mxu0 0.0
        %1768 = vmatpush1.msra.mxu0 0.0
        %1769 = vmatprep.subr.mxu0 0.0
        %1770 = vmatpush1.msra.mxu0 0.0
        %1771 = vmatprep.subr.mxu0 0.0
        %1772 = vmatpush1.msra.mxu0 0.0
        %1773 = vmatprep.subr.mxu0 0.0
        %1774 = vmatpush1.msra.mxu0 0.0
        %1775 = vmatprep.subr.mxu0 0.0
        %1776 = vmatpush1.msra.mxu0 0.0
        %1777 = vmatprep.subr.mxu0 0.0
        %1778 = vmatpush1.msra.mxu0 0.0
        %1779 = vmatprep.subr.mxu0 0.0
        %1780 = vmatpush1.msra.mxu0 0.0
        %1781 = vmatprep.subr.mxu0 0.0
        %1782 = vmatpush1.msra.mxu0 0.0
        %1783 = vmatprep.subr.mxu0 0.0
        %1784 = vmatpush1.msra.mxu0 0.0
        %1785 = vmatprep.subr.mxu0 0.0
        %1786 = vmatpush1.msra.mxu0 0.0
        %1787 = vmatprep.subr.mxu0 0.0
        %1788 = vmatpush1.msra.mxu0 0.0
        %1789 = vmatprep.subr.mxu0 0.0
        %1790 = vmatpush1.msra.mxu0 0.0
        %1791 = vmatprep.subr.mxu0 0.0
        %1792 = vmatpush1.msra.mxu0 0.0
        %1793 = vmatprep.subr.mxu0 0.0
        %1794 = vmatpush1.msra.mxu0 0.0
        %1795 = vmatprep.subr.mxu0 0.0
        %1796 = vmatpush1.msra.mxu0 0.0
        %1797 = vmatprep.subr.mxu0 0.0
        %1798 = vmatpush1.msra.mxu0 0.0
        %1799 = vmatprep.subr.mxu0 0.0
        %1800 = vmatpush1.msra.mxu0 0.0
        %1801 = vmatprep.mubr.f32.mxu0 0.0
        %1802 = vmatmul.mubr.f32.gmra.mrb[0].mxu0 %v1732
        %v1803 = vpop.f32.mrb[0].mxu0
        %v1804 = vadd.f32 0.0, %v1803
        %v1805 = vpop.f32.mrb[0].mxu0
        %1806 = vmatprep.mubr.f32.mxu0 0.0
        %1807 = vmatmul.mubr.f32.gmra.mrb[0].mxu0 %v1735
        %v1808 = vpop.f32.mrb[0].mxu0
        %v1809 = vadd.f32 0.0, %v1808
        %v1810 = vpop.f32.mrb[0].mxu0
        %1811 = vdwg.mxu0
        %1812 = vmatprep.subr.mxu0 0.0
        %1813 = vmatpush1.msra.mxu0 %v1804
        %1814 = vmatprep.subr.mxu0 0.0
        %1815 = vmatpush1.msra.mxu0 %v1809
        %1816 = vmatprep.subr.mxu0 0.0
        %1817 = vmatpush1.msra.mxu0 0.0
        %1818 = vmatprep.subr.mxu0 0.0
        %1819 = vmatpush1.msra.mxu0 0.0
        %1820 = vmatprep.subr.mxu0 0.0
        %1821 = vmatpush1.msra.mxu0 0.0
        %1822 = vmatprep.subr.mxu0 0.0
        %1823 = vmatpush1.msra.mxu0 0.0
        %1824 = vmatprep.subr.mxu0 0.0
        %1825 = vmatpush1.msra.mxu0 0.0
        %1826 = vmatprep.subr.mxu0 0.0
        %1827 = vmatpush1.msra.mxu0 0.0
        %1828 = vmatprep.subr.mxu0 0.0
        %1829 = vmatpush1.msra.mxu0 0.0
        %1830 = vmatprep.subr.mxu0 0.0
        %1831 = vmatpush1.msra.mxu0 0.0
        %1832 = vmatprep.subr.mxu0 0.0
        %1833 = vmatpush1.msra.mxu0 0.0
        %1834 = vmatprep.subr.mxu0 0.0
        %1835 = vmatpush1.msra.mxu0 0.0
        %1836 = vmatprep.subr.mxu0 0.0
        %1837 = vmatpush1.msra.mxu0 0.0
        %1838 = vmatprep.subr.mxu0 0.0
        %1839 = vmatpush1.msra.mxu0 0.0
        %1840 = vmatprep.subr.mxu0 0.0
        %1841 = vmatpush1.msra.mxu0 0.0
        %1842 = vmatprep.subr.mxu0 0.0
        %1843 = vmatpush1.msra.mxu0 0.0
        %1844 = vmatprep.subr.mxu0 0.0
        %1845 = vmatpush1.msra.mxu0 0.0
        %1846 = vmatprep.subr.mxu0 0.0
        %1847 = vmatpush1.msra.mxu0 0.0
        %1848 = vmatprep.subr.mxu0 0.0
        %1849 = vmatpush1.msra.mxu0 0.0
        %1850 = vmatprep.subr.mxu0 0.0
        %1851 = vmatpush1.msra.mxu0 0.0
        %1852 = vmatprep.subr.mxu0 0.0
        %1853 = vmatpush1.msra.mxu0 0.0
        %1854 = vmatprep.subr.mxu0 0.0
        %1855 = vmatpush1.msra.mxu0 0.0
        %1856 = vmatprep.subr.mxu0 0.0
        %1857 = vmatpush1.msra.mxu0 0.0
        %1858 = vmatprep.subr.mxu0 0.0
        %1859 = vmatpush1.msra.mxu0 0.0
        %1860 = vmatprep.subr.mxu0 0.0
        %1861 = vmatpush1.msra.mxu0 0.0
        %1862 = vmatprep.subr.mxu0 0.0
        %1863 = vmatpush1.msra.mxu0 0.0
        %1864 = vmatprep.subr.mxu0 0.0
        %1865 = vmatpush1.msra.mxu0 0.0
        %1866 = vmatprep.subr.mxu0 0.0
        %1867 = vmatpush1.msra.mxu0 0.0
        %1868 = vmatprep.subr.mxu0 0.0
        %1869 = vmatpush1.msra.mxu0 0.0
        %1870 = vmatprep.subr.mxu0 0.0
        %1871 = vmatpush1.msra.mxu0 0.0
        %1872 = vmatprep.subr.mxu0 0.0
        %1873 = vmatpush1.msra.mxu0 0.0
        %1874 = vmatprep.subr.mxu0 0.0
        %1875 = vmatpush1.msra.mxu0 0.0
        %1876 = vmatprep.mubr.f32.mxu0 0.0
        %1877 = vmatmul.mubr.f32.gmra.mrb[0].mxu0 %v1054
        %v1878 = vpop.f32.mrb[0].mxu0
        %v1879 = vadd.f32 0.0, %v1878
        %v1880 = vpop.f32.mrb[0].mxu0
        %1881 = vmatprep.mubr.f32.mxu0 0.0
        %1882 = vmatmul.mubr.f32.gmra.mrb[0].mxu0 %v1057
        %v1883 = vpop.f32.mrb[0].mxu0
        %v1884 = vadd.f32 0.0, %v1883
        %v1885 = vpop.f32.mrb[0].mxu0
        %1886 = vmatprep.mubr.f32.mxu0 0.0
        %1887 = vmatmul.mubr.f32.gmra.mrb[0].mxu0 %v1060
        %v1888 = vpop.f32.mrb[0].mxu0
        %v1889 = vadd.f32 0.0, %v1888
        %v1890 = vpop.f32.mrb[0].mxu0
        %1891 = vmatprep.mubr.f32.mxu0 0.0
        %1892 = vmatmul.mubr.f32.gmra.mrb[0].mxu0 %v1063
        %v1893 = vpop.f32.mrb[0].mxu0
        %v1894 = vadd.f32 0.0, %v1893
        %v1895 = vpop.f32.mrb[0].mxu0
        %1896 = vmatprep.mubr.f32.mxu0 0.0
        %1897 = vmatmul.mubr.f32.gmra.mrb[0].mxu0 %v1066
        %v1898 = vpop.f32.mrb[0].mxu0
        %v1899 = vadd.f32 0.0, %v1898
        %v1900 = vpop.f32.mrb[0].mxu0
        %1901 = vmatprep.mubr.f32.mxu0 0.0
        %1902 = vmatmul.mubr.f32.gmra.mrb[0].mxu0 %v1069
        %v1903 = vpop.f32.mrb[0].mxu0
        %v1904 = vadd.f32 0.0, %v1903
        %v1905 = vpop.f32.mrb[0].mxu0
        %1906 = vmatprep.mubr.f32.mxu0 0.0
        %1907 = vmatmul.mubr.f32.gmra.mrb[0].mxu0 %v1072
        %v1908 = vpop.f32.mrb[0].mxu0
        %v1909 = vadd.f32 0.0, %v1908
        %v1910 = vpop.f32.mrb[0].mxu0
        %1911 = vmatprep.mubr.f32.mxu0 0.0
        %1912 = vmatmul.mubr.f32.gmra.mrb[0].mxu0 %v1075
        %v1913 = vpop.f32.mrb[0].mxu0
        %v1914 = vadd.f32 0.0, %v1913
        %v1915 = vpop.f32.mrb[0].mxu0
        %1916 = vmatprep.mubr.f32.mxu0 0.0
        %1917 = vmatmul.mubr.f32.gmra.mrb[0].mxu0 %v1078
        %v1918 = vpop.f32.mrb[0].mxu0
        %v1919 = vadd.f32 0.0, %v1918
        %v1920 = vpop.f32.mrb[0].mxu0
        %1921 = vmatprep.mubr.f32.mxu0 0.0
        %1922 = vmatmul.mubr.f32.gmra.mrb[0].mxu0 %v1081
        %v1923 = vpop.f32.mrb[0].mxu0
        %v1924 = vadd.f32 0.0, %v1923
        %v1925 = vpop.f32.mrb[0].mxu0
        %1926 = vmatprep.mubr.f32.mxu0 0.0
        %1927 = vmatmul.mubr.f32.gmra.mrb[0].mxu0 %v1084
        %v1928 = vpop.f32.mrb[0].mxu0
        %v1929 = vadd.f32 0.0, %v1928
        %v1930 = vpop.f32.mrb[0].mxu0
        %1931 = vmatprep.mubr.f32.mxu0 0.0
        %1932 = vmatmul.mubr.f32.gmra.mrb[0].mxu0 %v1087
        %v1933 = vpop.f32.mrb[0].mxu0
        %v1934 = vadd.f32 0.0, %v1933
        %v1935 = vpop.f32.mrb[0].mxu0
        %1936 = vmatprep.mubr.f32.mxu0 0.0
        %1937 = vmatmul.mubr.f32.gmra.mrb[0].mxu0 %v1090
        %v1938 = vpop.f32.mrb[0].mxu0
        %v1939 = vadd.f32 0.0, %v1938
        %v1940 = vpop.f32.mrb[0].mxu0
        %1941 = vmatprep.mubr.f32.mxu0 0.0
        %1942 = vmatmul.mubr.f32.gmra.mrb[0].mxu0 %v1093
        %v1943 = vpop.f32.mrb[0].mxu0
        %v1944 = vadd.f32 0.0, %v1943
        %v1945 = vpop.f32.mrb[0].mxu0
        %1946 = vmatprep.mubr.f32.mxu0 0.0
        %1947 = vmatmul.mubr.f32.gmra.mrb[0].mxu0 %v1096
        %v1948 = vpop.f32.mrb[0].mxu0
        %v1949 = vadd.f32 0.0, %v1948
        %v1950 = vpop.f32.mrb[0].mxu0
        %1951 = vmatprep.mubr.f32.mxu0 0.0
        %1952 = vmatmul.mubr.f32.gmra.mrb[0].mxu0 %v1099
        %v1953 = vpop.f32.mrb[0].mxu0
        %v1954 = vadd.f32 0.0, %v1953
        %v1955 = vpop.f32.mrb[0].mxu0
        %1956 = vdwg.mxu0
        %v1957 = vmul.f32 %v1879, %v476
        %v1958 = vmul.f32 %v1884, %v477
        %v1959 = vmul.f32 %v1889, %v478
        %v1960 = vmul.f32 %v1894, %v479
        %v1961 = vmul.f32 %v1899, %v480
        %v1962 = vmul.f32 %v1904, %v481
        %v1963 = vmul.f32 %v1909, %v482
        %v1964 = vmul.f32 %v1914, %v483
        %v1965 = vmul.f32 %v1919, %v484
        %v1966 = vmul.f32 %v1924, %v485
        %v1967 = vmul.f32 %v1929, %v486
        %v1968 = vmul.f32 %v1934, %v487
        %v1969 = vmul.f32 %v1939, %v488
        %v1970 = vmul.f32 %v1944, %v489
        %v1971 = vmul.f32 %v1949, %v490
        %v1972 = vmul.f32 %v1954, %v491
        %1973 = vmatprep.subr.mxu0 0.0
        %1974 = vmatpush1.msra.mxu0 %v1957
        %1975 = vmatprep.subr.mxu0 0.0
        %1976 = vmatpush1.msra.mxu0 %v1958
        %1977 = vmatprep.subr.mxu0 0.0
        %1978 = vmatpush1.msra.mxu0 %v1959
        %1979 = vmatprep.subr.mxu0 0.0
        %1980 = vmatpush1.msra.mxu0 %v1960
        %1981 = vmatprep.subr.mxu0 0.0
        %1982 = vmatpush1.msra.mxu0 %v1961
        %1983 = vmatprep.subr.mxu0 0.0
        %1984 = vmatpush1.msra.mxu0 %v1962
        %1985 = vmatprep.subr.mxu0 0.0
        %1986 = vmatpush1.msra.mxu0 %v1963
        %1987 = vmatprep.subr.mxu0 0.0
        %1988 = vmatpush1.msra.mxu0 %v1964
        %1989 = vmatprep.subr.mxu0 0.0
        %1990 = vmatpush1.msra.mxu0 %v1965
        %1991 = vmatprep.subr.mxu0 0.0
        %1992 = vmatpush1.msra.mxu0 %v1966
        %1993 = vmatprep.subr.mxu0 0.0
        %1994 = vmatpush1.msra.mxu0 %v1967
        %1995 = vmatprep.subr.mxu0 0.0
        %1996 = vmatpush1.msra.mxu0 %v1968
        %1997 = vmatprep.subr.mxu0 0.0
        %1998 = vmatpush1.msra.mxu0 %v1969
        %1999 = vmatprep.subr.mxu0 0.0
        %2000 = vmatpush1.msra.mxu0 %v1970
        %2001 = vmatprep.subr.mxu0 0.0
        %2002 = vmatpush1.msra.mxu0 %v1971
        %2003 = vmatprep.subr.mxu0 0.0
        %2004 = vmatpush1.msra.mxu0 %v1972
        %2005 = vmatprep.subr.mxu0 0.0
        %2006 = vmatpush1.msra.mxu0 0.0
        %2007 = vmatprep.subr.mxu0 0.0
        %2008 = vmatpush1.msra.mxu0 0.0
        %2009 = vmatprep.subr.mxu0 0.0
        %2010 = vmatpush1.msra.mxu0 0.0
        %2011 = vmatprep.subr.mxu0 0.0
        %2012 = vmatpush1.msra.mxu0 0.0
        %2013 = vmatprep.subr.mxu0 0.0
        %2014 = vmatpush1.msra.mxu0 0.0
        %2015 = vmatprep.subr.mxu0 0.0
        %2016 = vmatpush1.msra.mxu0 0.0
        %2017 = vmatprep.subr.mxu0 0.0
        %2018 = vmatpush1.msra.mxu0 0.0
        %2019 = vmatprep.subr.mxu0 0.0
        %2020 = vmatpush1.msra.mxu0 0.0
        %2021 = vmatprep.subr.mxu0 0.0
        %2022 = vmatpush1.msra.mxu0 0.0
        %2023 = vmatprep.subr.mxu0 0.0
        %2024 = vmatpush1.msra.mxu0 0.0
        %2025 = vmatprep.subr.mxu0 0.0
        %2026 = vmatpush1.msra.mxu0 0.0
        %2027 = vmatprep.subr.mxu0 0.0
        %2028 = vmatpush1.msra.mxu0 0.0
        %2029 = vmatprep.subr.mxu0 0.0
        %2030 = vmatpush1.msra.mxu0 0.0
        %2031 = vmatprep.subr.mxu0 0.0
        %2032 = vmatpush1.msra.mxu0 0.0
        %2033 = vmatprep.subr.mxu0 0.0
        %2034 = vmatpush1.msra.mxu0 0.0
        %2035 = vmatprep.subr.mxu0 0.0
        %2036 = vmatpush1.msra.mxu0 0.0
        %2037 = vmatprep.mubr.f32.mxu0 0.0
        %2038 = vmatmul.mubr.f32.gmra.mrb[0].mxu0 %v215
        %v2039 = vpop.f32.mrb[0].mxu0
        %v2040 = vadd.f32 0.0, %v2039
        %v2041 = vpop.f32.mrb[0].mxu0
        %2042 = vdwg.mxu0
        %2044 = vrot.lane.b32.xlu0 %v554, 92
        %v2045 = vpop.permute.xlu0 %2044
        %2046 = vrot.lane.b32.xlu0 %v555, 92
        %v2047 = vpop.permute.xlu0 %2046
        %v2048 = vsel %vm226, %v2045, 0
        %v2050 = vsel %vm226, %v2047, 0
        %v2053 = vsel %vm257, %v2040, 0
        %2055 = vmatprep.subr.mxu0 0.0
        %2056 = vmatpush1.msra.mxu0 %v2053
        %2057 = vmatprep.subr.mxu0 0.0
        %2058 = vmatpush1.msra.mxu0 0.0
        %2059 = vmatprep.subr.mxu0 0.0
        %2060 = vmatpush1.msra.mxu0 0.0
        %2061 = vmatprep.subr.mxu0 0.0
        %2062 = vmatpush1.msra.mxu0 0.0
        %2063 = vmatprep.subr.mxu0 0.0
        %2064 = vmatpush1.msra.mxu0 0.0
        %2065 = vmatprep.subr.mxu0 0.0
        %2066 = vmatpush1.msra.mxu0 0.0
        %2067 = vmatprep.subr.mxu0 0.0
        %2068 = vmatpush1.msra.mxu0 0.0
        %2069 = vmatprep.subr.mxu0 0.0
        %2070 = vmatpush1.msra.mxu0 0.0
        %2071 = vmatprep.subr.mxu0 0.0
        %2072 = vmatpush1.msra.mxu0 0.0
        %2073 = vmatprep.subr.mxu0 0.0
        %2074 = vmatpush1.msra.mxu0 0.0
        %2075 = vmatprep.subr.mxu0 0.0
        %2076 = vmatpush1.msra.mxu0 0.0
        %2077 = vmatprep.subr.mxu0 0.0
        %2078 = vmatpush1.msra.mxu0 0.0
        %2079 = vmatprep.subr.mxu0 0.0
        %2080 = vmatpush1.msra.mxu0 0.0
        %2081 = vmatprep.subr.mxu0 0.0
        %2082 = vmatpush1.msra.mxu0 0.0
        %2083 = vmatprep.subr.mxu0 0.0
        %2084 = vmatpush1.msra.mxu0 0.0
        %2085 = vmatprep.subr.mxu0 0.0
        %2086 = vmatpush1.msra.mxu0 0.0
        %2087 = vmatprep.subr.mxu0 0.0
        %2088 = vmatpush1.msra.mxu0 0.0
        %2089 = vmatprep.subr.mxu0 0.0
        %2090 = vmatpush1.msra.mxu0 0.0
        %2091 = vmatprep.subr.mxu0 0.0
        %2092 = vmatpush1.msra.mxu0 0.0
        %2093 = vmatprep.subr.mxu0 0.0
        %2094 = vmatpush1.msra.mxu0 0.0
        %2095 = vmatprep.subr.mxu0 0.0
        %2096 = vmatpush1.msra.mxu0 0.0
        %2097 = vmatprep.subr.mxu0 0.0
        %2098 = vmatpush1.msra.mxu0 0.0
        %2099 = vmatprep.subr.mxu0 0.0
        %2100 = vmatpush1.msra.mxu0 0.0
        %2101 = vmatprep.subr.mxu0 0.0
        %2102 = vmatpush1.msra.mxu0 0.0
        %2103 = vmatprep.subr.mxu0 0.0
        %2104 = vmatpush1.msra.mxu0 0.0
        %2105 = vmatprep.subr.mxu0 0.0
        %2106 = vmatpush1.msra.mxu0 0.0
        %2107 = vmatprep.subr.mxu0 0.0
        %2108 = vmatpush1.msra.mxu0 0.0
        %2109 = vmatprep.subr.mxu0 0.0
        %2110 = vmatpush1.msra.mxu0 0.0
        %2111 = vmatprep.subr.mxu0 0.0
        %2112 = vmatpush1.msra.mxu0 0.0
        %2113 = vmatprep.subr.mxu0 0.0
        %2114 = vmatpush1.msra.mxu0 0.0
        %2115 = vmatprep.subr.mxu0 0.0
        %2116 = vmatpush1.msra.mxu0 0.0
        %2117 = vmatprep.subr.mxu0 0.0
        %2118 = vmatpush1.msra.mxu0 0.0
        %2119 = vmatprep.mubr.f32.mxu0 0.0
        %2120 = vmatmul.mubr.f32.gmra.mrb[0].mxu0 %v2048
        %v2121 = vpop.f32.mrb[0].mxu0
        %v2122 = vadd.f32 0.0, %v2121
        %v2123 = vpop.f32.mrb[0].mxu0
        %2124 = vmatprep.mubr.f32.mxu0 0.0
        %2125 = vmatmul.mubr.f32.gmra.mrb[0].mxu0 %v2050
        %v2126 = vpop.f32.mrb[0].mxu0
        %v2127 = vadd.f32 0.0, %v2126
        %v2128 = vpop.f32.mrb[0].mxu0
        %2129 = vdwg.mxu0
        %2130 = vrot.lane.b32.xlu0 %v554, 96
        %v2131 = vpop.permute.xlu0 %2130
        %2132 = vrot.lane.b32.xlu0 %v555, 96
        %v2133 = vpop.permute.xlu0 %2132
        %v2134 = vsel %vm226, %v2131, 0
        %v2136 = vsel %vm226, %v2133, 0
        %v2139 = vsel %vm257, %v1329, 0
        %2141 = vmatprep.subr.mxu0 0.0
        %2142 = vmatpush1.msra.mxu0 %v2139
        %2143 = vmatprep.subr.mxu0 0.0
        %2144 = vmatpush1.msra.mxu0 0.0
        %2145 = vmatprep.subr.mxu0 0.0
        %2146 = vmatpush1.msra.mxu0 0.0
        %2147 = vmatprep.subr.mxu0 0.0
        %2148 = vmatpush1.msra.mxu0 0.0
        %2149 = vmatprep.subr.mxu0 0.0
        %2150 = vmatpush1.msra.mxu0 0.0
        %2151 = vmatprep.subr.mxu0 0.0
        %2152 = vmatpush1.msra.mxu0 0.0
        %2153 = vmatprep.subr.mxu0 0.0
        %2154 = vmatpush1.msra.mxu0 0.0
        %2155 = vmatprep.subr.mxu0 0.0
        %2156 = vmatpush1.msra.mxu0 0.0
        %2157 = vmatprep.subr.mxu0 0.0
        %2158 = vmatpush1.msra.mxu0 0.0
        %2159 = vmatprep.subr.mxu0 0.0
        %2160 = vmatpush1.msra.mxu0 0.0
        %2161 = vmatprep.subr.mxu0 0.0
        %2162 = vmatpush1.msra.mxu0 0.0
        %2163 = vmatprep.subr.mxu0 0.0
        %2164 = vmatpush1.msra.mxu0 0.0
        %2165 = vmatprep.subr.mxu0 0.0
        %2166 = vmatpush1.msra.mxu0 0.0
        %2167 = vmatprep.subr.mxu0 0.0
        %2168 = vmatpush1.msra.mxu0 0.0
        %2169 = vmatprep.subr.mxu0 0.0
        %2170 = vmatpush1.msra.mxu0 0.0
        %2171 = vmatprep.subr.mxu0 0.0
        %2172 = vmatpush1.msra.mxu0 0.0
        %2173 = vmatprep.subr.mxu0 0.0
        %2174 = vmatpush1.msra.mxu0 0.0
        %2175 = vmatprep.subr.mxu0 0.0
        %2176 = vmatpush1.msra.mxu0 0.0
        %2177 = vmatprep.subr.mxu0 0.0
        %2178 = vmatpush1.msra.mxu0 0.0
        %2179 = vmatprep.subr.mxu0 0.0
        %2180 = vmatpush1.msra.mxu0 0.0
        %2181 = vmatprep.subr.mxu0 0.0
        %2182 = vmatpush1.msra.mxu0 0.0
        %2183 = vmatprep.subr.mxu0 0.0
        %2184 = vmatpush1.msra.mxu0 0.0
        %2185 = vmatprep.subr.mxu0 0.0
        %2186 = vmatpush1.msra.mxu0 0.0
        %2187 = vmatprep.subr.mxu0 0.0
        %2188 = vmatpush1.msra.mxu0 0.0
        %2189 = vmatprep.subr.mxu0 0.0
        %2190 = vmatpush1.msra.mxu0 0.0
        %2191 = vmatprep.subr.mxu0 0.0
        %2192 = vmatpush1.msra.mxu0 0.0
        %2193 = vmatprep.subr.mxu0 0.0
        %2194 = vmatpush1.msra.mxu0 0.0
        %2195 = vmatprep.subr.mxu0 0.0
        %2196 = vmatpush1.msra.mxu0 0.0
        %2197 = vmatprep.subr.mxu0 0.0
        %2198 = vmatpush1.msra.mxu0 0.0
        %2199 = vmatprep.subr.mxu0 0.0
        %2200 = vmatpush1.msra.mxu0 0.0
        %2201 = vmatprep.subr.mxu0 0.0
        %2202 = vmatpush1.msra.mxu0 0.0
        %2203 = vmatprep.subr.mxu0 0.0
        %2204 = vmatpush1.msra.mxu0 0.0
        %2205 = vmatprep.mubr.f32.mxu0 0.0
        %2206 = vmatmul.mubr.f32.gmra.mrb[0].mxu0 %v2134
        %v2207 = vpop.f32.mrb[0].mxu0
        %v2208 = vadd.f32 %v2122, %v2207
        %v2209 = vpop.f32.mrb[0].mxu0
        %2210 = vmatprep.mubr.f32.mxu0 0.0
        %2211 = vmatmul.mubr.f32.gmra.mrb[0].mxu0 %v2136
        %v2212 = vpop.f32.mrb[0].mxu0
        %v2213 = vadd.f32 %v2127, %v2212
        %v2214 = vpop.f32.mrb[0].mxu0
        %2215 = vdwg.mxu0
        %2216 = vxpose.xlu0.b32.start [1/16] %v470, 128
        %2217 = vxpose.xlu0.b32.cont [2/16] 0.0, 128
        %2218 = vxpose.xlu0.b32.cont [3/16] 0.0, 128
        %2219 = vxpose.xlu0.b32.cont [4/16] 0.0, 128
        %2220 = vxpose.xlu0.b32.cont [5/16] 0.0, 128
        %2221 = vxpose.xlu0.b32.cont [6/16] 0.0, 128
        %2222 = vxpose.xlu0.b32.cont [7/16] 0.0, 128
        %2223 = vxpose.xlu0.b32.cont [8/16] 0.0, 128
        %2224 = vxpose.xlu0.b32.cont [9/16] 0.0, 128
        %2225 = vxpose.xlu0.b32.cont [10/16] 0.0, 128
        %2226 = vxpose.xlu0.b32.cont [11/16] 0.0, 128
        %2227 = vxpose.xlu0.b32.cont [12/16] 0.0, 128
        %2228 = vxpose.xlu0.b32.cont [13/16] 0.0, 128
        %2229 = vxpose.xlu0.b32.cont [14/16] 0.0, 128
        %2230 = vxpose.xlu0.b32.cont [15/16] 0.0, 128
        %2231 = vxpose.xlu0.b32.end [16/16] 0.0, 128
        %v2232 = vpop.trf.xlu0
        %v2233 = vpop.trf.xlu0
        %v2234 = vpop.trf.xlu0
        %v2235 = vpop.trf.xlu0
        %v2236 = vpop.trf.xlu0
        %v2237 = vpop.trf.xlu0
        %v2238 = vpop.trf.xlu0
        %v2239 = vpop.trf.xlu0
        %v2240 = vpop.trf.xlu0
        %v2241 = vpop.trf.xlu0
        %v2242 = vpop.trf.xlu0
        %v2243 = vpop.trf.xlu0
        %v2244 = vpop.trf.xlu0
        %v2245 = vpop.trf.xlu0
        %v2246 = vpop.trf.xlu0
        %v2247 = vpop.trf.xlu0
        %v2249 = vsel %vm597, %v2232, 0
        %v2252 = vsel %vm597, %v2233, 0
        %v2255 = vsel %vm597, %v2234, 0
        %v2258 = vsel %vm597, %v2235, 0
        %v2261 = vsel %vm597, %v2236, 0
        %v2264 = vsel %vm597, %v2237, 0
        %v2267 = vsel %vm597, %v2238, 0
        %v2270 = vsel %vm597, %v2239, 0
        %v2273 = vsel %vm597, %v2240, 0
        %v2276 = vsel %vm597, %v2241, 0
        %v2279 = vsel %vm597, %v2242, 0
        %v2282 = vsel %vm597, %v2243, 0
        %v2285 = vsel %vm597, %v2244, 0
        %v2288 = vsel %vm597, %v2245, 0
        %v2291 = vsel %vm597, %v2246, 0
        %v2294 = vsel %vm597, %v2247, 0
        %2296 = vmatprep.subr.mxu0 0.0
        %2297 = vmatpush1.msra.mxu0 %v471
        %2298 = vmatprep.subr.mxu0 0.0
        %2299 = vmatpush1.msra.mxu0 0.0
        %2300 = vmatprep.subr.mxu0 0.0
        %2301 = vmatpush1.msra.mxu0 0.0
        %2302 = vmatprep.subr.mxu0 0.0
        %2303 = vmatpush1.msra.mxu0 0.0
        %2304 = vmatprep.subr.mxu0 0.0
        %2305 = vmatpush1.msra.mxu0 0.0
        %2306 = vmatprep.subr.mxu0 0.0
        %2307 = vmatpush1.msra.mxu0 0.0
        %2308 = vmatprep.subr.mxu0 0.0
        %2309 = vmatpush1.msra.mxu0 0.0
        %2310 = vmatprep.subr.mxu0 0.0
        %2311 = vmatpush1.msra.mxu0 0.0
        %2312 = vmatprep.subr.mxu0 0.0
        %2313 = vmatpush1.msra.mxu0 0.0
        %2314 = vmatprep.subr.mxu0 0.0
        %2315 = vmatpush1.msra.mxu0 0.0
        %2316 = vmatprep.subr.mxu0 0.0
        %2317 = vmatpush1.msra.mxu0 0.0
        %2318 = vmatprep.subr.mxu0 0.0
        %2319 = vmatpush1.msra.mxu0 0.0
        %2320 = vmatprep.subr.mxu0 0.0
        %2321 = vmatpush1.msra.mxu0 0.0
        %2322 = vmatprep.subr.mxu0 0.0
        %2323 = vmatpush1.msra.mxu0 0.0
        %2324 = vmatprep.subr.mxu0 0.0
        %2325 = vmatpush1.msra.mxu0 0.0
        %2326 = vmatprep.subr.mxu0 0.0
        %2327 = vmatpush1.msra.mxu0 0.0
        %2328 = vmatprep.subr.mxu0 0.0
        %2329 = vmatpush1.msra.mxu0 0.0
        %2330 = vmatprep.subr.mxu0 0.0
        %2331 = vmatpush1.msra.mxu0 0.0
        %2332 = vmatprep.subr.mxu0 0.0
        %2333 = vmatpush1.msra.mxu0 0.0
        %2334 = vmatprep.subr.mxu0 0.0
        %2335 = vmatpush1.msra.mxu0 0.0
        %2336 = vmatprep.subr.mxu0 0.0
        %2337 = vmatpush1.msra.mxu0 0.0
        %2338 = vmatprep.subr.mxu0 0.0
        %2339 = vmatpush1.msra.mxu0 0.0
        %2340 = vmatprep.subr.mxu0 0.0
        %2341 = vmatpush1.msra.mxu0 0.0
        %2342 = vmatprep.subr.mxu0 0.0
        %2343 = vmatpush1.msra.mxu0 0.0
        %2344 = vmatprep.subr.mxu0 0.0
        %2345 = vmatpush1.msra.mxu0 0.0
        %2346 = vmatprep.subr.mxu0 0.0
        %2347 = vmatpush1.msra.mxu0 0.0
        %2348 = vmatprep.subr.mxu0 0.0
        %2349 = vmatpush1.msra.mxu0 0.0
        %2350 = vmatprep.subr.mxu0 0.0
        %2351 = vmatpush1.msra.mxu0 0.0
        %2352 = vmatprep.subr.mxu0 0.0
        %2353 = vmatpush1.msra.mxu0 0.0
        %2354 = vmatprep.subr.mxu0 0.0
        %2355 = vmatpush1.msra.mxu0 0.0
        %2356 = vmatprep.subr.mxu0 0.0
        %2357 = vmatpush1.msra.mxu0 0.0
        %2358 = vmatprep.subr.mxu0 0.0
        %2359 = vmatpush1.msra.mxu0 0.0
        %2360 = vmatprep.mubr.f32.mxu0 0.0
        %2361 = vmatmul.mubr.f32.gmra.mrb[0].mxu0 %v2249
        %v2362 = vpop.f32.mrb[0].mxu0
        %v2363 = vadd.f32 0.0, %v2362
        %v2364 = vpop.f32.mrb[0].mxu0
        %2365 = vmatprep.mubr.f32.mxu0 0.0
        %2366 = vmatmul.mubr.f32.gmra.mrb[0].mxu0 %v2252
        %v2367 = vpop.f32.mrb[0].mxu0
        %v2368 = vadd.f32 0.0, %v2367
        %v2369 = vpop.f32.mrb[0].mxu0
        %2370 = vmatprep.mubr.f32.mxu0 0.0
        %2371 = vmatmul.mubr.f32.gmra.mrb[0].mxu0 %v2255
        %v2372 = vpop.f32.mrb[0].mxu0
        %v2373 = vadd.f32 0.0, %v2372
        %v2374 = vpop.f32.mrb[0].mxu0
        %2375 = vmatprep.mubr.f32.mxu0 0.0
        %2376 = vmatmul.mubr.f32.gmra.mrb[0].mxu0 %v2258
        %v2377 = vpop.f32.mrb[0].mxu0
        %v2378 = vadd.f32 0.0, %v2377
        %v2379 = vpop.f32.mrb[0].mxu0
        %2380 = vmatprep.mubr.f32.mxu0 0.0
        %2381 = vmatmul.mubr.f32.gmra.mrb[0].mxu0 %v2261
        %v2382 = vpop.f32.mrb[0].mxu0
        %v2383 = vadd.f32 0.0, %v2382
        %v2384 = vpop.f32.mrb[0].mxu0
        %2385 = vmatprep.mubr.f32.mxu0 0.0
        %2386 = vmatmul.mubr.f32.gmra.mrb[0].mxu0 %v2264
        %v2387 = vpop.f32.mrb[0].mxu0
        %v2388 = vadd.f32 0.0, %v2387
        %v2389 = vpop.f32.mrb[0].mxu0
        %2390 = vmatprep.mubr.f32.mxu0 0.0
        %2391 = vmatmul.mubr.f32.gmra.mrb[0].mxu0 %v2267
        %v2392 = vpop.f32.mrb[0].mxu0
        %v2393 = vadd.f32 0.0, %v2392
        %v2394 = vpop.f32.mrb[0].mxu0
        %2395 = vmatprep.mubr.f32.mxu0 0.0
        %2396 = vmatmul.mubr.f32.gmra.mrb[0].mxu0 %v2270
        %v2397 = vpop.f32.mrb[0].mxu0
        %v2398 = vadd.f32 0.0, %v2397
        %v2399 = vpop.f32.mrb[0].mxu0
        %2400 = vmatprep.mubr.f32.mxu0 0.0
        %2401 = vmatmul.mubr.f32.gmra.mrb[0].mxu0 %v2273
        %v2402 = vpop.f32.mrb[0].mxu0
        %v2403 = vadd.f32 0.0, %v2402
        %v2404 = vpop.f32.mrb[0].mxu0
        %2405 = vmatprep.mubr.f32.mxu0 0.0
        %2406 = vmatmul.mubr.f32.gmra.mrb[0].mxu0 %v2276
        %v2407 = vpop.f32.mrb[0].mxu0
        %v2408 = vadd.f32 0.0, %v2407
        %v2409 = vpop.f32.mrb[0].mxu0
        %2410 = vmatprep.mubr.f32.mxu0 0.0
        %2411 = vmatmul.mubr.f32.gmra.mrb[0].mxu0 %v2279
        %v2412 = vpop.f32.mrb[0].mxu0
        %v2413 = vadd.f32 0.0, %v2412
        %v2414 = vpop.f32.mrb[0].mxu0
        %2415 = vmatprep.mubr.f32.mxu0 0.0
        %2416 = vmatmul.mubr.f32.gmra.mrb[0].mxu0 %v2282
        %v2417 = vpop.f32.mrb[0].mxu0
        %v2418 = vadd.f32 0.0, %v2417
        %v2419 = vpop.f32.mrb[0].mxu0
        %2420 = vmatprep.mubr.f32.mxu0 0.0
        %2421 = vmatmul.mubr.f32.gmra.mrb[0].mxu0 %v2285
        %v2422 = vpop.f32.mrb[0].mxu0
        %v2423 = vadd.f32 0.0, %v2422
        %v2424 = vpop.f32.mrb[0].mxu0
        %2425 = vmatprep.mubr.f32.mxu0 0.0
        %2426 = vmatmul.mubr.f32.gmra.mrb[0].mxu0 %v2288
        %v2427 = vpop.f32.mrb[0].mxu0
        %v2428 = vadd.f32 0.0, %v2427
        %v2429 = vpop.f32.mrb[0].mxu0
        %2430 = vmatprep.mubr.f32.mxu0 0.0
        %2431 = vmatmul.mubr.f32.gmra.mrb[0].mxu0 %v2291
        %v2432 = vpop.f32.mrb[0].mxu0
        %v2433 = vadd.f32 0.0, %v2432
        %v2434 = vpop.f32.mrb[0].mxu0
        %2435 = vmatprep.mubr.f32.mxu0 0.0
        %2436 = vmatmul.mubr.f32.gmra.mrb[0].mxu0 %v2294
        %v2437 = vpop.f32.mrb[0].mxu0
        %v2438 = vadd.f32 0.0, %v2437
        %v2439 = vpop.f32.mrb[0].mxu0
        %2440 = vdwg.mxu0
        %v2441 = vmul.f32 %v2363, %v476
        %v2442 = vmul.f32 %v2368, %v477
        %v2443 = vmul.f32 %v2373, %v478
        %v2444 = vmul.f32 %v2378, %v479
        %v2445 = vmul.f32 %v2383, %v480
        %v2446 = vmul.f32 %v2388, %v481
        %v2447 = vmul.f32 %v2393, %v482
        %v2448 = vmul.f32 %v2398, %v483
        %v2449 = vmul.f32 %v2403, %v484
        %v2450 = vmul.f32 %v2408, %v485
        %v2451 = vmul.f32 %v2413, %v486
        %v2452 = vmul.f32 %v2418, %v487
        %v2453 = vmul.f32 %v2423, %v488
        %v2454 = vmul.f32 %v2428, %v489
        %v2455 = vmul.f32 %v2433, %v490
        %v2456 = vmul.f32 %v2438, %v491
        %2457 = vmatprep.subr.mxu0 0.0
        %2458 = vmatpush1.msra.mxu0 %v2441
        %2459 = vmatprep.subr.mxu0 0.0
        %2460 = vmatpush1.msra.mxu0 %v2442
        %2461 = vmatprep.subr.mxu0 0.0
        %2462 = vmatpush1.msra.mxu0 %v2443
        %2463 = vmatprep.subr.mxu0 0.0
        %2464 = vmatpush1.msra.mxu0 %v2444
        %2465 = vmatprep.subr.mxu0 0.0
        %2466 = vmatpush1.msra.mxu0 %v2445
        %2467 = vmatprep.subr.mxu0 0.0
        %2468 = vmatpush1.msra.mxu0 %v2446
        %2469 = vmatprep.subr.mxu0 0.0
        %2470 = vmatpush1.msra.mxu0 %v2447
        %2471 = vmatprep.subr.mxu0 0.0
        %2472 = vmatpush1.msra.mxu0 %v2448
        %2473 = vmatprep.subr.mxu0 0.0
        %2474 = vmatpush1.msra.mxu0 %v2449
        %2475 = vmatprep.subr.mxu0 0.0
        %2476 = vmatpush1.msra.mxu0 %v2450
        %2477 = vmatprep.subr.mxu0 0.0
        %2478 = vmatpush1.msra.mxu0 %v2451
        %2479 = vmatprep.subr.mxu0 0.0
        %2480 = vmatpush1.msra.mxu0 %v2452
        %2481 = vmatprep.subr.mxu0 0.0
        %2482 = vmatpush1.msra.mxu0 %v2453
        %2483 = vmatprep.subr.mxu0 0.0
        %2484 = vmatpush1.msra.mxu0 %v2454
        %2485 = vmatprep.subr.mxu0 0.0
        %2486 = vmatpush1.msra.mxu0 %v2455
        %2487 = vmatprep.subr.mxu0 0.0
        %2488 = vmatpush1.msra.mxu0 %v2456
        %2489 = vmatprep.subr.mxu0 0.0
        %2490 = vmatpush1.msra.mxu0 0.0
        %2491 = vmatprep.subr.mxu0 0.0
        %2492 = vmatpush1.msra.mxu0 0.0
        %2493 = vmatprep.subr.mxu0 0.0
        %2494 = vmatpush1.msra.mxu0 0.0
        %2495 = vmatprep.subr.mxu0 0.0
        %2496 = vmatpush1.msra.mxu0 0.0
        %2497 = vmatprep.subr.mxu0 0.0
        %2498 = vmatpush1.msra.mxu0 0.0
        %2499 = vmatprep.subr.mxu0 0.0
        %2500 = vmatpush1.msra.mxu0 0.0
        %2501 = vmatprep.subr.mxu0 0.0
        %2502 = vmatpush1.msra.mxu0 0.0
        %2503 = vmatprep.subr.mxu0 0.0
        %2504 = vmatpush1.msra.mxu0 0.0
        %2505 = vmatprep.subr.mxu0 0.0
        %2506 = vmatpush1.msra.mxu0 0.0
        %2507 = vmatprep.subr.mxu0 0.0
        %2508 = vmatpush1.msra.mxu0 0.0
        %2509 = vmatprep.subr.mxu0 0.0
        %2510 = vmatpush1.msra.mxu0 0.0
        %2511 = vmatprep.subr.mxu0 0.0
        %2512 = vmatpush1.msra.mxu0 0.0
        %2513 = vmatprep.subr.mxu0 0.0
        %2514 = vmatpush1.msra.mxu0 0.0
        %2515 = vmatprep.subr.mxu0 0.0
        %2516 = vmatpush1.msra.mxu0 0.0
        %2517 = vmatprep.subr.mxu0 0.0
        %2518 = vmatpush1.msra.mxu0 0.0
        %2519 = vmatprep.subr.mxu0 0.0
        %2520 = vmatpush1.msra.mxu0 0.0
        %2521 = vmatprep.mubr.f32.mxu0 0.0
        %2522 = vmatmul.mubr.f32.gmra.mrb[0].mxu0 %v492
        %v2523 = vpop.f32.mrb[0].mxu0
        %v2524 = vadd.f32 0.0, %v2523
        %v2525 = vpop.f32.mrb[0].mxu0
        %2526 = vmatprep.mubr.f32.mxu0 0.0
        %2527 = vmatmul.mubr.f32.gmra.mrb[0].mxu0 %v493
        %v2528 = vpop.f32.mrb[0].mxu0
        %v2529 = vadd.f32 0.0, %v2528
        %v2530 = vpop.f32.mrb[0].mxu0
        %2531 = vdwg.mxu0
        %2532 = vmatprep.subr.mxu0 0.0
        %2533 = vmatpush1.msra.mxu0 %v506
        %2534 = vmatprep.subr.mxu0 0.0
        %2535 = vmatpush1.msra.mxu0 %v507
        %2536 = vmatprep.subr.mxu0 0.0
        %2537 = vmatpush1.msra.mxu0 %v508
        %2538 = vmatprep.subr.mxu0 0.0
        %2539 = vmatpush1.msra.mxu0 %v509
        %2540 = vmatprep.subr.mxu0 0.0
        %2541 = vmatpush1.msra.mxu0 %v510
        %2542 = vmatprep.subr.mxu0 0.0
        %2543 = vmatpush1.msra.mxu0 %v511
        %2544 = vmatprep.subr.mxu0 0.0
        %2545 = vmatpush1.msra.mxu0 %v512
        %2546 = vmatprep.subr.mxu0 0.0
        %2547 = vmatpush1.msra.mxu0 %v513
        %2548 = vmatprep.subr.mxu0 0.0
        %2549 = vmatpush1.msra.mxu0 %v514
        %2550 = vmatprep.subr.mxu0 0.0
        %2551 = vmatpush1.msra.mxu0 %v515
        %2552 = vmatprep.subr.mxu0 0.0
        %2553 = vmatpush1.msra.mxu0 %v516
        %2554 = vmatprep.subr.mxu0 0.0
        %2555 = vmatpush1.msra.mxu0 %v517
        %2556 = vmatprep.subr.mxu0 0.0
        %2557 = vmatpush1.msra.mxu0 %v518
        %2558 = vmatprep.subr.mxu0 0.0
        %2559 = vmatpush1.msra.mxu0 %v519
        %2560 = vmatprep.subr.mxu0 0.0
        %2561 = vmatpush1.msra.mxu0 %v520
        %2562 = vmatprep.subr.mxu0 0.0
        %2563 = vmatpush1.msra.mxu0 %v521
        %2564 = vmatprep.subr.mxu0 0.0
        %2565 = vmatpush1.msra.mxu0 0.0
        %2566 = vmatprep.subr.mxu0 0.0
        %2567 = vmatpush1.msra.mxu0 0.0
        %2568 = vmatprep.subr.mxu0 0.0
        %2569 = vmatpush1.msra.mxu0 0.0
        %2570 = vmatprep.subr.mxu0 0.0
        %2571 = vmatpush1.msra.mxu0 0.0
        %2572 = vmatprep.subr.mxu0 0.0
        %2573 = vmatpush1.msra.mxu0 0.0
        %2574 = vmatprep.subr.mxu0 0.0
        %2575 = vmatpush1.msra.mxu0 0.0
        %2576 = vmatprep.subr.mxu0 0.0
        %2577 = vmatpush1.msra.mxu0 0.0
        %2578 = vmatprep.subr.mxu0 0.0
        %2579 = vmatpush1.msra.mxu0 0.0
        %2580 = vmatprep.subr.mxu0 0.0
        %2581 = vmatpush1.msra.mxu0 0.0
        %2582 = vmatprep.subr.mxu0 0.0
        %2583 = vmatpush1.msra.mxu0 0.0
        %2584 = vmatprep.subr.mxu0 0.0
        %2585 = vmatpush1.msra.mxu0 0.0
        %2586 = vmatprep.subr.mxu0 0.0
        %2587 = vmatpush1.msra.mxu0 0.0
        %2588 = vmatprep.subr.mxu0 0.0
        %2589 = vmatpush1.msra.mxu0 0.0
        %2590 = vmatprep.subr.mxu0 0.0
        %2591 = vmatpush1.msra.mxu0 0.0
        %2592 = vmatprep.subr.mxu0 0.0
        %2593 = vmatpush1.msra.mxu0 0.0
        %2594 = vmatprep.subr.mxu0 0.0
        %2595 = vmatpush1.msra.mxu0 0.0
        %2596 = vmatprep.mubr.f32.mxu0 0.0
        %2597 = vmatmul.mubr.f32.gmra.mrb[0].mxu0 %v2524
        %v2598 = vpop.f32.mrb[0].mxu0
        %v2599 = vadd.f32 0.0, %v2598
        %v2600 = vpop.f32.mrb[0].mxu0
        %2601 = vmatprep.mubr.f32.mxu0 0.0
        %2602 = vmatmul.mubr.f32.gmra.mrb[0].mxu0 %v2529
        %v2603 = vpop.f32.mrb[0].mxu0
        %v2604 = vadd.f32 0.0, %v2603
        %v2605 = vpop.f32.mrb[0].mxu0
        %2606 = vdwg.mxu0
        %v2607 = vmul.f32 %v2599, 0.03125
        %v2608 = vmul.f32 %v2604, 0.03125
        %v2609 = vtanh.pop %v2607
        %v2610 = vtanh.pop %v2608
        %v2611 = vmul.f32 %v965, %v2609
        %v2612 = vmul.f32 %v965, %v2610
        %v2613 = vadd.f32 %v504, %v2611
        %v2614 = vadd.f32 %v505, %v2612
        %v2616 = vsel %vm971, %v2613, 0
        %v2619 = vsel %vm971, %v2614, 0
        %2621 = vmatprep.subr.mxu0 0.0
        %2622 = vmatpush1.msra.mxu0 %v492
        %2623 = vmatprep.subr.mxu0 0.0
        %2624 = vmatpush1.msra.mxu0 %v493
        %2625 = vmatprep.subr.mxu0 0.0
        %2626 = vmatpush1.msra.mxu0 0.0
        %2627 = vmatprep.subr.mxu0 0.0
        %2628 = vmatpush1.msra.mxu0 0.0
        %2629 = vmatprep.subr.mxu0 0.0
        %2630 = vmatpush1.msra.mxu0 0.0
        %2631 = vmatprep.subr.mxu0 0.0
        %2632 = vmatpush1.msra.mxu0 0.0
        %2633 = vmatprep.subr.mxu0 0.0
        %2634 = vmatpush1.msra.mxu0 0.0
        %2635 = vmatprep.subr.mxu0 0.0
        %2636 = vmatpush1.msra.mxu0 0.0
        %2637 = vmatprep.subr.mxu0 0.0
        %2638 = vmatpush1.msra.mxu0 0.0
        %2639 = vmatprep.subr.mxu0 0.0
        %2640 = vmatpush1.msra.mxu0 0.0
        %2641 = vmatprep.subr.mxu0 0.0
        %2642 = vmatpush1.msra.mxu0 0.0
        %2643 = vmatprep.subr.mxu0 0.0
        %2644 = vmatpush1.msra.mxu0 0.0
        %2645 = vmatprep.subr.mxu0 0.0
        %2646 = vmatpush1.msra.mxu0 0.0
        %2647 = vmatprep.subr.mxu0 0.0
        %2648 = vmatpush1.msra.mxu0 0.0
        %2649 = vmatprep.subr.mxu0 0.0
        %2650 = vmatpush1.msra.mxu0 0.0
        %2651 = vmatprep.subr.mxu0 0.0
        %2652 = vmatpush1.msra.mxu0 0.0
        %2653 = vmatprep.subr.mxu0 0.0
        %2654 = vmatpush1.msra.mxu0 0.0
        %2655 = vmatprep.subr.mxu0 0.0
        %2656 = vmatpush1.msra.mxu0 0.0
        %2657 = vmatprep.subr.mxu0 0.0
        %2658 = vmatpush1.msra.mxu0 0.0
        %2659 = vmatprep.subr.mxu0 0.0
        %2660 = vmatpush1.msra.mxu0 0.0
        %2661 = vmatprep.subr.mxu0 0.0
        %2662 = vmatpush1.msra.mxu0 0.0
        %2663 = vmatprep.subr.mxu0 0.0
        %2664 = vmatpush1.msra.mxu0 0.0
        %2665 = vmatprep.subr.mxu0 0.0
        %2666 = vmatpush1.msra.mxu0 0.0
        %2667 = vmatprep.subr.mxu0 0.0
        %2668 = vmatpush1.msra.mxu0 0.0
        %2669 = vmatprep.subr.mxu0 0.0
        %2670 = vmatpush1.msra.mxu0 0.0
        %2671 = vmatprep.subr.mxu0 0.0
        %2672 = vmatpush1.msra.mxu0 0.0
        %2673 = vmatprep.subr.mxu0 0.0
        %2674 = vmatpush1.msra.mxu0 0.0
        %2675 = vmatprep.subr.mxu0 0.0
        %2676 = vmatpush1.msra.mxu0 0.0
        %2677 = vmatprep.subr.mxu0 0.0
        %2678 = vmatpush1.msra.mxu0 0.0
        %2679 = vmatprep.subr.mxu0 0.0
        %2680 = vmatpush1.msra.mxu0 0.0
        %2681 = vmatprep.subr.mxu0 0.0
        %2682 = vmatpush1.msra.mxu0 0.0
        %2683 = vmatprep.subr.mxu0 0.0
        %2684 = vmatpush1.msra.mxu0 0.0
        %2685 = vmatprep.mubr.f32.mxu0 0.0
        %2686 = vmatmul.mubr.f32.gmra.mrb[0].mxu0 %v2616
        %v2687 = vpop.f32.mrb[0].mxu0
        %v2688 = vadd.f32 0.0, %v2687
        %v2689 = vpop.f32.mrb[0].mxu0
        %2690 = vmatprep.mubr.f32.mxu0 0.0
        %2691 = vmatmul.mubr.f32.gmra.mrb[0].mxu0 %v2619
        %v2692 = vpop.f32.mrb[0].mxu0
        %v2693 = vadd.f32 0.0, %v2692
        %v2694 = vpop.f32.mrb[0].mxu0
        %2695 = vdwg.mxu0
        %2696 = vmatprep.subr.mxu0 0.0
        %2697 = vmatpush1.msra.mxu0 %v2688
        %2698 = vmatprep.subr.mxu0 0.0
        %2699 = vmatpush1.msra.mxu0 %v2693
        %2700 = vmatprep.subr.mxu0 0.0
        %2701 = vmatpush1.msra.mxu0 0.0
        %2702 = vmatprep.subr.mxu0 0.0
        %2703 = vmatpush1.msra.mxu0 0.0
        %2704 = vmatprep.subr.mxu0 0.0
        %2705 = vmatpush1.msra.mxu0 0.0
        %2706 = vmatprep.subr.mxu0 0.0
        %2707 = vmatpush1.msra.mxu0 0.0
        %2708 = vmatprep.subr.mxu0 0.0
        %2709 = vmatpush1.msra.mxu0 0.0
        %2710 = vmatprep.subr.mxu0 0.0
        %2711 = vmatpush1.msra.mxu0 0.0
        %2712 = vmatprep.subr.mxu0 0.0
        %2713 = vmatpush1.msra.mxu0 0.0
        %2714 = vmatprep.subr.mxu0 0.0
        %2715 = vmatpush1.msra.mxu0 0.0
        %2716 = vmatprep.subr.mxu0 0.0
        %2717 = vmatpush1.msra.mxu0 0.0
        %2718 = vmatprep.subr.mxu0 0.0
        %2719 = vmatpush1.msra.mxu0 0.0
        %2720 = vmatprep.subr.mxu0 0.0
        %2721 = vmatpush1.msra.mxu0 0.0
        %2722 = vmatprep.subr.mxu0 0.0
        %2723 = vmatpush1.msra.mxu0 0.0
        %2724 = vmatprep.subr.mxu0 0.0
        %2725 = vmatpush1.msra.mxu0 0.0
        %2726 = vmatprep.subr.mxu0 0.0
        %2727 = vmatpush1.msra.mxu0 0.0
        %2728 = vmatprep.subr.mxu0 0.0
        %2729 = vmatpush1.msra.mxu0 0.0
        %2730 = vmatprep.subr.mxu0 0.0
        %2731 = vmatpush1.msra.mxu0 0.0
        %2732 = vmatprep.subr.mxu0 0.0
        %2733 = vmatpush1.msra.mxu0 0.0
        %2734 = vmatprep.subr.mxu0 0.0
        %2735 = vmatpush1.msra.mxu0 0.0
        %2736 = vmatprep.subr.mxu0 0.0
        %2737 = vmatpush1.msra.mxu0 0.0
        %2738 = vmatprep.subr.mxu0 0.0
        %2739 = vmatpush1.msra.mxu0 0.0
        %2740 = vmatprep.subr.mxu0 0.0
        %2741 = vmatpush1.msra.mxu0 0.0
        %2742 = vmatprep.subr.mxu0 0.0
        %2743 = vmatpush1.msra.mxu0 0.0
        %2744 = vmatprep.subr.mxu0 0.0
        %2745 = vmatpush1.msra.mxu0 0.0
        %2746 = vmatprep.subr.mxu0 0.0
        %2747 = vmatpush1.msra.mxu0 0.0
        %2748 = vmatprep.subr.mxu0 0.0
        %2749 = vmatpush1.msra.mxu0 0.0
        %2750 = vmatprep.subr.mxu0 0.0
        %2751 = vmatpush1.msra.mxu0 0.0
        %2752 = vmatprep.subr.mxu0 0.0
        %2753 = vmatpush1.msra.mxu0 0.0
        %2754 = vmatprep.subr.mxu0 0.0
        %2755 = vmatpush1.msra.mxu0 0.0
        %2756 = vmatprep.subr.mxu0 0.0
        %2757 = vmatpush1.msra.mxu0 0.0
        %2758 = vmatprep.subr.mxu0 0.0
        %2759 = vmatpush1.msra.mxu0 0.0
        %2760 = vmatprep.mubr.f32.mxu0 0.0
        %2761 = vmatmul.mubr.f32.gmra.mrb[0].mxu0 %v1054
        %v2762 = vpop.f32.mrb[0].mxu0
        %v2763 = vadd.f32 0.0, %v2762
        %v2764 = vpop.f32.mrb[0].mxu0
        %2765 = vmatprep.mubr.f32.mxu0 0.0
        %2766 = vmatmul.mubr.f32.gmra.mrb[0].mxu0 %v1057
        %v2767 = vpop.f32.mrb[0].mxu0
        %v2768 = vadd.f32 0.0, %v2767
        %v2769 = vpop.f32.mrb[0].mxu0
        %2770 = vmatprep.mubr.f32.mxu0 0.0
        %2771 = vmatmul.mubr.f32.gmra.mrb[0].mxu0 %v1060
        %v2772 = vpop.f32.mrb[0].mxu0
        %v2773 = vadd.f32 0.0, %v2772
        %v2774 = vpop.f32.mrb[0].mxu0
        %2775 = vmatprep.mubr.f32.mxu0 0.0
        %2776 = vmatmul.mubr.f32.gmra.mrb[0].mxu0 %v1063
        %v2777 = vpop.f32.mrb[0].mxu0
        %v2778 = vadd.f32 0.0, %v2777
        %v2779 = vpop.f32.mrb[0].mxu0
        %2780 = vmatprep.mubr.f32.mxu0 0.0
        %2781 = vmatmul.mubr.f32.gmra.mrb[0].mxu0 %v1066
        %v2782 = vpop.f32.mrb[0].mxu0
        %v2783 = vadd.f32 0.0, %v2782
        %v2784 = vpop.f32.mrb[0].mxu0
        %2785 = vmatprep.mubr.f32.mxu0 0.0
        %2786 = vmatmul.mubr.f32.gmra.mrb[0].mxu0 %v1069
        %v2787 = vpop.f32.mrb[0].mxu0
        %v2788 = vadd.f32 0.0, %v2787
        %v2789 = vpop.f32.mrb[0].mxu0
        %2790 = vmatprep.mubr.f32.mxu0 0.0
        %2791 = vmatmul.mubr.f32.gmra.mrb[0].mxu0 %v1072
        %v2792 = vpop.f32.mrb[0].mxu0
        %v2793 = vadd.f32 0.0, %v2792
        %v2794 = vpop.f32.mrb[0].mxu0
        %2795 = vmatprep.mubr.f32.mxu0 0.0
        %2796 = vmatmul.mubr.f32.gmra.mrb[0].mxu0 %v1075
        %v2797 = vpop.f32.mrb[0].mxu0
        %v2798 = vadd.f32 0.0, %v2797
        %v2799 = vpop.f32.mrb[0].mxu0
        %2800 = vmatprep.mubr.f32.mxu0 0.0
        %2801 = vmatmul.mubr.f32.gmra.mrb[0].mxu0 %v1078
        %v2802 = vpop.f32.mrb[0].mxu0
        %v2803 = vadd.f32 0.0, %v2802
        %v2804 = vpop.f32.mrb[0].mxu0
        %2805 = vmatprep.mubr.f32.mxu0 0.0
        %2806 = vmatmul.mubr.f32.gmra.mrb[0].mxu0 %v1081
        %v2807 = vpop.f32.mrb[0].mxu0
        %v2808 = vadd.f32 0.0, %v2807
        %v2809 = vpop.f32.mrb[0].mxu0
        %2810 = vmatprep.mubr.f32.mxu0 0.0
        %2811 = vmatmul.mubr.f32.gmra.mrb[0].mxu0 %v1084
        %v2812 = vpop.f32.mrb[0].mxu0
        %v2813 = vadd.f32 0.0, %v2812
        %v2814 = vpop.f32.mrb[0].mxu0
        %2815 = vmatprep.mubr.f32.mxu0 0.0
        %2816 = vmatmul.mubr.f32.gmra.mrb[0].mxu0 %v1087
        %v2817 = vpop.f32.mrb[0].mxu0
        %v2818 = vadd.f32 0.0, %v2817
        %v2819 = vpop.f32.mrb[0].mxu0
        %2820 = vmatprep.mubr.f32.mxu0 0.0
        %2821 = vmatmul.mubr.f32.gmra.mrb[0].mxu0 %v1090
        %v2822 = vpop.f32.mrb[0].mxu0
        %v2823 = vadd.f32 0.0, %v2822
        %v2824 = vpop.f32.mrb[0].mxu0
        %2825 = vmatprep.mubr.f32.mxu0 0.0
        %2826 = vmatmul.mubr.f32.gmra.mrb[0].mxu0 %v1093
        %v2827 = vpop.f32.mrb[0].mxu0
        %v2828 = vadd.f32 0.0, %v2827
        %v2829 = vpop.f32.mrb[0].mxu0
        %2830 = vmatprep.mubr.f32.mxu0 0.0
        %2831 = vmatmul.mubr.f32.gmra.mrb[0].mxu0 %v1096
        %v2832 = vpop.f32.mrb[0].mxu0
        %v2833 = vadd.f32 0.0, %v2832
        %v2834 = vpop.f32.mrb[0].mxu0
        %2835 = vmatprep.mubr.f32.mxu0 0.0
        %2836 = vmatmul.mubr.f32.gmra.mrb[0].mxu0 %v1099
        %v2837 = vpop.f32.mrb[0].mxu0
        %v2838 = vadd.f32 0.0, %v2837
        %v2839 = vpop.f32.mrb[0].mxu0
        %2840 = vdwg.mxu0
        %v2841 = vmul.f32 %v2763, %v476
        %v2842 = vmul.f32 %v2768, %v477
        %v2843 = vmul.f32 %v2773, %v478
        %v2844 = vmul.f32 %v2778, %v479
        %v2845 = vmul.f32 %v2783, %v480
        %v2846 = vmul.f32 %v2788, %v481
        %v2847 = vmul.f32 %v2793, %v482
        %v2848 = vmul.f32 %v2798, %v483
        %v2849 = vmul.f32 %v2803, %v484
        %v2850 = vmul.f32 %v2808, %v485
        %v2851 = vmul.f32 %v2813, %v486
        %v2852 = vmul.f32 %v2818, %v487
        %v2853 = vmul.f32 %v2823, %v488
        %v2854 = vmul.f32 %v2828, %v489
        %v2855 = vmul.f32 %v2833, %v490
        %v2856 = vmul.f32 %v2838, %v491
        %2857 = vmatprep.subr.mxu0 0.0
        %2858 = vmatpush1.msra.mxu0 %v2841
        %2859 = vmatprep.subr.mxu0 0.0
        %2860 = vmatpush1.msra.mxu0 %v2842
        %2861 = vmatprep.subr.mxu0 0.0
        %2862 = vmatpush1.msra.mxu0 %v2843
        %2863 = vmatprep.subr.mxu0 0.0
        %2864 = vmatpush1.msra.mxu0 %v2844
        %2865 = vmatprep.subr.mxu0 0.0
        %2866 = vmatpush1.msra.mxu0 %v2845
        %2867 = vmatprep.subr.mxu0 0.0
        %2868 = vmatpush1.msra.mxu0 %v2846
        %2869 = vmatprep.subr.mxu0 0.0
        %2870 = vmatpush1.msra.mxu0 %v2847
        %2871 = vmatprep.subr.mxu0 0.0
        %2872 = vmatpush1.msra.mxu0 %v2848
        %2873 = vmatprep.subr.mxu0 0.0
        %2874 = vmatpush1.msra.mxu0 %v2849
        %2875 = vmatprep.subr.mxu0 0.0
        %2876 = vmatpush1.msra.mxu0 %v2850
        %2877 = vmatprep.subr.mxu0 0.0
        %2878 = vmatpush1.msra.mxu0 %v2851
        %2879 = vmatprep.subr.mxu0 0.0
        %2880 = vmatpush1.msra.mxu0 %v2852
        %2881 = vmatprep.subr.mxu0 0.0
        %2882 = vmatpush1.msra.mxu0 %v2853
        %2883 = vmatprep.subr.mxu0 0.0
        %2884 = vmatpush1.msra.mxu0 %v2854
        %2885 = vmatprep.subr.mxu0 0.0
        %2886 = vmatpush1.msra.mxu0 %v2855
        %2887 = vmatprep.subr.mxu0 0.0
        %2888 = vmatpush1.msra.mxu0 %v2856
        %2889 = vmatprep.subr.mxu0 0.0
        %2890 = vmatpush1.msra.mxu0 0.0
        %2891 = vmatprep.subr.mxu0 0.0
        %2892 = vmatpush1.msra.mxu0 0.0
        %2893 = vmatprep.subr.mxu0 0.0
        %2894 = vmatpush1.msra.mxu0 0.0
        %2895 = vmatprep.subr.mxu0 0.0
        %2896 = vmatpush1.msra.mxu0 0.0
        %2897 = vmatprep.subr.mxu0 0.0
        %2898 = vmatpush1.msra.mxu0 0.0
        %2899 = vmatprep.subr.mxu0 0.0
        %2900 = vmatpush1.msra.mxu0 0.0
        %2901 = vmatprep.subr.mxu0 0.0
        %2902 = vmatpush1.msra.mxu0 0.0
        %2903 = vmatprep.subr.mxu0 0.0
        %2904 = vmatpush1.msra.mxu0 0.0
        %2905 = vmatprep.subr.mxu0 0.0
        %2906 = vmatpush1.msra.mxu0 0.0
        %2907 = vmatprep.subr.mxu0 0.0
        %2908 = vmatpush1.msra.mxu0 0.0
        %2909 = vmatprep.subr.mxu0 0.0
        %2910 = vmatpush1.msra.mxu0 0.0
        %2911 = vmatprep.subr.mxu0 0.0
        %2912 = vmatpush1.msra.mxu0 0.0
        %2913 = vmatprep.subr.mxu0 0.0
        %2914 = vmatpush1.msra.mxu0 0.0
        %2915 = vmatprep.subr.mxu0 0.0
        %2916 = vmatpush1.msra.mxu0 0.0
        %2917 = vmatprep.subr.mxu0 0.0
        %2918 = vmatpush1.msra.mxu0 0.0
        %2919 = vmatprep.subr.mxu0 0.0
        %2920 = vmatpush1.msra.mxu0 0.0
        %2921 = vmatprep.mubr.f32.mxu0 0.0
        %2922 = vmatmul.mubr.f32.gmra.mrb[0].mxu0 %v215
        %v2923 = vpop.f32.mrb[0].mxu0
        %v2924 = vadd.f32 0.0, %v2923
        %v2925 = vpop.f32.mrb[0].mxu0
        %2926 = vdwg.mxu0
        %2927 = vrot.lane.b32.xlu0 %v554, 88
        %v2928 = vpop.permute.xlu0 %2927
        %2929 = vrot.lane.b32.xlu0 %v555, 88
        %v2930 = vpop.permute.xlu0 %2929
        %v2931 = vsel %vm226, %v2928, 0
        %v2933 = vsel %vm226, %v2930, 0
        %v2936 = vsel %vm257, %v2924, 0
        %2938 = vmatprep.subr.mxu0 0.0
        %2939 = vmatpush1.msra.mxu0 %v2936
        %2940 = vmatprep.subr.mxu0 0.0
        %2941 = vmatpush1.msra.mxu0 0.0
        %2942 = vmatprep.subr.mxu0 0.0
        %2943 = vmatpush1.msra.mxu0 0.0
        %2944 = vmatprep.subr.mxu0 0.0
        %2945 = vmatpush1.msra.mxu0 0.0
        %2946 = vmatprep.subr.mxu0 0.0
        %2947 = vmatpush1.msra.mxu0 0.0
        %2948 = vmatprep.subr.mxu0 0.0
        %2949 = vmatpush1.msra.mxu0 0.0
        %2950 = vmatprep.subr.mxu0 0.0
        %2951 = vmatpush1.msra.mxu0 0.0
        %2952 = vmatprep.subr.mxu0 0.0
        %2953 = vmatpush1.msra.mxu0 0.0
        %2954 = vmatprep.subr.mxu0 0.0
        %2955 = vmatpush1.msra.mxu0 0.0
        %2956 = vmatprep.subr.mxu0 0.0
        %2957 = vmatpush1.msra.mxu0 0.0
        %2958 = vmatprep.subr.mxu0 0.0
        %2959 = vmatpush1.msra.mxu0 0.0
        %2960 = vmatprep.subr.mxu0 0.0
        %2961 = vmatpush1.msra.mxu0 0.0
        %2962 = vmatprep.subr.mxu0 0.0
        %2963 = vmatpush1.msra.mxu0 0.0
        %2964 = vmatprep.subr.mxu0 0.0
        %2965 = vmatpush1.msra.mxu0 0.0
        %2966 = vmatprep.subr.mxu0 0.0
        %2967 = vmatpush1.msra.mxu0 0.0
        %2968 = vmatprep.subr.mxu0 0.0
        %2969 = vmatpush1.msra.mxu0 0.0
        %2970 = vmatprep.subr.mxu0 0.0
        %2971 = vmatpush1.msra.mxu0 0.0
        %2972 = vmatprep.subr.mxu0 0.0
        %2973 = vmatpush1.msra.mxu0 0.0
        %2974 = vmatprep.subr.mxu0 0.0
        %2975 = vmatpush1.msra.mxu0 0.0
        %2976 = vmatprep.subr.mxu0 0.0
        %2977 = vmatpush1.msra.mxu0 0.0
        %2978 = vmatprep.subr.mxu0 0.0
        %2979 = vmatpush1.msra.mxu0 0.0
        %2980 = vmatprep.subr.mxu0 0.0
        %2981 = vmatpush1.msra.mxu0 0.0
        %2982 = vmatprep.subr.mxu0 0.0
        %2983 = vmatpush1.msra.mxu0 0.0
        %2984 = vmatprep.subr.mxu0 0.0
        %2985 = vmatpush1.msra.mxu0 0.0
        %2986 = vmatprep.subr.mxu0 0.0
        %2987 = vmatpush1.msra.mxu0 0.0
        %2988 = vmatprep.subr.mxu0 0.0
        %2989 = vmatpush1.msra.mxu0 0.0
        %2990 = vmatprep.subr.mxu0 0.0
        %2991 = vmatpush1.msra.mxu0 0.0
        %2992 = vmatprep.subr.mxu0 0.0
        %2993 = vmatpush1.msra.mxu0 0.0
        %2994 = vmatprep.subr.mxu0 0.0
        %2995 = vmatpush1.msra.mxu0 0.0
        %2996 = vmatprep.subr.mxu0 0.0
        %2997 = vmatpush1.msra.mxu0 0.0
        %2998 = vmatprep.subr.mxu0 0.0
        %2999 = vmatpush1.msra.mxu0 0.0
        %3000 = vmatprep.subr.mxu0 0.0
        %3001 = vmatpush1.msra.mxu0 0.0
        %3002 = vmatprep.mubr.f32.mxu0 0.0
        %3003 = vmatmul.mubr.f32.gmra.mrb[0].mxu0 %v2931
        %v3004 = vpop.f32.mrb[0].mxu0
        %v3005 = vadd.f32 0.0, %v3004
        %v3006 = vpop.f32.mrb[0].mxu0
        %3007 = vmatprep.mubr.f32.mxu0 0.0
        %3008 = vmatmul.mubr.f32.gmra.mrb[0].mxu0 %v2933
        %v3009 = vpop.f32.mrb[0].mxu0
        %v3010 = vadd.f32 0.0, %v3009
        %v3011 = vpop.f32.mrb[0].mxu0
        %3012 = vdwg.mxu0
        %v3013 = vadd.f32 %v2208, %v3005
        %v3014 = vadd.f32 %v2213, %v3010
        %3015 = vset.pattern.permute.xlu0 0
        %3016 = vperm.xlu0 %3015, %v554
        %v3017 = vpop.permute.xlu0 %3016
        %3019 = vset.pattern.permute.xlu0 0
        %3020 = vperm.xlu0 %3019, %v555
        %v3021 = vpop.permute.xlu0 %3020
        %v3023 = vmul.f32 %v3013, %v3017
        %v3024 = vmul.f32 %v3014, %v3021
        %3025 = vset.pattern.permute.xlu0 1
        %3026 = vperm.xlu0 %3025, %v554
        %v3027 = vpop.permute.xlu0 %3026
        %3029 = vset.pattern.permute.xlu0 1
        %3030 = vperm.xlu0 %3029, %v555
        %v3031 = vpop.permute.xlu0 %3030
        %v3033 = vadd.f32 %v3023, %v3027
        %v3034 = vadd.f32 %v3024, %v3031
        %v3035 = vadd.f32 %v3033, %v472
        %v3036 = vadd.f32 %v3034, %v473
        %v3037 = vmax.f32 %v3035, 0.0
        %v3038 = vmax.f32 %v3036, 0.0
        %3039 = vmatprep.subr.mxu0 0.0
        %3040 = vmatpush1.msra.mxu0 %v506
        %3041 = vmatprep.subr.mxu0 0.0
        %3042 = vmatpush1.msra.mxu0 %v507
        %3043 = vmatprep.subr.mxu0 0.0
        %3044 = vmatpush1.msra.mxu0 %v508
        %3045 = vmatprep.subr.mxu0 0.0
        %3046 = vmatpush1.msra.mxu0 %v509
        %3047 = vmatprep.subr.mxu0 0.0
        %3048 = vmatpush1.msra.mxu0 %v510
        %3049 = vmatprep.subr.mxu0 0.0
        %3050 = vmatpush1.msra.mxu0 %v511
        %3051 = vmatprep.subr.mxu0 0.0
        %3052 = vmatpush1.msra.mxu0 %v512
        %3053 = vmatprep.subr.mxu0 0.0
        %3054 = vmatpush1.msra.mxu0 %v513
        %3055 = vmatprep.subr.mxu0 0.0
        %3056 = vmatpush1.msra.mxu0 %v514
        %3057 = vmatprep.subr.mxu0 0.0
        %3058 = vmatpush1.msra.mxu0 %v515
        %3059 = vmatprep.subr.mxu0 0.0
        %3060 = vmatpush1.msra.mxu0 %v516
        %3061 = vmatprep.subr.mxu0 0.0
        %3062 = vmatpush1.msra.mxu0 %v517
        %3063 = vmatprep.subr.mxu0 0.0
        %3064 = vmatpush1.msra.mxu0 %v518
        %3065 = vmatprep.subr.mxu0 0.0
        %3066 = vmatpush1.msra.mxu0 %v519
        %3067 = vmatprep.subr.mxu0 0.0
        %3068 = vmatpush1.msra.mxu0 %v520
        %3069 = vmatprep.subr.mxu0 0.0
        %3070 = vmatpush1.msra.mxu0 %v521
        %3071 = vmatprep.subr.mxu0 0.0
        %3072 = vmatpush1.msra.mxu0 0.0
        %3073 = vmatprep.subr.mxu0 0.0
        %3074 = vmatpush1.msra.mxu0 0.0
        %3075 = vmatprep.subr.mxu0 0.0
        %3076 = vmatpush1.msra.mxu0 0.0
        %3077 = vmatprep.subr.mxu0 0.0
        %3078 = vmatpush1.msra.mxu0 0.0
        %3079 = vmatprep.subr.mxu0 0.0
        %3080 = vmatpush1.msra.mxu0 0.0
        %3081 = vmatprep.subr.mxu0 0.0
        %3082 = vmatpush1.msra.mxu0 0.0
        %3083 = vmatprep.subr.mxu0 0.0
        %3084 = vmatpush1.msra.mxu0 0.0
        %3085 = vmatprep.subr.mxu0 0.0
        %3086 = vmatpush1.msra.mxu0 0.0
        %3087 = vmatprep.subr.mxu0 0.0
        %3088 = vmatpush1.msra.mxu0 0.0
        %3089 = vmatprep.subr.mxu0 0.0
        %3090 = vmatpush1.msra.mxu0 0.0
        %3091 = vmatprep.subr.mxu0 0.0
        %3092 = vmatpush1.msra.mxu0 0.0
        %3093 = vmatprep.subr.mxu0 0.0
        %3094 = vmatpush1.msra.mxu0 0.0
        %3095 = vmatprep.subr.mxu0 0.0
        %3096 = vmatpush1.msra.mxu0 0.0
        %3097 = vmatprep.subr.mxu0 0.0
        %3098 = vmatpush1.msra.mxu0 0.0
        %3099 = vmatprep.subr.mxu0 0.0
        %3100 = vmatpush1.msra.mxu0 0.0
        %3101 = vmatprep.subr.mxu0 0.0
        %3102 = vmatpush1.msra.mxu0 0.0
        %3103 = vmatprep.mubr.f32.mxu0 0.0
        %3104 = vmatmul.mubr.f32.gmra.mrb[0].mxu0 %v3037
        %v3105 = vpop.f32.mrb[0].mxu0
        %v3106 = vadd.f32 0.0, %v3105
        %v3107 = vpop.f32.mrb[0].mxu0
        %3108 = vmatprep.mubr.f32.mxu0 0.0
        %3109 = vmatmul.mubr.f32.gmra.mrb[0].mxu0 %v3038
        %v3110 = vpop.f32.mrb[0].mxu0
        %v3111 = vadd.f32 0.0, %v3110
        %v3112 = vpop.f32.mrb[0].mxu0
        %3113 = vdwg.mxu0
        %v3114 = vmul.f32 %v3106, 0.125
        %v3115 = vmul.f32 %v3111, 0.125
        %v3117 = vsel %vm971, %v3114, 0
        %v3120 = vsel %vm971, %v3115, 0
        %3122 = vmatprep.subr.mxu0 %v558
        %3123 = vmatpush1.msra.mxu0 %v557
        %3124 = vmatprep.subr.mxu0 %v560
        %3125 = vmatpush1.msra.mxu0 %v559
        %3126 = vmatprep.subr.mxu0 0.0
        %3127 = vmatpush1.msra.mxu0 0.0
        %3128 = vmatprep.subr.mxu0 0.0
        %3129 = vmatpush1.msra.mxu0 0.0
        %3130 = vmatprep.subr.mxu0 0.0
        %3131 = vmatpush1.msra.mxu0 0.0
        %3132 = vmatprep.subr.mxu0 0.0
        %3133 = vmatpush1.msra.mxu0 0.0
        %3134 = vmatprep.subr.mxu0 0.0
        %3135 = vmatpush1.msra.mxu0 0.0
        %3136 = vmatprep.subr.mxu0 0.0
        %3137 = vmatpush1.msra.mxu0 0.0
        %3138 = vmatprep.subr.mxu0 0.0
        %3139 = vmatpush1.msra.mxu0 0.0
        %3140 = vmatprep.subr.mxu0 0.0
        %3141 = vmatpush1.msra.mxu0 0.0
        %3142 = vmatprep.subr.mxu0 0.0
        %3143 = vmatpush1.msra.mxu0 0.0
        %3144 = vmatprep.subr.mxu0 0.0
        %3145 = vmatpush1.msra.mxu0 0.0
        %3146 = vmatprep.subr.mxu0 0.0
        %3147 = vmatpush1.msra.mxu0 0.0
        %3148 = vmatprep.subr.mxu0 0.0
        %3149 = vmatpush1.msra.mxu0 0.0
        %3150 = vmatprep.subr.mxu0 0.0
        %3151 = vmatpush1.msra.mxu0 0.0
        %3152 = vmatprep.subr.mxu0 0.0
        %3153 = vmatpush1.msra.mxu0 0.0
        %3154 = vmatprep.subr.mxu0 0.0
        %3155 = vmatpush1.msra.mxu0 0.0
        %3156 = vmatprep.subr.mxu0 0.0
        %3157 = vmatpush1.msra.mxu0 0.0
        %3158 = vmatprep.subr.mxu0 0.0
        %3159 = vmatpush1.msra.mxu0 0.0
        %3160 = vmatprep.subr.mxu0 0.0
        %3161 = vmatpush1.msra.mxu0 0.0
        %3162 = vmatprep.subr.mxu0 0.0
        %3163 = vmatpush1.msra.mxu0 0.0
        %3164 = vmatprep.subr.mxu0 0.0
        %3165 = vmatpush1.msra.mxu0 0.0
        %3166 = vmatprep.subr.mxu0 0.0
        %3167 = vmatpush1.msra.mxu0 0.0
        %3168 = vmatprep.subr.mxu0 0.0
        %3169 = vmatpush1.msra.mxu0 0.0
        %3170 = vmatprep.subr.mxu0 0.0
        %3171 = vmatpush1.msra.mxu0 0.0
        %3172 = vmatprep.subr.mxu0 0.0
        %3173 = vmatpush1.msra.mxu0 0.0
        %3174 = vmatprep.subr.mxu0 0.0
        %3175 = vmatpush1.msra.mxu0 0.0
        %3176 = vmatprep.subr.mxu0 0.0
        %3177 = vmatpush1.msra.mxu0 0.0
        %3178 = vmatprep.subr.mxu0 0.0
        %3179 = vmatpush1.msra.mxu0 0.0
        %3180 = vmatprep.subr.mxu0 0.0
        %3181 = vmatpush1.msra.mxu0 0.0
        %3182 = vmatprep.subr.mxu0 0.0
        %3183 = vmatpush1.msra.mxu0 0.0
        %3184 = vmatprep.subr.mxu0 0.0
        %3185 = vmatpush1.msra.mxu0 0.0
        %3186 = vmatprep.mubr.f32.mxu0 0.0
        %3187 = vmatmul.mubr.f32.gmra.mrb[0].mxu0 %v3117
        %v3188 = vpop.f32.mrb[0].mxu0
        %v3189 = vadd.f32 0.0, %v3188
        %v3190 = vpop.f32.mrb[0].mxu0
        %v3191 = vadd.f32 0.0, %v3190
        %3192 = vmatprep.mubr.f32.mxu0 0.0
        %3193 = vmatmul.mubr.f32.gmra.mrb[0].mxu0 %v3120
        %v3194 = vpop.f32.mrb[0].mxu0
        %v3195 = vadd.f32 0.0, %v3194
        %v3196 = vpop.f32.mrb[0].mxu0
        %v3197 = vadd.f32 0.0, %v3196
        %3198 = vdwg.mxu0
        %v3199 = vmul.f32 %v3189, %v561
        %v3200 = vmul.f32 %v3191, %v562
        %v3201 = vmul.f32 %v3195, %v563
        %v3202 = vmul.f32 %v3197, %v564
        %3203 = vmatprep.subr.mxu0 0.0
        %3204 = vmatpush1.msra.mxu0 %v522
        %3205 = vmatprep.subr.mxu0 0.0
        %3206 = vmatpush1.msra.mxu0 %v523
        %3207 = vmatprep.subr.mxu0 0.0
        %3208 = vmatpush1.msra.mxu0 %v524
        %3209 = vmatprep.subr.mxu0 0.0
        %3210 = vmatpush1.msra.mxu0 %v525
        %3211 = vmatprep.subr.mxu0 0.0
        %3212 = vmatpush1.msra.mxu0 %v526
        %3213 = vmatprep.subr.mxu0 0.0
        %3214 = vmatpush1.msra.mxu0 %v527
        %3215 = vmatprep.subr.mxu0 0.0
        %3216 = vmatpush1.msra.mxu0 %v528
        %3217 = vmatprep.subr.mxu0 0.0
        %3218 = vmatpush1.msra.mxu0 %v529
        %3219 = vmatprep.subr.mxu0 0.0
        %3220 = vmatpush1.msra.mxu0 %v530
        %3221 = vmatprep.subr.mxu0 0.0
        %3222 = vmatpush1.msra.mxu0 %v531
        %3223 = vmatprep.subr.mxu0 0.0
        %3224 = vmatpush1.msra.mxu0 %v532
        %3225 = vmatprep.subr.mxu0 0.0
        %3226 = vmatpush1.msra.mxu0 %v533
        %3227 = vmatprep.subr.mxu0 0.0
        %3228 = vmatpush1.msra.mxu0 %v534
        %3229 = vmatprep.subr.mxu0 0.0
        %3230 = vmatpush1.msra.mxu0 %v535
        %3231 = vmatprep.subr.mxu0 0.0
        %3232 = vmatpush1.msra.mxu0 %v536
        %3233 = vmatprep.subr.mxu0 0.0
        %3234 = vmatpush1.msra.mxu0 %v537
        %3235 = vmatprep.subr.mxu0 0.0
        %3236 = vmatpush1.msra.mxu0 %v538
        %3237 = vmatprep.subr.mxu0 0.0
        %3238 = vmatpush1.msra.mxu0 %v539
        %3239 = vmatprep.subr.mxu0 0.0
        %3240 = vmatpush1.msra.mxu0 %v540
        %3241 = vmatprep.subr.mxu0 0.0
        %3242 = vmatpush1.msra.mxu0 %v541
        %3243 = vmatprep.subr.mxu0 0.0
        %3244 = vmatpush1.msra.mxu0 %v542
        %3245 = vmatprep.subr.mxu0 0.0
        %3246 = vmatpush1.msra.mxu0 %v543
        %3247 = vmatprep.subr.mxu0 0.0
        %3248 = vmatpush1.msra.mxu0 %v544
        %3249 = vmatprep.subr.mxu0 0.0
        %3250 = vmatpush1.msra.mxu0 %v545
        %3251 = vmatprep.subr.mxu0 0.0
        %3252 = vmatpush1.msra.mxu0 %v546
        %3253 = vmatprep.subr.mxu0 0.0
        %3254 = vmatpush1.msra.mxu0 %v547
        %3255 = vmatprep.subr.mxu0 0.0
        %3256 = vmatpush1.msra.mxu0 %v548
        %3257 = vmatprep.subr.mxu0 0.0
        %3258 = vmatpush1.msra.mxu0 %v549
        %3259 = vmatprep.subr.mxu0 0.0
        %3260 = vmatpush1.msra.mxu0 %v550
        %3261 = vmatprep.subr.mxu0 0.0
        %3262 = vmatpush1.msra.mxu0 %v551
        %3263 = vmatprep.subr.mxu0 0.0
        %3264 = vmatpush1.msra.mxu0 %v552
        %3265 = vmatprep.subr.mxu0 0.0
        %3266 = vmatpush1.msra.mxu0 %v553
        %3267 = vmatprep.mubr.f32.mxu0 %v3200
        %3268 = vmatmul.mubr.f32.gmra.mrb[0].mxu0 %v3199
        %v3269 = vpop.f32.mrb[0].mxu0
        %v3270 = vadd.f32 0.0, %v3269
        %v3271 = vpop.f32.mrb[0].mxu0
        %3272 = vmatprep.mubr.f32.mxu0 %v3202
        %3273 = vmatmul.mubr.f32.gmra.mrb[0].mxu0 %v3201
        %v3274 = vpop.f32.mrb[0].mxu0
        %v3275 = vadd.f32 0.0, %v3274
        %v3276 = vpop.f32.mrb[0].mxu0
        %3277 = vdwg.mxu0
        %v3278 = vsel %vm971, %v3270, 0.0
        %v3279 = vsel %vm971, %v3275, 0.0
        %v3280 = vadd.f32 %v3278, %v3279
        %v3281 = vrot.slane %v3280, 4
        %v3282 = vadd.f32 %v3280, %v3281
        %v3283 = vrot.slane %v3282, 2
        %v3284 = vadd.f32 %v3282, %v3283
        %v3285 = vrot.slane %v3284, 1
        %v3286 = vadd.f32 %v3284, %v3285
        %3287 = vset.pattern.permute.xlu0 14
        %3288 = vperm.xlu0 %3287, %v554
        %v3289 = vpop.permute.xlu0 %3288
        %v3291 = vadd.f32 %v3286, %v3289
        %v3292 = vsub.f32 0.0, %v3291
        %v3293 = vmul.f32 %v3292, 1.442695
        %v3294 = vpow.pop %v3293
        %v3295 = vadd.f32 %v3294, 1.0
        %v3296 = vrcp.pop %v3295
        %v3297 = vmul.f32 1.0, %v3296
        %v3299 = vsel %vm971, %v3297, 0
        %3301 = vmatprep.subr.mxu0 0.0
        %3302 = vmatpush1.msra.mxu0 %v492
        %3303 = vmatprep.subr.mxu0 0.0
        %3304 = vmatpush1.msra.mxu0 %v493
        %3305 = vmatprep.subr.mxu0 0.0
        %3306 = vmatpush1.msra.mxu0 0.0
        %3307 = vmatprep.subr.mxu0 0.0
        %3308 = vmatpush1.msra.mxu0 0.0
        %3309 = vmatprep.subr.mxu0 0.0
        %3310 = vmatpush1.msra.mxu0 0.0
        %3311 = vmatprep.subr.mxu0 0.0
        %3312 = vmatpush1.msra.mxu0 0.0
        %3313 = vmatprep.subr.mxu0 0.0
        %3314 = vmatpush1.msra.mxu0 0.0
        %3315 = vmatprep.subr.mxu0 0.0
        %3316 = vmatpush1.msra.mxu0 0.0
        %3317 = vmatprep.subr.mxu0 0.0
        %3318 = vmatpush1.msra.mxu0 0.0
        %3319 = vmatprep.subr.mxu0 0.0
        %3320 = vmatpush1.msra.mxu0 0.0
        %3321 = vmatprep.subr.mxu0 0.0
        %3322 = vmatpush1.msra.mxu0 0.0
        %3323 = vmatprep.subr.mxu0 0.0
        %3324 = vmatpush1.msra.mxu0 0.0
        %3325 = vmatprep.subr.mxu0 0.0
        %3326 = vmatpush1.msra.mxu0 0.0
        %3327 = vmatprep.subr.mxu0 0.0
        %3328 = vmatpush1.msra.mxu0 0.0
        %3329 = vmatprep.subr.mxu0 0.0
        %3330 = vmatpush1.msra.mxu0 0.0
        %3331 = vmatprep.subr.mxu0 0.0
        %3332 = vmatpush1.msra.mxu0 0.0
        %3333 = vmatprep.subr.mxu0 0.0
        %3334 = vmatpush1.msra.mxu0 0.0
        %3335 = vmatprep.subr.mxu0 0.0
        %3336 = vmatpush1.msra.mxu0 0.0
        %3337 = vmatprep.subr.mxu0 0.0
        %3338 = vmatpush1.msra.mxu0 0.0
        %3339 = vmatprep.subr.mxu0 0.0
        %3340 = vmatpush1.msra.mxu0 0.0
        %3341 = vmatprep.subr.mxu0 0.0
        %3342 = vmatpush1.msra.mxu0 0.0
        %3343 = vmatprep.subr.mxu0 0.0
        %3344 = vmatpush1.msra.mxu0 0.0
        %3345 = vmatprep.subr.mxu0 0.0
        %3346 = vmatpush1.msra.mxu0 0.0
        %3347 = vmatprep.subr.mxu0 0.0
        %3348 = vmatpush1.msra.mxu0 0.0
        %3349 = vmatprep.subr.mxu0 0.0
        %3350 = vmatpush1.msra.mxu0 0.0
        %3351 = vmatprep.subr.mxu0 0.0
        %3352 = vmatpush1.msra.mxu0 0.0
        %3353 = vmatprep.subr.mxu0 0.0
        %3354 = vmatpush1.msra.mxu0 0.0
        %3355 = vmatprep.subr.mxu0 0.0
        %3356 = vmatpush1.msra.mxu0 0.0
        %3357 = vmatprep.subr.mxu0 0.0
        %3358 = vmatpush1.msra.mxu0 0.0
        %3359 = vmatprep.subr.mxu0 0.0
        %3360 = vmatpush1.msra.mxu0 0.0
        %3361 = vmatprep.subr.mxu0 0.0
        %3362 = vmatpush1.msra.mxu0 0.0
        %3363 = vmatprep.subr.mxu0 0.0
        %3364 = vmatpush1.msra.mxu0 0.0
        %3365 = vmatprep.mubr.f32.mxu0 0.0
        %3366 = vmatmul.mubr.f32.gmra.mrb[0].mxu0 %v3299
        %v3367 = vpop.f32.mrb[0].mxu0
        %v3368 = vadd.f32 1.0, %v3367
        %v3369 = vpop.f32.mrb[0].mxu0
        %3370 = vdwg.mxu0
        %v3371 = vlaneseq
        %v3372 = vshrl.u32 %v3371, 7
        %v3373 = vsub.s32 0, %v3372
        %v3374 = vrot.slane %v3368, %v3373
        %v3375 = vmul.f32 %v3037, %v3374
        %v3376 = vmul.f32 %v3038, %v3374
        %3377 = vrot.lane.b32.xlu0 %v506, 112
        %v3378 = vpop.permute.xlu0 %3377
        %3379 = vrot.lane.b32.xlu0 %v507, 112
        %v3380 = vpop.permute.xlu0 %3379
        %3381 = vrot.lane.b32.xlu0 %v508, 112
        %v3382 = vpop.permute.xlu0 %3381
        %3383 = vrot.lane.b32.xlu0 %v509, 112
        %v3384 = vpop.permute.xlu0 %3383
        %3385 = vrot.lane.b32.xlu0 %v510, 112
        %v3386 = vpop.permute.xlu0 %3385
        %3387 = vrot.lane.b32.xlu0 %v511, 112
        %v3388 = vpop.permute.xlu0 %3387
        %3389 = vrot.lane.b32.xlu0 %v512, 112
        %v3390 = vpop.permute.xlu0 %3389
        %3391 = vrot.lane.b32.xlu0 %v513, 112
        %v3392 = vpop.permute.xlu0 %3391
        %3393 = vrot.lane.b32.xlu0 %v514, 112
        %v3394 = vpop.permute.xlu0 %3393
        %3395 = vrot.lane.b32.xlu0 %v515, 112
        %v3396 = vpop.permute.xlu0 %3395
        %3397 = vrot.lane.b32.xlu0 %v516, 112
        %v3398 = vpop.permute.xlu0 %3397
        %3399 = vrot.lane.b32.xlu0 %v517, 112
        %v3400 = vpop.permute.xlu0 %3399
        %3401 = vrot.lane.b32.xlu0 %v518, 112
        %v3402 = vpop.permute.xlu0 %3401
        %3403 = vrot.lane.b32.xlu0 %v519, 112
        %v3404 = vpop.permute.xlu0 %3403
        %3405 = vrot.lane.b32.xlu0 %v520, 112
        %v3406 = vpop.permute.xlu0 %3405
        %3407 = vrot.lane.b32.xlu0 %v521, 112
        %v3408 = vpop.permute.xlu0 %3407
        %3425 = vmatprep.subr.mxu0 0.0
        %3426 = vmatpush1.msra.mxu0 %v3378
        %3427 = vmatprep.subr.mxu0 0.0
        %3428 = vmatpush1.msra.mxu0 %v3380
        %3429 = vmatprep.subr.mxu0 0.0
        %3430 = vmatpush1.msra.mxu0 %v3382
        %3431 = vmatprep.subr.mxu0 0.0
        %3432 = vmatpush1.msra.mxu0 %v3384
        %3433 = vmatprep.subr.mxu0 0.0
        %3434 = vmatpush1.msra.mxu0 %v3386
        %3435 = vmatprep.subr.mxu0 0.0
        %3436 = vmatpush1.msra.mxu0 %v3388
        %3437 = vmatprep.subr.mxu0 0.0
        %3438 = vmatpush1.msra.mxu0 %v3390
        %3439 = vmatprep.subr.mxu0 0.0
        %3440 = vmatpush1.msra.mxu0 %v3392
        %3441 = vmatprep.subr.mxu0 0.0
        %3442 = vmatpush1.msra.mxu0 %v3394
        %3443 = vmatprep.subr.mxu0 0.0
        %3444 = vmatpush1.msra.mxu0 %v3396
        %3445 = vmatprep.subr.mxu0 0.0
        %3446 = vmatpush1.msra.mxu0 %v3398
        %3447 = vmatprep.subr.mxu0 0.0
        %3448 = vmatpush1.msra.mxu0 %v3400
        %3449 = vmatprep.subr.mxu0 0.0
        %3450 = vmatpush1.msra.mxu0 %v3402
        %3451 = vmatprep.subr.mxu0 0.0
        %3452 = vmatpush1.msra.mxu0 %v3404
        %3453 = vmatprep.subr.mxu0 0.0
        %3454 = vmatpush1.msra.mxu0 %v3406
        %3455 = vmatprep.subr.mxu0 0.0
        %3456 = vmatpush1.msra.mxu0 %v3408
        %3457 = vmatprep.subr.mxu0 0.0
        %3458 = vmatpush1.msra.mxu0 0.0
        %3459 = vmatprep.subr.mxu0 0.0
        %3460 = vmatpush1.msra.mxu0 0.0
        %3461 = vmatprep.subr.mxu0 0.0
        %3462 = vmatpush1.msra.mxu0 0.0
        %3463 = vmatprep.subr.mxu0 0.0
        %3464 = vmatpush1.msra.mxu0 0.0
        %3465 = vmatprep.subr.mxu0 0.0
        %3466 = vmatpush1.msra.mxu0 0.0
        %3467 = vmatprep.subr.mxu0 0.0
        %3468 = vmatpush1.msra.mxu0 0.0
        %3469 = vmatprep.subr.mxu0 0.0
        %3470 = vmatpush1.msra.mxu0 0.0
        %3471 = vmatprep.subr.mxu0 0.0
        %3472 = vmatpush1.msra.mxu0 0.0
        %3473 = vmatprep.subr.mxu0 0.0
        %3474 = vmatpush1.msra.mxu0 0.0
        %3475 = vmatprep.subr.mxu0 0.0
        %3476 = vmatpush1.msra.mxu0 0.0
        %3477 = vmatprep.subr.mxu0 0.0
        %3478 = vmatpush1.msra.mxu0 0.0
        %3479 = vmatprep.subr.mxu0 0.0
        %3480 = vmatpush1.msra.mxu0 0.0
        %3481 = vmatprep.subr.mxu0 0.0
        %3482 = vmatpush1.msra.mxu0 0.0
        %3483 = vmatprep.subr.mxu0 0.0
        %3484 = vmatpush1.msra.mxu0 0.0
        %3485 = vmatprep.subr.mxu0 0.0
        %3486 = vmatpush1.msra.mxu0 0.0
        %3487 = vmatprep.subr.mxu0 0.0
        %3488 = vmatpush1.msra.mxu0 0.0
        %3489 = vmatprep.mubr.f32.mxu0 0.0
        %3490 = vmatmul.mubr.f32.gmra.mrb[0].mxu0 %v3375
        %v3491 = vpop.f32.mrb[0].mxu0
        %v3492 = vadd.f32 0.0, %v3491
        %v3493 = vpop.f32.mrb[0].mxu0
        %3494 = vmatprep.mubr.f32.mxu0 0.0
        %3495 = vmatmul.mubr.f32.gmra.mrb[0].mxu0 %v3376
        %v3496 = vpop.f32.mrb[0].mxu0
        %v3497 = vadd.f32 0.0, %v3496
        %v3498 = vpop.f32.mrb[0].mxu0
        %3499 = vdwg.mxu0
        %v3501 = vsel %vm597, %v3492, 0
        %v3504 = vsel %vm597, %v3497, 0
        %3506 = vmatprep.subr.mxu0 0.0
        %3507 = vmatpush1.msra.mxu0 %v495
        %3508 = vmatprep.subr.mxu0 0.0
        %3509 = vmatpush1.msra.mxu0 0.0
        %3510 = vmatprep.subr.mxu0 0.0
        %3511 = vmatpush1.msra.mxu0 0.0
        %3512 = vmatprep.subr.mxu0 0.0
        %3513 = vmatpush1.msra.mxu0 0.0
        %3514 = vmatprep.subr.mxu0 0.0
        %3515 = vmatpush1.msra.mxu0 0.0
        %3516 = vmatprep.subr.mxu0 0.0
        %3517 = vmatpush1.msra.mxu0 0.0
        %3518 = vmatprep.subr.mxu0 0.0
        %3519 = vmatpush1.msra.mxu0 0.0
        %3520 = vmatprep.subr.mxu0 0.0
        %3521 = vmatpush1.msra.mxu0 0.0
        %3522 = vmatprep.subr.mxu0 0.0
        %3523 = vmatpush1.msra.mxu0 0.0
        %3524 = vmatprep.subr.mxu0 0.0
        %3525 = vmatpush1.msra.mxu0 0.0
        %3526 = vmatprep.subr.mxu0 0.0
        %3527 = vmatpush1.msra.mxu0 0.0
        %3528 = vmatprep.subr.mxu0 0.0
        %3529 = vmatpush1.msra.mxu0 0.0
        %3530 = vmatprep.subr.mxu0 0.0
        %3531 = vmatpush1.msra.mxu0 0.0
        %3532 = vmatprep.subr.mxu0 0.0
        %3533 = vmatpush1.msra.mxu0 0.0
        %3534 = vmatprep.subr.mxu0 0.0
        %3535 = vmatpush1.msra.mxu0 0.0
        %3536 = vmatprep.subr.mxu0 0.0
        %3537 = vmatpush1.msra.mxu0 0.0
        %3538 = vmatprep.subr.mxu0 0.0
        %3539 = vmatpush1.msra.mxu0 0.0
        %3540 = vmatprep.subr.mxu0 0.0
        %3541 = vmatpush1.msra.mxu0 0.0
        %3542 = vmatprep.subr.mxu0 0.0
        %3543 = vmatpush1.msra.mxu0 0.0
        %3544 = vmatprep.subr.mxu0 0.0
        %3545 = vmatpush1.msra.mxu0 0.0
        %3546 = vmatprep.subr.mxu0 0.0
        %3547 = vmatpush1.msra.mxu0 0.0
        %3548 = vmatprep.subr.mxu0 0.0
        %3549 = vmatpush1.msra.mxu0 0.0
        %3550 = vmatprep.subr.mxu0 0.0
        %3551 = vmatpush1.msra.mxu0 0.0
        %3552 = vmatprep.subr.mxu0 0.0
        %3553 = vmatpush1.msra.mxu0 0.0
        %3554 = vmatprep.subr.mxu0 0.0
        %3555 = vmatpush1.msra.mxu0 0.0
        %3556 = vmatprep.subr.mxu0 0.0
        %3557 = vmatpush1.msra.mxu0 0.0
        %3558 = vmatprep.subr.mxu0 0.0
        %3559 = vmatpush1.msra.mxu0 0.0
        %3560 = vmatprep.subr.mxu0 0.0
        %3561 = vmatpush1.msra.mxu0 0.0
        %3562 = vmatprep.subr.mxu0 0.0
        %3563 = vmatpush1.msra.mxu0 0.0
        %3564 = vmatprep.subr.mxu0 0.0
        %3565 = vmatpush1.msra.mxu0 0.0
        %3566 = vmatprep.subr.mxu0 0.0
        %3567 = vmatpush1.msra.mxu0 0.0
        %3568 = vmatprep.subr.mxu0 0.0
        %3569 = vmatpush1.msra.mxu0 0.0
        %3570 = vmatprep.mubr.f32.mxu0 0.0
        %3571 = vmatmul.mubr.f32.gmra.mrb[0].mxu0 %v3501
        %v3572 = vpop.f32.mrb[0].mxu0
        %v3573 = vadd.f32 0.0, %v3572
        %v3574 = vpop.f32.mrb[0].mxu0
        %3575 = vmatprep.mubr.f32.mxu0 0.0
        %3576 = vmatmul.mubr.f32.gmra.mrb[0].mxu0 %v3504
        %v3577 = vpop.f32.mrb[0].mxu0
        %v3578 = vadd.f32 0.0, %v3577
        %v3579 = vpop.f32.mrb[0].mxu0
        %3580 = vdwg.mxu0
        %v3581 = vmul.f32 %v3573, %v496
        %v3582 = vmul.f32 %v3578, %v497
        %3583 = vrot.lane.b32.xlu0 %v506, 104
        %v3584 = vpop.permute.xlu0 %3583
        %3585 = vrot.lane.b32.xlu0 %v507, 104
        %v3586 = vpop.permute.xlu0 %3585
        %3587 = vrot.lane.b32.xlu0 %v508, 104
        %v3588 = vpop.permute.xlu0 %3587
        %3589 = vrot.lane.b32.xlu0 %v509, 104
        %v3590 = vpop.permute.xlu0 %3589
        %3591 = vrot.lane.b32.xlu0 %v510, 104
        %v3592 = vpop.permute.xlu0 %3591
        %3593 = vrot.lane.b32.xlu0 %v511, 104
        %v3594 = vpop.permute.xlu0 %3593
        %3595 = vrot.lane.b32.xlu0 %v512, 104
        %v3596 = vpop.permute.xlu0 %3595
        %3597 = vrot.lane.b32.xlu0 %v513, 104
        %v3598 = vpop.permute.xlu0 %3597
        %3599 = vrot.lane.b32.xlu0 %v514, 104
        %v3600 = vpop.permute.xlu0 %3599
        %3601 = vrot.lane.b32.xlu0 %v515, 104
        %v3602 = vpop.permute.xlu0 %3601
        %3603 = vrot.lane.b32.xlu0 %v516, 104
        %v3604 = vpop.permute.xlu0 %3603
        %3605 = vrot.lane.b32.xlu0 %v517, 104
        %v3606 = vpop.permute.xlu0 %3605
        %3607 = vrot.lane.b32.xlu0 %v518, 104
        %v3608 = vpop.permute.xlu0 %3607
        %3609 = vrot.lane.b32.xlu0 %v519, 104
        %v3610 = vpop.permute.xlu0 %3609
        %3611 = vrot.lane.b32.xlu0 %v520, 104
        %v3612 = vpop.permute.xlu0 %3611
        %3613 = vrot.lane.b32.xlu0 %v521, 104
        %v3614 = vpop.permute.xlu0 %3613
        %3631 = vmatprep.subr.mxu0 0.0
        %3632 = vmatpush1.msra.mxu0 %v3584
        %3633 = vmatprep.subr.mxu0 0.0
        %3634 = vmatpush1.msra.mxu0 %v3586
        %3635 = vmatprep.subr.mxu0 0.0
        %3636 = vmatpush1.msra.mxu0 %v3588
        %3637 = vmatprep.subr.mxu0 0.0
        %3638 = vmatpush1.msra.mxu0 %v3590
        %3639 = vmatprep.subr.mxu0 0.0
        %3640 = vmatpush1.msra.mxu0 %v3592
        %3641 = vmatprep.subr.mxu0 0.0
        %3642 = vmatpush1.msra.mxu0 %v3594
        %3643 = vmatprep.subr.mxu0 0.0
        %3644 = vmatpush1.msra.mxu0 %v3596
        %3645 = vmatprep.subr.mxu0 0.0
        %3646 = vmatpush1.msra.mxu0 %v3598
        %3647 = vmatprep.subr.mxu0 0.0
        %3648 = vmatpush1.msra.mxu0 %v3600
        %3649 = vmatprep.subr.mxu0 0.0
        %3650 = vmatpush1.msra.mxu0 %v3602
        %3651 = vmatprep.subr.mxu0 0.0
        %3652 = vmatpush1.msra.mxu0 %v3604
        %3653 = vmatprep.subr.mxu0 0.0
        %3654 = vmatpush1.msra.mxu0 %v3606
        %3655 = vmatprep.subr.mxu0 0.0
        %3656 = vmatpush1.msra.mxu0 %v3608
        %3657 = vmatprep.subr.mxu0 0.0
        %3658 = vmatpush1.msra.mxu0 %v3610
        %3659 = vmatprep.subr.mxu0 0.0
        %3660 = vmatpush1.msra.mxu0 %v3612
        %3661 = vmatprep.subr.mxu0 0.0
        %3662 = vmatpush1.msra.mxu0 %v3614
        %3663 = vmatprep.subr.mxu0 0.0
        %3664 = vmatpush1.msra.mxu0 0.0
        %3665 = vmatprep.subr.mxu0 0.0
        %3666 = vmatpush1.msra.mxu0 0.0
        %3667 = vmatprep.subr.mxu0 0.0
        %3668 = vmatpush1.msra.mxu0 0.0
        %3669 = vmatprep.subr.mxu0 0.0
        %3670 = vmatpush1.msra.mxu0 0.0
        %3671 = vmatprep.subr.mxu0 0.0
        %3672 = vmatpush1.msra.mxu0 0.0
        %3673 = vmatprep.subr.mxu0 0.0
        %3674 = vmatpush1.msra.mxu0 0.0
        %3675 = vmatprep.subr.mxu0 0.0
        %3676 = vmatpush1.msra.mxu0 0.0
        %3677 = vmatprep.subr.mxu0 0.0
        %3678 = vmatpush1.msra.mxu0 0.0
        %3679 = vmatprep.subr.mxu0 0.0
        %3680 = vmatpush1.msra.mxu0 0.0
        %3681 = vmatprep.subr.mxu0 0.0
        %3682 = vmatpush1.msra.mxu0 0.0
        %3683 = vmatprep.subr.mxu0 0.0
        %3684 = vmatpush1.msra.mxu0 0.0
        %3685 = vmatprep.subr.mxu0 0.0
        %3686 = vmatpush1.msra.mxu0 0.0
        %3687 = vmatprep.subr.mxu0 0.0
        %3688 = vmatpush1.msra.mxu0 0.0
        %3689 = vmatprep.subr.mxu0 0.0
        %3690 = vmatpush1.msra.mxu0 0.0
        %3691 = vmatprep.subr.mxu0 0.0
        %3692 = vmatpush1.msra.mxu0 0.0
        %3693 = vmatprep.subr.mxu0 0.0
        %3694 = vmatpush1.msra.mxu0 0.0
        %3695 = vmatprep.mubr.f32.mxu0 0.0
        %3696 = vmatmul.mubr.f32.gmra.mrb[0].mxu0 %v3581
        %v3697 = vpop.f32.mrb[0].mxu0
        %v3698 = vadd.f32 0.0, %v3697
        %v3699 = vpop.f32.mrb[0].mxu0
        %3700 = vmatprep.mubr.f32.mxu0 0.0
        %3701 = vmatmul.mubr.f32.gmra.mrb[0].mxu0 %v3582
        %v3702 = vpop.f32.mrb[0].mxu0
        %v3703 = vadd.f32 0.0, %v3702
        %v3704 = vpop.f32.mrb[0].mxu0
        %3705 = vdwg.mxu0
        %v3706 = vsel %vm597, %v3698, 0.0
        %v3707 = vsel %vm597, %v3703, 0.0
        %v3708 = vadd.f32 %v3706, %v3707
        %v3709 = vrot.slane %v3708, 4
        %v3710 = vadd.f32 %v3708, %v3709
        %v3711 = vrot.slane %v3710, 2
        %v3712 = vadd.f32 %v3710, %v3711
        %v3713 = vrot.slane %v3712, 1
        %v3714 = vadd.f32 %v3712, %v3713
        %3715 = vset.pattern.permute.xlu0 15
        %3716 = vperm.xlu0 %3715, %v554
        %v3717 = vpop.permute.xlu0 %3716
        %v3719 = vadd.f32 %v3714, %v3717
        %v3720 = vsub.f32 0.0, %v3719
        %v3721 = vmul.f32 %v3720, 1.442695
        %v3722 = vpow.pop %v3721
        %v3723 = vadd.f32 %v3722, 1.0
        %v3724 = vrcp.pop %v3723
        %v3725 = vmul.f32 1.0, %v3724
        %v3727 = vsel %vm597, %v3725, 0
        %3729 = vmatprep.subr.mxu0 0.0
        %3730 = vmatpush1.msra.mxu0 %v494
        %3731 = vmatprep.subr.mxu0 0.0
        %3732 = vmatpush1.msra.mxu0 0.0
        %3733 = vmatprep.subr.mxu0 0.0
        %3734 = vmatpush1.msra.mxu0 0.0
        %3735 = vmatprep.subr.mxu0 0.0
        %3736 = vmatpush1.msra.mxu0 0.0
        %3737 = vmatprep.subr.mxu0 0.0
        %3738 = vmatpush1.msra.mxu0 0.0
        %3739 = vmatprep.subr.mxu0 0.0
        %3740 = vmatpush1.msra.mxu0 0.0
        %3741 = vmatprep.subr.mxu0 0.0
        %3742 = vmatpush1.msra.mxu0 0.0
        %3743 = vmatprep.subr.mxu0 0.0
        %3744 = vmatpush1.msra.mxu0 0.0
        %3745 = vmatprep.subr.mxu0 0.0
        %3746 = vmatpush1.msra.mxu0 0.0
        %3747 = vmatprep.subr.mxu0 0.0
        %3748 = vmatpush1.msra.mxu0 0.0
        %3749 = vmatprep.subr.mxu0 0.0
        %3750 = vmatpush1.msra.mxu0 0.0
        %3751 = vmatprep.subr.mxu0 0.0
        %3752 = vmatpush1.msra.mxu0 0.0
        %3753 = vmatprep.subr.mxu0 0.0
        %3754 = vmatpush1.msra.mxu0 0.0
        %3755 = vmatprep.subr.mxu0 0.0
        %3756 = vmatpush1.msra.mxu0 0.0
        %3757 = vmatprep.subr.mxu0 0.0
        %3758 = vmatpush1.msra.mxu0 0.0
        %3759 = vmatprep.subr.mxu0 0.0
        %3760 = vmatpush1.msra.mxu0 0.0
        %3761 = vmatprep.subr.mxu0 0.0
        %3762 = vmatpush1.msra.mxu0 0.0
        %3763 = vmatprep.subr.mxu0 0.0
        %3764 = vmatpush1.msra.mxu0 0.0
        %3765 = vmatprep.subr.mxu0 0.0
        %3766 = vmatpush1.msra.mxu0 0.0
        %3767 = vmatprep.subr.mxu0 0.0
        %3768 = vmatpush1.msra.mxu0 0.0
        %3769 = vmatprep.subr.mxu0 0.0
        %3770 = vmatpush1.msra.mxu0 0.0
        %3771 = vmatprep.subr.mxu0 0.0
        %3772 = vmatpush1.msra.mxu0 0.0
        %3773 = vmatprep.subr.mxu0 0.0
        %3774 = vmatpush1.msra.mxu0 0.0
        %3775 = vmatprep.subr.mxu0 0.0
        %3776 = vmatpush1.msra.mxu0 0.0
        %3777 = vmatprep.subr.mxu0 0.0
        %3778 = vmatpush1.msra.mxu0 0.0
        %3779 = vmatprep.subr.mxu0 0.0
        %3780 = vmatpush1.msra.mxu0 0.0
        %3781 = vmatprep.subr.mxu0 0.0
        %3782 = vmatpush1.msra.mxu0 0.0
        %3783 = vmatprep.subr.mxu0 0.0
        %3784 = vmatpush1.msra.mxu0 0.0
        %3785 = vmatprep.subr.mxu0 0.0
        %3786 = vmatpush1.msra.mxu0 0.0
        %3787 = vmatprep.subr.mxu0 0.0
        %3788 = vmatpush1.msra.mxu0 0.0
        %3789 = vmatprep.subr.mxu0 0.0
        %3790 = vmatpush1.msra.mxu0 0.0
        %3791 = vmatprep.subr.mxu0 0.0
        %3792 = vmatpush1.msra.mxu0 0.0
        %3793 = vmatprep.mubr.f32.mxu0 0.0
        %3794 = vmatmul.mubr.f32.gmra.mrb[0].mxu0 %v3727
        %v3795 = vpop.f32.mrb[0].mxu0
        %v3796 = vadd.f32 1.0, %v3795
        %v3797 = vpop.f32.mrb[0].mxu0
        %3798 = vdwg.mxu0
        %v3799 = vlaneseq
        %v3800 = vshrl.u32 %v3799, 7
        %v3801 = vsub.s32 0, %v3800
        %v3802 = vrot.slane %v3796, %v3801
        %v3803 = vmul.f32 %v3375, %v3802
        %v3804 = vmul.f32 %v3376, %v3802
        %3805 = vadd.xlane.f32.xlu0 %v3803
        %v3806 = vpop.xlane.xlu0 %3805
        %3807 = vadd.xlane.f32.xlu0 %v3804
        %v3808 = vpop.xlane.xlu0 %3807
        %v3809 = vrcp.pop 128.0
        %v3810 = vmul.f32 %v3806, %v3809
        %v3811 = vmul.f32 %v3808, %v3809
        %3813 = vrot.lane.b32.xlu0 %v556, 112
        %v3814 = vpop.permute.xlu0 %3813
        %v3816 = vsel %vm971, %v556, 0
        %3818 = vmatprep.subr.mxu0 0.0
        %3819 = vmatpush1.msra.mxu0 %v3810
        %3820 = vmatprep.subr.mxu0 0.0
        %3821 = vmatpush1.msra.mxu0 %v3811
        %3822 = vmatprep.subr.mxu0 0.0
        %3823 = vmatpush1.msra.mxu0 0.0
        %3824 = vmatprep.subr.mxu0 0.0
        %3825 = vmatpush1.msra.mxu0 0.0
        %3826 = vmatprep.subr.mxu0 0.0
        %3827 = vmatpush1.msra.mxu0 0.0
        %3828 = vmatprep.subr.mxu0 0.0
        %3829 = vmatpush1.msra.mxu0 0.0
        %3830 = vmatprep.subr.mxu0 0.0
        %3831 = vmatpush1.msra.mxu0 0.0
        %3832 = vmatprep.subr.mxu0 0.0
        %3833 = vmatpush1.msra.mxu0 0.0
        %3834 = vmatprep.subr.mxu0 0.0
        %3835 = vmatpush1.msra.mxu0 0.0
        %3836 = vmatprep.subr.mxu0 0.0
        %3837 = vmatpush1.msra.mxu0 0.0
        %3838 = vmatprep.subr.mxu0 0.0
        %3839 = vmatpush1.msra.mxu0 0.0
        %3840 = vmatprep.subr.mxu0 0.0
        %3841 = vmatpush1.msra.mxu0 0.0
        %3842 = vmatprep.subr.mxu0 0.0
        %3843 = vmatpush1.msra.mxu0 0.0
        %3844 = vmatprep.subr.mxu0 0.0
        %3845 = vmatpush1.msra.mxu0 0.0
        %3846 = vmatprep.subr.mxu0 0.0
        %3847 = vmatpush1.msra.mxu0 0.0
        %3848 = vmatprep.subr.mxu0 0.0
        %3849 = vmatpush1.msra.mxu0 0.0
        %3850 = vmatprep.subr.mxu0 0.0
        %3851 = vmatpush1.msra.mxu0 0.0
        %3852 = vmatprep.subr.mxu0 0.0
        %3853 = vmatpush1.msra.mxu0 0.0
        %3854 = vmatprep.subr.mxu0 0.0
        %3855 = vmatpush1.msra.mxu0 0.0
        %3856 = vmatprep.subr.mxu0 0.0
        %3857 = vmatpush1.msra.mxu0 0.0
        %3858 = vmatprep.subr.mxu0 0.0
        %3859 = vmatpush1.msra.mxu0 0.0
        %3860 = vmatprep.subr.mxu0 0.0
        %3861 = vmatpush1.msra.mxu0 0.0
        %3862 = vmatprep.subr.mxu0 0.0
        %3863 = vmatpush1.msra.mxu0 0.0
        %3864 = vmatprep.subr.mxu0 0.0
        %3865 = vmatpush1.msra.mxu0 0.0
        %3866 = vmatprep.subr.mxu0 0.0
        %3867 = vmatpush1.msra.mxu0 0.0
        %3868 = vmatprep.subr.mxu0 0.0
        %3869 = vmatpush1.msra.mxu0 0.0
        %3870 = vmatprep.subr.mxu0 0.0
        %3871 = vmatpush1.msra.mxu0 0.0
        %3872 = vmatprep.subr.mxu0 0.0
        %3873 = vmatpush1.msra.mxu0 0.0
        %3874 = vmatprep.subr.mxu0 0.0
        %3875 = vmatpush1.msra.mxu0 0.0
        %3876 = vmatprep.subr.mxu0 0.0
        %3877 = vmatpush1.msra.mxu0 0.0
        %3878 = vmatprep.subr.mxu0 0.0
        %3879 = vmatpush1.msra.mxu0 0.0
        %3880 = vmatprep.subr.mxu0 0.0
        %3881 = vmatpush1.msra.mxu0 0.0
        %3882 = vmatprep.mubr.f32.mxu0 0.0
        %3883 = vmatmul.mubr.f32.gmra.mrb[0].mxu0 %v3816
        %v3884 = vpop.f32.mrb[0].mxu0
        %v3885 = vadd.f32 %v3814, %v3884
        %v3886 = vpop.f32.mrb[0].mxu0
        %3887 = vdwg.mxu0
        %v3888 = vmax.f32 %v3885, 0.0
        %3889 = vrot.lane.b32.xlu0 %v554, 124
        %v3890 = vpop.permute.xlu0 %3889
        %3891 = vrot.lane.b32.xlu0 %v555, 124
        %v3892 = vpop.permute.xlu0 %3891
        %3893 = vrot.lane.b32.xlu0 %v554, 116
        %v3894 = vpop.permute.xlu0 %3893
        %3895 = vrot.lane.b32.xlu0 %v555, 116
        %v3896 = vpop.permute.xlu0 %3895
        %v3899 = vsel %vm597, %v3890, 0
        %v3901 = vsel %vm597, %v3892, 0
        %3903 = vmatprep.subr.mxu0 0.0
        %3904 = vmatpush1.msra.mxu0 %v3888
        %3905 = vmatprep.subr.mxu0 0.0
        %3906 = vmatpush1.msra.mxu0 0.0
        %3907 = vmatprep.subr.mxu0 0.0
        %3908 = vmatpush1.msra.mxu0 0.0
        %3909 = vmatprep.subr.mxu0 0.0
        %3910 = vmatpush1.msra.mxu0 0.0
        %3911 = vmatprep.subr.mxu0 0.0
        %3912 = vmatpush1.msra.mxu0 0.0
        %3913 = vmatprep.subr.mxu0 0.0
        %3914 = vmatpush1.msra.mxu0 0.0
        %3915 = vmatprep.subr.mxu0 0.0
        %3916 = vmatpush1.msra.mxu0 0.0
        %3917 = vmatprep.subr.mxu0 0.0
        %3918 = vmatpush1.msra.mxu0 0.0
        %3919 = vmatprep.subr.mxu0 0.0
        %3920 = vmatpush1.msra.mxu0 0.0
        %3921 = vmatprep.subr.mxu0 0.0
        %3922 = vmatpush1.msra.mxu0 0.0
        %3923 = vmatprep.subr.mxu0 0.0
        %3924 = vmatpush1.msra.mxu0 0.0
        %3925 = vmatprep.subr.mxu0 0.0
        %3926 = vmatpush1.msra.mxu0 0.0
        %3927 = vmatprep.subr.mxu0 0.0
        %3928 = vmatpush1.msra.mxu0 0.0
        %3929 = vmatprep.subr.mxu0 0.0
        %3930 = vmatpush1.msra.mxu0 0.0
        %3931 = vmatprep.subr.mxu0 0.0
        %3932 = vmatpush1.msra.mxu0 0.0
        %3933 = vmatprep.subr.mxu0 0.0
        %3934 = vmatpush1.msra.mxu0 0.0
        %3935 = vmatprep.subr.mxu0 0.0
        %3936 = vmatpush1.msra.mxu0 0.0
        %3937 = vmatprep.subr.mxu0 0.0
        %3938 = vmatpush1.msra.mxu0 0.0
        %3939 = vmatprep.subr.mxu0 0.0
        %3940 = vmatpush1.msra.mxu0 0.0
        %3941 = vmatprep.subr.mxu0 0.0
        %3942 = vmatpush1.msra.mxu0 0.0
        %3943 = vmatprep.subr.mxu0 0.0
        %3944 = vmatpush1.msra.mxu0 0.0
        %3945 = vmatprep.subr.mxu0 0.0
        %3946 = vmatpush1.msra.mxu0 0.0
        %3947 = vmatprep.subr.mxu0 0.0
        %3948 = vmatpush1.msra.mxu0 0.0
        %3949 = vmatprep.subr.mxu0 0.0
        %3950 = vmatpush1.msra.mxu0 0.0
        %3951 = vmatprep.subr.mxu0 0.0
        %3952 = vmatpush1.msra.mxu0 0.0
        %3953 = vmatprep.subr.mxu0 0.0
        %3954 = vmatpush1.msra.mxu0 0.0
        %3955 = vmatprep.subr.mxu0 0.0
        %3956 = vmatpush1.msra.mxu0 0.0
        %3957 = vmatprep.subr.mxu0 0.0
        %3958 = vmatpush1.msra.mxu0 0.0
        %3959 = vmatprep.subr.mxu0 0.0
        %3960 = vmatpush1.msra.mxu0 0.0
        %3961 = vmatprep.subr.mxu0 0.0
        %3962 = vmatpush1.msra.mxu0 0.0
        %3963 = vmatprep.subr.mxu0 0.0
        %3964 = vmatpush1.msra.mxu0 0.0
        %3965 = vmatprep.subr.mxu0 0.0
        %3966 = vmatpush1.msra.mxu0 0.0
        %3967 = vmatprep.mubr.f32.mxu0 0.0
        %3968 = vmatmul.mubr.f32.gmra.mrb[0].mxu0 %v3899
        %v3969 = vpop.f32.mrb[0].mxu0
        %v3970 = vadd.f32 %v3894, %v3969
        %v3971 = vpop.f32.mrb[0].mxu0
        %3972 = vmatprep.mubr.f32.mxu0 0.0
        %3973 = vmatmul.mubr.f32.gmra.mrb[0].mxu0 %v3901
        %v3974 = vpop.f32.mrb[0].mxu0
        %v3975 = vadd.f32 %v3896, %v3974
        %v3976 = vpop.f32.mrb[0].mxu0
        %3977 = vdwg.mxu0
        %v3978 = vsub.f32 0.0, %v3970
        %v3979 = vsub.f32 0.0, %v3975
        %v3980 = vmul.f32 %v3978, 1.442695
        %v3981 = vpow.pop %v3980
        %v3982 = vmul.f32 %v3979, 1.442695
        %v3983 = vpow.pop %v3982
        %v3984 = vadd.f32 %v3981, 1.0
        %v3985 = vadd.f32 %v3983, 1.0
        %v3986 = vrcp.pop %v3984
        %v3987 = vmul.f32 1.0, %v3986
        %v3988 = vrcp.pop %v3985
        %v3989 = vmul.f32 1.0, %v3988
        %v3990 = vadd.f32 %v3987, 1.0
        %v3991 = vadd.f32 %v3989, 1.0
        %3993 = vset.pattern.permute.xlu0 0
        %3994 = vperm.xlu0 %3993, %v3990
        %v3995 = vpop.permute.xlu0 %3994
        %3998 = vset.pattern.permute.xlu0 0
        %3999 = vperm.xlu0 %3998, %v3991
        %v4000 = vpop.permute.xlu0 %3999
        %v4002 = vmul.f32 %v3803, %v3995
        %v4003 = vmul.f32 %v3804, %v4000
        %4006 = vrot.lane.b32.xlu0 %v4002, 64
        %v4007 = vpop.permute.xlu0 %4006
        %4008 = vrot.lane.b32.xlu0 %v4003, 64
        %v4009 = vpop.permute.xlu0 %4008
        %vm4012 = vcmask 523264
        %v4013 = vsel %vm4012, 0.0, %v4007
        %v4014 = vsel %vm4012, 0.0, %v4009
        %v4015 = vsel %vm4012, %v4007, 0.0
        %v4016 = vsel %vm4012, %v4009, 0.0
        %4021 = vrot.lane.b32.xlu0 %v4013, 112
        %v4022 = vpop.permute.xlu0 %4021
        %4023 = vrot.lane.b32.xlu0 %v4015, 112
        %v4024 = vpop.permute.xlu0 %4023
        %4025 = vrot.lane.b32.xlu0 %v4014, 112
        %v4026 = vpop.permute.xlu0 %4025
        %4027 = vrot.lane.b32.xlu0 %v4016, 112
        %v4028 = vpop.permute.xlu0 %4027
        %vm4029 = vcmask 916480
        %v4030 = vsel %vm4029, %v4022, %v4024
        %v4031 = vsel %vm4029, %v4026, %v4028
        %4034 = vrot.lane.b32.xlu0 %v4013, 96
        %v4035 = vpop.permute.xlu0 %4034
        %4036 = vrot.lane.b32.xlu0 %v4015, 96
        %v4037 = vpop.permute.xlu0 %4036
        %4038 = vrot.lane.b32.xlu0 %v4014, 96
        %v4039 = vpop.permute.xlu0 %4038
        %4040 = vrot.lane.b32.xlu0 %v4016, 96
        %v4041 = vpop.permute.xlu0 %4040
        %vm4042 = vcmask 785408
        %v4043 = vsel %vm4042, %v4035, %v4037
        %v4044 = vsel %vm4042, %v4039, %v4041
        %4047 = vrot.lane.b32.xlu0 %v4013, 80
        %v4048 = vpop.permute.xlu0 %4047
        %4049 = vrot.lane.b32.xlu0 %v4015, 80
        %v4050 = vpop.permute.xlu0 %4049
        %4051 = vrot.lane.b32.xlu0 %v4014, 80
        %v4052 = vpop.permute.xlu0 %4051
        %4053 = vrot.lane.b32.xlu0 %v4016, 80
        %v4054 = vpop.permute.xlu0 %4053
        %vm4055 = vcmask 654336
        %v4056 = vsel %vm4055, %v4048, %v4050
        %v4057 = vsel %vm4055, %v4052, %v4054
        %4060 = vrot.lane.b32.xlu0 %v4013, 64
        %v4061 = vpop.permute.xlu0 %4060
        %4062 = vrot.lane.b32.xlu0 %v4015, 64
        %v4063 = vpop.permute.xlu0 %4062
        %4064 = vrot.lane.b32.xlu0 %v4014, 64
        %v4065 = vpop.permute.xlu0 %4064
        %4066 = vrot.lane.b32.xlu0 %v4016, 64
        %v4067 = vpop.permute.xlu0 %4066
        %v4068 = vsel %vm4012, %v4061, %v4063
        %v4069 = vsel %vm4012, %v4065, %v4067
        %4072 = vrot.lane.b32.xlu0 %v4013, 48
        %v4073 = vpop.permute.xlu0 %4072
        %4074 = vrot.lane.b32.xlu0 %v4015, 48
        %v4075 = vpop.permute.xlu0 %4074
        %4076 = vrot.lane.b32.xlu0 %v4014, 48
        %v4077 = vpop.permute.xlu0 %4076
        %4078 = vrot.lane.b32.xlu0 %v4016, 48
        %v4079 = vpop.permute.xlu0 %4078
        %vm4080 = vcmask 392192
        %v4081 = vsel %vm4080, %v4073, %v4075
        %v4082 = vsel %vm4080, %v4077, %v4079
        %4085 = vrot.lane.b32.xlu0 %v4013, 32
        %v4086 = vpop.permute.xlu0 %4085
        %4087 = vrot.lane.b32.xlu0 %v4015, 32
        %v4088 = vpop.permute.xlu0 %4087
        %4089 = vrot.lane.b32.xlu0 %v4014, 32
        %v4090 = vpop.permute.xlu0 %4089
        %4091 = vrot.lane.b32.xlu0 %v4016, 32
        %v4092 = vpop.permute.xlu0 %4091
        %vm4093 = vcmask 261120
        %v4094 = vsel %vm4093, %v4086, %v4088
        %v4095 = vsel %vm4093, %v4090, %v4092
        %4098 = vrot.lane.b32.xlu0 %v4013, 16
        %v4099 = vpop.permute.xlu0 %4098
        %4100 = vrot.lane.b32.xlu0 %v4015, 16
        %v4101 = vpop.permute.xlu0 %4100
        %4102 = vrot.lane.b32.xlu0 %v4014, 16
        %v4103 = vpop.permute.xlu0 %4102
        %4104 = vrot.lane.b32.xlu0 %v4016, 16
        %v4105 = vpop.permute.xlu0 %4104
        %v4106 = vsel %vm971, %v4099, %v4101
        %v4107 = vsel %vm971, %v4103, %v4105
        %4110 = vrot.lane.b32.xlu0 %v554, 112
        %v4111 = vpop.permute.xlu0 %4110
        %4112 = vrot.lane.b32.xlu0 %v555, 112
        %v4113 = vpop.permute.xlu0 %4112
        %v4114 = vsel %vm971, %v4111, 0
        %v4116 = vsel %vm971, %v4113, 0
        %4118 = vmatprep.subr.mxu0 0.0
        %4119 = vmatpush1.msra.mxu0 %v4015
        %4120 = vmatprep.subr.mxu0 0.0
        %4121 = vmatpush1.msra.mxu0 %v4016
        %4122 = vmatprep.subr.mxu0 0.0
        %4123 = vmatpush1.msra.mxu0 0.0
        %4124 = vmatprep.subr.mxu0 0.0
        %4125 = vmatpush1.msra.mxu0 0.0
        %4126 = vmatprep.subr.mxu0 0.0
        %4127 = vmatpush1.msra.mxu0 0.0
        %4128 = vmatprep.subr.mxu0 0.0
        %4129 = vmatpush1.msra.mxu0 0.0
        %4130 = vmatprep.subr.mxu0 0.0
        %4131 = vmatpush1.msra.mxu0 0.0
        %4132 = vmatprep.subr.mxu0 0.0
        %4133 = vmatpush1.msra.mxu0 0.0
        %4134 = vmatprep.subr.mxu0 0.0
        %4135 = vmatpush1.msra.mxu0 0.0
        %4136 = vmatprep.subr.mxu0 0.0
        %4137 = vmatpush1.msra.mxu0 0.0
        %4138 = vmatprep.subr.mxu0 0.0
        %4139 = vmatpush1.msra.mxu0 0.0
        %4140 = vmatprep.subr.mxu0 0.0
        %4141 = vmatpush1.msra.mxu0 0.0
        %4142 = vmatprep.subr.mxu0 0.0
        %4143 = vmatpush1.msra.mxu0 0.0
        %4144 = vmatprep.subr.mxu0 0.0
        %4145 = vmatpush1.msra.mxu0 0.0
        %4146 = vmatprep.subr.mxu0 0.0
        %4147 = vmatpush1.msra.mxu0 0.0
        %4148 = vmatprep.subr.mxu0 0.0
        %4149 = vmatpush1.msra.mxu0 0.0
        %4150 = vmatprep.subr.mxu0 0.0
        %4151 = vmatpush1.msra.mxu0 0.0
        %4152 = vmatprep.subr.mxu0 0.0
        %4153 = vmatpush1.msra.mxu0 0.0
        %4154 = vmatprep.subr.mxu0 0.0
        %4155 = vmatpush1.msra.mxu0 0.0
        %4156 = vmatprep.subr.mxu0 0.0
        %4157 = vmatpush1.msra.mxu0 0.0
        %4158 = vmatprep.subr.mxu0 0.0
        %4159 = vmatpush1.msra.mxu0 0.0
        %4160 = vmatprep.subr.mxu0 0.0
        %4161 = vmatpush1.msra.mxu0 0.0
        %4162 = vmatprep.subr.mxu0 0.0
        %4163 = vmatpush1.msra.mxu0 0.0
        %4164 = vmatprep.subr.mxu0 0.0
        %4165 = vmatpush1.msra.mxu0 0.0
        %4166 = vmatprep.subr.mxu0 0.0
        %4167 = vmatpush1.msra.mxu0 0.0
        %4168 = vmatprep.subr.mxu0 0.0
        %4169 = vmatpush1.msra.mxu0 0.0
        %4170 = vmatprep.subr.mxu0 0.0
        %4171 = vmatpush1.msra.mxu0 0.0
        %4172 = vmatprep.subr.mxu0 0.0
        %4173 = vmatpush1.msra.mxu0 0.0
        %4174 = vmatprep.subr.mxu0 0.0
        %4175 = vmatpush1.msra.mxu0 0.0
        %4176 = vmatprep.subr.mxu0 0.0
        %4177 = vmatpush1.msra.mxu0 0.0
        %4178 = vmatprep.subr.mxu0 0.0
        %4179 = vmatpush1.msra.mxu0 0.0
        %4180 = vmatprep.subr.mxu0 0.0
        %4181 = vmatpush1.msra.mxu0 0.0
        %4182 = vmatprep.mubr.f32.mxu0 0.0
        %4183 = vmatmul.mubr.f32.gmra.mrb[0].mxu0 %v4114
        %v4184 = vpop.f32.mrb[0].mxu0
        %v4185 = vadd.f32 0.0, %v4184
        %v4186 = vpop.f32.mrb[0].mxu0
        %4187 = vmatprep.mubr.f32.mxu0 0.0
        %4188 = vmatmul.mubr.f32.gmra.mrb[0].mxu0 %v4116
        %v4189 = vpop.f32.mrb[0].mxu0
        %v4190 = vadd.f32 0.0, %v4189
        %v4191 = vpop.f32.mrb[0].mxu0
        %4192 = vdwg.mxu0
        %4193 = vmatprep.subr.mxu0 0.0
        %4194 = vmatpush1.msra.mxu0 %v4013
        %4195 = vmatprep.subr.mxu0 0.0
        %4196 = vmatpush1.msra.mxu0 %v4014
        %4197 = vmatprep.subr.mxu0 0.0
        %4198 = vmatpush1.msra.mxu0 %v4030
        %4199 = vmatprep.subr.mxu0 0.0
        %4200 = vmatpush1.msra.mxu0 %v4031
        %4201 = vmatprep.subr.mxu0 0.0
        %4202 = vmatpush1.msra.mxu0 %v4043
        %4203 = vmatprep.subr.mxu0 0.0
        %4204 = vmatpush1.msra.mxu0 %v4044
        %4205 = vmatprep.subr.mxu0 0.0
        %4206 = vmatpush1.msra.mxu0 %v4056
        %4207 = vmatprep.subr.mxu0 0.0
        %4208 = vmatpush1.msra.mxu0 %v4057
        %4209 = vmatprep.subr.mxu0 0.0
        %4210 = vmatpush1.msra.mxu0 %v4068
        %4211 = vmatprep.subr.mxu0 0.0
        %4212 = vmatpush1.msra.mxu0 %v4069
        %4213 = vmatprep.subr.mxu0 0.0
        %4214 = vmatpush1.msra.mxu0 %v4081
        %4215 = vmatprep.subr.mxu0 0.0
        %4216 = vmatpush1.msra.mxu0 %v4082
        %4217 = vmatprep.subr.mxu0 0.0
        %4218 = vmatpush1.msra.mxu0 %v4094
        %4219 = vmatprep.subr.mxu0 0.0
        %4220 = vmatpush1.msra.mxu0 %v4095
        %4221 = vmatprep.subr.mxu0 0.0
        %4222 = vmatpush1.msra.mxu0 %v4106
        %4223 = vmatprep.subr.mxu0 0.0
        %4224 = vmatpush1.msra.mxu0 %v4107
        %4225 = vmatprep.subr.mxu0 0.0
        %4226 = vmatpush1.msra.mxu0 0.0
        %4227 = vmatprep.subr.mxu0 0.0
        %4228 = vmatpush1.msra.mxu0 0.0
        %4229 = vmatprep.subr.mxu0 0.0
        %4230 = vmatpush1.msra.mxu0 0.0
        %4231 = vmatprep.subr.mxu0 0.0
        %4232 = vmatpush1.msra.mxu0 0.0
        %4233 = vmatprep.subr.mxu0 0.0
        %4234 = vmatpush1.msra.mxu0 0.0
        %4235 = vmatprep.subr.mxu0 0.0
        %4236 = vmatpush1.msra.mxu0 0.0
        %4237 = vmatprep.subr.mxu0 0.0
        %4238 = vmatpush1.msra.mxu0 0.0
        %4239 = vmatprep.subr.mxu0 0.0
        %4240 = vmatpush1.msra.mxu0 0.0
        %4241 = vmatprep.subr.mxu0 0.0
        %4242 = vmatpush1.msra.mxu0 0.0
        %4243 = vmatprep.subr.mxu0 0.0
        %4244 = vmatpush1.msra.mxu0 0.0
        %4245 = vmatprep.subr.mxu0 0.0
        %4246 = vmatpush1.msra.mxu0 0.0
        %4247 = vmatprep.subr.mxu0 0.0
        %4248 = vmatpush1.msra.mxu0 0.0
        %4249 = vmatprep.subr.mxu0 0.0
        %4250 = vmatpush1.msra.mxu0 0.0
        %4251 = vmatprep.subr.mxu0 0.0
        %4252 = vmatpush1.msra.mxu0 0.0
        %4253 = vmatprep.subr.mxu0 0.0
        %4254 = vmatpush1.msra.mxu0 0.0
        %4255 = vmatprep.subr.mxu0 0.0
        %4256 = vmatpush1.msra.mxu0 0.0
        %4257 = vmatprep.mubr.f32.mxu0 0.0
        %4258 = vmatmul.mubr.f32.gmra.mrb[0].mxu0 %v498
        %v4259 = vpop.f32.mrb[0].mxu0
        %v4260 = vadd.f32 %v4185, %v4259
        %v4261 = vpop.f32.mrb[0].mxu0
        %4262 = vmatprep.mubr.f32.mxu0 0.0
        %4263 = vmatmul.mubr.f32.gmra.mrb[0].mxu0 %v499
        %v4264 = vpop.f32.mrb[0].mxu0
        %v4265 = vadd.f32 %v4190, %v4264
        %v4266 = vpop.f32.mrb[0].mxu0
        %4267 = vdwg.mxu0
        %4268 = vset.pattern.permute.xlu0 2
        %4269 = vperm.xlu0 %4268, %v554
        %v4270 = vpop.permute.xlu0 %4269
        %4272 = vset.pattern.permute.xlu0 2
        %4273 = vperm.xlu0 %4272, %v555
        %v4274 = vpop.permute.xlu0 %4273
        %v4276 = vmul.f32 %v4260, %v4270
        %v4277 = vmul.f32 %v4265, %v4274
        %4278 = vset.pattern.permute.xlu0 3
        %4279 = vperm.xlu0 %4278, %v554
        %v4280 = vpop.permute.xlu0 %4279
        %4282 = vset.pattern.permute.xlu0 3
        %4283 = vperm.xlu0 %4282, %v555
        %v4284 = vpop.permute.xlu0 %4283
        %v4286 = vadd.f32 %v4276, %v4280
        %v4287 = vadd.f32 %v4277, %v4284
        %v4288 = vadd.f32 %v4286, %v474
        %v4289 = vadd.f32 %v4287, %v475
        %v4290 = vmax.f32 %v4288, 0.0
        %v4291 = vmax.f32 %v4289, 0.0
        %4292 = vst [vmem:[%s214] sm:$0xff] %v4290
        %4293 = vst [vmem:[%s214 + $0x8] sm:$0xff] %v4291
        %s4294 = sand.u32 %s97, 1
        %s4295 = scalar_lea.sflag [#allocation4], %s4294
        %s4296 = sand.u32 %s97, 1
        %s4297 = smul.addr %s4296, 16
        %s4298 = scalar_lea.vmem [#allocation8], %s4297
        // Predicated region
        $region45: #{tpu_custom_call.1} parent=31 // pred_check
          %p4299 = pneg %p107
        $region46: #{tpu_custom_call.1} parent=31 // pred_check_branch
          %4301 = sbr.rel (%p4299) target = $region48
        $region47: #{tpu_custom_call.1} parent=31 // pred_region
          %s4303 = ssub.s32 256, 256
          %4304 = vsyncadd %s4295, %s4303
          %s4305 = smul.addr %s21, 128
          %s4306 = scalar_lea.hbm %s3, %s4305
          %s4307 = sshll.u32 %s4298, 4
          %s4308 = int_to_ptr.vmem [resolvable:$true] %s4307
          %4313 = dma.vmem_to_hbm [thread:$0]  %s4308, 256, %s4306, %s4295, 128, 256, 8
        $region48: #{tpu_custom_call.1} parent=31 // pred_fallthru
          _
      $region32: #{tpu_custom_call.1} parent=5 // pred_fallthru
        _
      %p4314 = scmp.le.s32.totalorder 2, %s16
      // Predicated region
      $region49: #{tpu_custom_call.1} parent=5 // pred_check
        %p4315 = pneg %p4314
      $region50: #{tpu_custom_call.1} parent=5 // pred_check_branch
        %4317 = sbr.rel (%p4315) target = $region52
      $region51: #{tpu_custom_call.1} parent=5 // pred_region
        %s4318 = ssub.s32 %s16, 2
        // Predicated region
        $region53: #{tpu_custom_call.1} parent=51 // pred_check
          %p4319 = pneg %p113
        $region54: #{tpu_custom_call.1} parent=51 // pred_check_branch
          %4321 = sbr.rel (%p4319) target = $region56
        $region55: #{tpu_custom_call.1} parent=51 // pred_region
          %s4322 = sand.u32 %s98, 1
          %s4323 = scalar_lea.sflag [#allocation4], %s4322
          %s4324 = sand.u32 %s98, 1
          %s4325 = smul.addr %s4324, 16
          %s4326 = scalar_lea.vmem [#allocation8], %s4325
          %4327 = dma.done %s4323, 256
        $region56: #{tpu_custom_call.1} parent=51 // pred_fallthru
          _
      $region52: #{tpu_custom_call.1} parent=5 // pred_fallthru
        _
    $region6: #{tpu_custom_call.1} parent=1 // loop_footer
      %s20 = sadd.s32 1, %s16
    $region7: #{tpu_custom_call.1} parent=1 // loop_footer_branch
      %15 = sbr.rel target = $region3
    $region8: #{tpu_custom_call.1} parent=1 // loop_exit
      _
    %4328 = vsyncpa [#allocation3], 1
    %s4329 = scalar_lea.sflag [#allocation3], 1
    %4330 = vsyncpa %s4329, 1
    %4331 = vsyncpa [#allocation6], 1
    %4332 = vsyncpa [#allocation4], 1
    %s4333 = scalar_lea.sflag [#allocation4], 1
    %4334 = vsyncpa %s4333, 1

</llo_original>
